<compile_context>
chip_gen: v7x
topology: tpu7x:2x2x1
jax: 0.10.0
libtpu: 0.0.40
codegen_flags: <defaults>
</compile_context>

<pallas_src>
import functools

import jax
import jax.numpy as jnp
from jax.experimental import pallas as pl
from jax.experimental.pallas import tpu as pltpu

EPS_LN = 1e-5        # PyTorch nn.LayerNorm default eps
_NEG_BIG = -1e9      # finite stand-in for -inf key-padding bias
                     # (NOTE: a fully padded row gives a uniform attention
                     #  distribution here, whereas PyTorch would produce NaN.)


def _layer_norm(v, g, b):
    mu = jnp.mean(v, axis=-1, keepdims=True)
    var = jnp.mean((v - mu) ** 2, axis=-1, keepdims=True)
    return (v - mu) * jax.lax.rsqrt(var + EPS_LN) * g + b


def _layer_fwd(x, kp_bias, wqkv, bqkv, wo, bo, ln1g, ln1b,
               w1, b1, w2, b2, ln2g, ln2b, *, num_heads, batch, seq,
               softmax_recip):
    """One post-norm nn.TransformerEncoderLayer (ReLU FFN, eval mode) on a slab
    of `batch` sequences.

    x: [batch*seq, D] f32.  wqkv: [D, 3D] bf16 (1/sqrt(dh) folded into the Q
    third), wo: [D, D] bf16, w1: [D, F] / w2: [F, D] bf16.  Biases / LN params
    f32.  kp_bias: [batch, 1, seq] additive key-padding bias.  Shared verbatim
    by the Pallas kernel and the pure-JAX reference (only the softmax
    reciprocal implementation differs).
    """
    rows, D = x.shape
    H = num_heads
    dh = D // H

    x_bf = x.astype(jnp.bfloat16)

    # fused, lane-dense QKV projection: one [rows, D] x [D, 3D] matmul
    qkv = jnp.dot(x_bf, wqkv, preferred_element_type=jnp.float32) + bqkv
    q = qkv[:, :D].reshape(batch, seq, D)
    k = qkv[:, D:2 * D].reshape(batch, seq, D)
    v = qkv[:, 2 * D:].reshape(batch, seq, D)

    # per-head scaled-dot-product attention (scale already folded into wqkv).
    # Heads are statically unrolled; each step is a 3-D einsum batched over
    # the TB sequences (same pattern as the flash-attention reference kernel).
    ctx_heads = []
    for h in range(H):
        sl = slice(h * dh, (h + 1) * dh)
        qh = q[:, :, sl].astype(jnp.bfloat16)
        kh = k[:, :, sl].astype(jnp.bfloat16)
        vh = v[:, :, sl].astype(jnp.bfloat16)
        s = jnp.einsum('bqe,bke->bqk', qh, kh,
                       preferred_element_type=jnp.float32)
        s = s + kp_bias                                    # [batch, seq, seq]
        s = s - jnp.max(s, axis=-1, keepdims=True)
        p = jnp.exp(s)
        p = p * softmax_recip(jnp.sum(p, axis=-1, keepdims=True))
        ctx_heads.append(
            jnp.einsum('bqk,bke->bqe', p.astype(jnp.bfloat16), vh,
                       preferred_element_type=jnp.float32))
    ctx = jnp.concatenate(ctx_heads, axis=-1).reshape(rows, D)   # [rows, D]

    # single lane-dense output projection (K = D), no cross-head reduce
    attn = jnp.dot(ctx.astype(jnp.bfloat16), wo,
                   preferred_element_type=jnp.float32) + bo
    x = _layer_norm(x + attn, ln1g, ln1b)

    # ReLU feed-forward on the flattened [rows, .] slab
    ff = jnp.dot(x.astype(jnp.bfloat16), w1,
                 preferred_element_type=jnp.float32) + b1
    ff = jnp.maximum(ff, 0.0)
    ff = jnp.dot(ff.astype(jnp.bfloat16), w2,
                 preferred_element_type=jnp.float32) + b2
    return _layer_norm(x + ff, ln2g, ln2b)


def encoder_kernel(x_ref, mask_ref, bias_ref, ln0g_ref, ln0b_ref,
                   wqkv_ref, bqkv_ref, wo_ref, bo_ref, ln1g_ref, ln1b_ref,
                   w1_ref, b1_ref, w2_ref, b2_ref, ln2g_ref, ln2b_ref,
                   out_ref, x_acc, *, num_heads):
    layer = pl.program_id(1)
    n_layers = pl.num_programs(1)
    tb, seq, d = x_ref.shape

    # first layer: load this batch-tile's embeddings and apply the initial
    # LayerNorm into the resident activation scratch
    @pl.when(layer == 0)
    def _():
        x0 = x_ref[...].reshape(tb * seq, d)
        x_acc[...] = _layer_norm(x0, ln0g_ref[...], ln0b_ref[...])

    x_new = _layer_fwd(
        x_acc[...], bias_ref[...],
        wqkv_ref[0], bqkv_ref[0], wo_ref[0], bo_ref[0],
        ln1g_ref[0], ln1b_ref[0],
        w1_ref[0], b1_ref[0], w2_ref[0], b2_ref[0],
        ln2g_ref[0], ln2b_ref[0],
        num_heads=num_heads, batch=tb, seq=seq,
        softmax_recip=lambda den: pl.reciprocal(den, approx=True))
    x_acc[...] = x_new

    # last layer: masked mean pooling, written once (output block is resident
    # across the layer axis).  Exact divide: cold path, count denominator.
    @pl.when(layer == n_layers - 1)
    def _():
        mask = mask_ref[...]                               # [TB, 1, S] f32
        xb = x_new.reshape(tb, seq, d)
        summed = jnp.einsum('bis,bsd->bid', mask, xb,
                            preferred_element_type=jnp.float32)   # [TB, 1, D]
        denom = jnp.sum(mask, axis=-1, keepdims=True)              # [TB, 1, 1]
        out_ref[...] = summed / jnp.maximum(denom, 1e-9)


def init_params(key, D, F, L, max_length):
    ks = iter(jax.random.split(key, 32))

    def nrm(shape, scale):
        return jax.random.normal(next(ks), shape, dtype=jnp.float32) * scale

    aa = nrm((26, D), 0.02).at[0].set(0.0)          # padding_idx=0 -> zero row
    pos = nrm((max_length, D), 0.02)
    return dict(
        aa=aa, pos=pos,
        ln0g=jnp.ones((1, D), jnp.float32), ln0b=jnp.zeros((1, D), jnp.float32),
        wq=nrm((L, D, D), D ** -0.5), bq=nrm((L, 1, D), 0.01),
        wk=nrm((L, D, D), D ** -0.5), bk=nrm((L, 1, D), 0.01),
        wv=nrm((L, D, D), D ** -0.5), bv=nrm((L, 1, D), 0.01),
        wo=nrm((L, D, D), D ** -0.5), bo=nrm((L, 1, D), 0.01),
        ln1g=jnp.ones((L, 1, D), jnp.float32), ln1b=jnp.zeros((L, 1, D), jnp.float32),
        w1=nrm((L, D, F), D ** -0.5), b1=nrm((L, 1, F), 0.01),
        w2=nrm((L, F, D), F ** -0.5), b2=nrm((L, 1, D), 0.01),
        ln2g=jnp.ones((L, 1, D), jnp.float32), ln2b=jnp.zeros((L, 1, D), jnp.float32),
    )


def prepare_kernel_params(p, num_heads):
    """One-time re-layout: fuse Wq|Wk|Wv into a lane-dense [L, D, 3D] bf16
    weight with the attention scale folded into the Q third, keep Wo / W1 / W2
    as [L, D, D] / [L, D, F] / [L, F, D] bf16 (f32 accumulation happens
    in-kernel), keep LN params / biases f32."""
    L, D, _ = p['wq'].shape
    dh = D // num_heads
    scale = 1.0 / (dh ** 0.5)
    bf = lambda w: w.astype(jnp.bfloat16)

    wqkv = jnp.concatenate([p['wq'] * scale, p['wk'], p['wv']], axis=-1)   # [L, D, 3D]
    bqkv = jnp.concatenate([p['bq'] * scale, p['bk'], p['bv']], axis=-1)   # [L, 1, 3D]
    return dict(
        ln0g=p['ln0g'], ln0b=p['ln0b'],
        wqkv=bf(wqkv), bqkv=bqkv,
        wo=bf(p['wo']), bo=p['bo'],
        ln1g=p['ln1g'], ln1b=p['ln1b'],
        w1=bf(p['w1']), b1=p['b1'], w2=bf(p['w2']), b2=p['b2'],
        ln2g=p['ln2g'], ln2b=p['ln2b'],
    )


def _pick_batch_tile(B, S, target_rows=256, max_rows=512):
    """Largest divisor of B with TB*S <= max_rows, stopping once TB*S >=
    target_rows (so the MXU M-dim reaches ~256 rows per matmul)."""
    best = 1
    for tb in range(1, B + 1):
        if B % tb == 0 and tb * S <= max_rows:
            best = tb
            if tb * S >= target_rows:
                break
    return best


def _vmem_limit_bytes(tb, seq, d, f, h):
    """Derive the VMEM request from the actual tile footprint (with margin)
    instead of asking for the whole physical VMEM."""
    rows = tb * seq
    f32, bf16 = 4, 2
    # double-buffered pipelined input/output blocks
    io = 2 * (rows * d * f32 + 2 * tb * seq * f32 + tb * d * f32)
    # one layer's weights (bf16 matmul weights + f32 biases / LN), double-buffered
    w = (d * 3 * d + d * d + d * f + f * d) * bf16 + (3 * d + 9 * d + f) * f32
    # resident activation scratch + in-kernel f32 temporaries
    scratch = rows * d * f32
    temps = rows * (3 * d + f + 4 * d) * f32 + 2 * h * tb * seq * seq * f32
    est = io + 2 * w + scratch + temps
    return int(min(32 * 1024 * 1024, max(8 * 1024 * 1024, 4 * est)))


def protein_encoder_forward(sequences, attention_mask, params, *,
                            num_heads, num_layers, batch_tile=None):
    """sequences: [B, S] int32 amino-acid ids; returns [B, D] float32 pooled encoding."""
    B, S = sequences.shape
    D = params['aa'].shape[1]
    F_dim = params['w1'].shape[-1]
    L = num_layers

    if attention_mask is None:
        attention_mask = (sequences > 0).astype(jnp.float32)
    mask = attention_mask.astype(jnp.float32).reshape(B, 1, S)
    # key-padding additive bias, computed ONCE in the wrapper (not per layer)
    kp_bias = jnp.where(mask > 0.0, 0.0, _NEG_BIG).astype(jnp.float32)

    # glue: embedding gathers + positional add (no clean tiled Pallas form at
    # this size); LN + transformer stack + pooling run inside the kernel.
    aa_emb = jnp.take(params['aa'], sequences, axis=0)            # [B, S, D]
    x = (aa_emb + params['pos'][None, :S, :]).astype(jnp.float32)

    kp = prepare_kernel_params(params, num_heads)

    TB = batch_tile if batch_tile is not None else _pick_batch_tile(B, S)
    assert B % TB == 0, "batch_tile must divide the batch size"

    wmap = lambda b, l: (l, 0, 0)          # per-layer weight tiles
    bmap = lambda b, l: (b, 0, 0)          # per-batch-tile activation tiles
    cmap = lambda b, l: (0, 0)             # initial-LN params (constant)

    # TODO(synk): if xprof shows exposed weight DMA on v5e, add
    # pipeline_mode=pl.Buffered(3) to the weight BlockSpecs below.
    in_specs = [
        pl.BlockSpec((TB, S, D), bmap),              # embeddings
        pl.BlockSpec((TB, 1, S), bmap),              # attention mask (pooling)
        pl.BlockSpec((TB, 1, S), bmap),              # key-padding additive bias
        pl.BlockSpec((1, D), cmap),                  # ln0 gamma
        pl.BlockSpec((1, D), cmap),                  # ln0 beta
        pl.BlockSpec((1, D, 3 * D), wmap),           # wqkv (scale folded, bf16)
        pl.BlockSpec((1, 1, 3 * D), wmap),           # bqkv
        pl.BlockSpec((1, D, D), wmap),               # wo
        pl.BlockSpec((1, 1, D), wmap),               # bo
        pl.BlockSpec((1, 1, D), wmap),               # ln1 gamma
        pl.BlockSpec((1, 1, D), wmap),               # ln1 beta
        pl.BlockSpec((1, D, F_dim), wmap),           # w1
        pl.BlockSpec((1, 1, F_dim), wmap),           # b1
        pl.BlockSpec((1, F_dim, D), wmap),           # w2
        pl.BlockSpec((1, 1, D), wmap),               # b2
        pl.BlockSpec((1, 1, D), wmap),               # ln2 gamma
        pl.BlockSpec((1, 1, D), wmap),               # ln2 beta
    ]

    kernel = functools.partial(encoder_kernel, num_heads=num_heads)
    pooled = pl.pallas_call(
        kernel,
        out_shape=jax.ShapeDtypeStruct((B, 1, D), jnp.float32),
        grid_spec=pltpu.PrefetchScalarGridSpec(
            num_scalar_prefetch=0,
            grid=(B // TB, L),               # batch tiles parallel, layers sequential
            in_specs=in_specs,
            out_specs=pl.BlockSpec((TB, 1, D), bmap),
            scratch_shapes=[pltpu.VMEM((TB * S, D), jnp.float32)],
        ),
        compiler_params=pltpu.CompilerParams(
            dimension_semantics=("parallel", "arbitrary"),
            vmem_limit_bytes=_vmem_limit_bytes(TB, S, D, F_dim, num_heads),
        ),
    )(x, mask, kp_bias,
      kp['ln0g'], kp['ln0b'],
      kp['wqkv'], kp['bqkv'], kp['wo'], kp['bo'], kp['ln1g'], kp['ln1b'],
      kp['w1'], kp['b1'], kp['w2'], kp['b2'], kp['ln2g'], kp['ln2b'])
    return pooled.reshape(B, D)


def _encoder_ref(x, mask, kp, *, num_heads, num_layers):
    """Pure-JAX reference with identical math (bf16 matmuls, fused/folded QKV,
    finite -1e9 padding bias); exact divides instead of approx reciprocal."""
    B, S, D = x.shape
    kpb = jnp.where(mask > 0.0, 0.0, _NEG_BIG)            # [B, 1, S]
    xb = _layer_norm(x.reshape(B * S, D), kp['ln0g'], kp['ln0b'])
    recip = lambda den: 1.0 / den
    for l in range(num_layers):
        xb = _layer_fwd(
            xb, kpb,
            kp['wqkv'][l], kp['bqkv'][l], kp['wo'][l], kp['bo'][l],
            kp['ln1g'][l], kp['ln1b'][l], kp['w1'][l], kp['b1'][l],
            kp['w2'][l], kp['b2'][l], kp['ln2g'][l], kp['ln2b'][l],
            num_heads=num_heads, batch=B, seq=S, softmax_recip=recip)
    xr = xb.reshape(B, S, D)
    summed = jnp.einsum('bis,bsd->bid', mask, xr,
                        preferred_element_type=jnp.float32)
    denom = jnp.sum(mask, axis=-1, keepdims=True)
    return (summed / jnp.maximum(denom, 1e-9)).reshape(B, D)


if __name__ == "__main__":
    # Small demo shapes (embed dim chosen lane-dense: D multiple of 128).
    D, F_DIM, H, L, MAXLEN = 128, 256, 4, 2, 16
    B, S = 2, 8

    key = jax.random.PRNGKey(0)
    pkey, skey = jax.random.split(key)
    params = init_params(pkey, D, F_DIM, L, MAXLEN)

    seqs = jax.random.randint(skey, (B, S), minval=1, maxval=26, dtype=jnp.int32)
    seqs = seqs.at[1, 5:].set(0)                      # padding tokens at tail of row 1
    mask = (seqs > 0).astype(jnp.float32)

    out = protein_encoder_forward(seqs, mask, params, num_heads=H, num_layers=L)
    out = jax.block_until_ready(out)
    assert out.shape == (B, D)

    # pure-JAX reference using the identical (bf16-matmul) math
    aa_emb = jnp.take(params['aa'], seqs, axis=0)
    x_ref = (aa_emb + params['pos'][None, :S, :]).astype(jnp.float32)
    kparams = prepare_kernel_params(params, H)
    ref = _encoder_ref(x_ref, mask.reshape(B, 1, S), kparams,
                       num_heads=H, num_layers=L)
    max_err = float(jnp.max(jnp.abs(out - ref)))
    assert jnp.allclose(out, ref, atol=2e-2, rtol=2e-2), f"mismatch, max err {max_err}"

    # TODO(synk): dropout layers are treated as eval-mode identities (inference semantics).
    print("KERNEL_OK")
</pallas_src>

<mosaic_0001>
module attributes {stable_mosaic.version = 11 : i64} {
  func.func @encoder_kernel(%arg0: i32, %arg1: i32, %arg2: memref<2x8x128xf32, #tpu.memory_space<vmem>>, %arg3: memref<2x1x8xf32, #tpu.memory_space<vmem>>, %arg4: memref<2x1x8xf32, #tpu.memory_space<vmem>>, %arg5: memref<1x128xf32, #tpu.memory_space<vmem>>, %arg6: memref<1x128xf32, #tpu.memory_space<vmem>>, %arg7: memref<1x128x384xbf16, #tpu.memory_space<vmem>>, %arg8: memref<1x1x384xf32, #tpu.memory_space<vmem>>, %arg9: memref<1x128x128xbf16, #tpu.memory_space<vmem>>, %arg10: memref<1x1x128xf32, #tpu.memory_space<vmem>>, %arg11: memref<1x1x128xf32, #tpu.memory_space<vmem>>, %arg12: memref<1x1x128xf32, #tpu.memory_space<vmem>>, %arg13: memref<1x128x256xbf16, #tpu.memory_space<vmem>>, %arg14: memref<1x1x256xf32, #tpu.memory_space<vmem>>, %arg15: memref<1x256x128xbf16, #tpu.memory_space<vmem>>, %arg16: memref<1x1x128xf32, #tpu.memory_space<vmem>>, %arg17: memref<1x1x128xf32, #tpu.memory_space<vmem>>, %arg18: memref<1x1x128xf32, #tpu.memory_space<vmem>>, %arg19: memref<2x1x128xf32, #tpu.memory_space<vmem>>, %arg20: memref<16x128xf32, #tpu.memory_space<vmem>>) attributes {dimension_semantics = [#tpu.dimension_semantics<parallel>, #tpu.dimension_semantics<arbitrary>], iteration_bounds = array<i64: 1, 2>, scalar_prefetch = 0 : i64, scratch_operands = 1 : i64, tpu.core_type = #tpu.core_type<tc>, window_params = [{transform_indices = @transform_0, window_bounds = array<i64: 2, 8, 128>}, {transform_indices = @transform_1, window_bounds = array<i64: 2, 1, 8>}, {transform_indices = @transform_2, window_bounds = array<i64: 2, 1, 8>}, {pipeline_mode = #tpu.pipeline_mode<synchronous>, transform_indices = @transform_3, window_bounds = array<i64: 1, 128>}, {pipeline_mode = #tpu.pipeline_mode<synchronous>, transform_indices = @transform_4, window_bounds = array<i64: 1, 128>}, {transform_indices = @transform_5, window_bounds = array<i64: 1, 128, 384>}, {transform_indices = @transform_6, window_bounds = array<i64: 1, 1, 384>}, {transform_indices = @transform_7, window_bounds = array<i64: 1, 128, 128>}, {transform_indices = @transform_8, window_bounds = array<i64: 1, 1, 128>}, {transform_indices = @transform_9, window_bounds = array<i64: 1, 1, 128>}, {transform_indices = @transform_10, window_bounds = array<i64: 1, 1, 128>}, {transform_indices = @transform_11, window_bounds = array<i64: 1, 128, 256>}, {transform_indices = @transform_12, window_bounds = array<i64: 1, 1, 256>}, {transform_indices = @transform_13, window_bounds = array<i64: 1, 256, 128>}, {transform_indices = @transform_14, window_bounds = array<i64: 1, 1, 128>}, {transform_indices = @transform_15, window_bounds = array<i64: 1, 1, 128>}, {transform_indices = @transform_16, window_bounds = array<i64: 1, 1, 128>}, {transform_indices = @transform_17, window_bounds = array<i64: 2, 1, 128>}]} {
    %c0_i32 = arith.constant 0 : i32
    %0 = arith.cmpi eq, %arg1, %c0_i32 : i32
    %1 = arith.extui %0 : i1 to i32
    %c0_i32_0 = arith.constant 0 : i32
    %2 = arith.cmpi ne, %1, %c0_i32_0 : i32
    scf.if %2 {
      %c0_74 = arith.constant 0 : index
      %c0_75 = arith.constant 0 : index
      %c0_76 = arith.constant 0 : index
      %189 = vector.load %arg2[%c0_74, %c0_75, %c0_76] : memref<2x8x128xf32, #tpu.memory_space<vmem>>, vector<2x8x128xf32>
      %190 = vector.shape_cast %189 : vector<2x8x128xf32> to vector<16x128xf32>
      %c0_77 = arith.constant 0 : index
      %c0_78 = arith.constant 0 : index
      %191 = vector.load %arg5[%c0_77, %c0_78] : memref<1x128xf32, #tpu.memory_space<vmem>>, vector<1x128xf32>
      %c0_79 = arith.constant 0 : index
      %c0_80 = arith.constant 0 : index
      %192 = vector.load %arg6[%c0_79, %c0_80] : memref<1x128xf32, #tpu.memory_space<vmem>>, vector<1x128xf32>
      %cst_81 = arith.constant dense<0.000000e+00> : vector<16xf32>
      %193 = vector.multi_reduction <add>, %190, %cst_81 [1] : vector<16x128xf32> to vector<16xf32>
      %194 = vector.shape_cast %193 : vector<16xf32> to vector<16x1xf32>
      %cst_82 = arith.constant 1.280000e+02 : f32
      %195 = vector.broadcast %cst_82 : f32 to vector<16x1xf32>
      %196 = arith.divf %194, %195 : vector<16x1xf32>
      %197 = vector.broadcast %196 : vector<16x1xf32> to vector<16x128xf32>
      %198 = arith.subf %190, %197 : vector<16x128xf32>
      %199 = arith.mulf %198, %198 : vector<16x128xf32>
      %cst_83 = arith.constant dense<0.000000e+00> : vector<16xf32>
      %200 = vector.multi_reduction <add>, %199, %cst_83 [1] : vector<16x128xf32> to vector<16xf32>
      %201 = vector.shape_cast %200 : vector<16xf32> to vector<16x1xf32>
      %cst_84 = arith.constant 1.280000e+02 : f32
      %202 = vector.broadcast %cst_84 : f32 to vector<16x1xf32>
      %203 = arith.divf %201, %202 : vector<16x1xf32>
      %204 = vector.broadcast %196 : vector<16x1xf32> to vector<16x128xf32>
      %205 = arith.subf %190, %204 : vector<16x128xf32>
      %cst_85 = arith.constant 9.99999974E-6 : f32
      %206 = vector.broadcast %cst_85 : f32 to vector<16x1xf32>
      %207 = arith.addf %203, %206 : vector<16x1xf32>
      %208 = math.rsqrt %207 : vector<16x1xf32>
      %209 = vector.broadcast %208 : vector<16x1xf32> to vector<16x128xf32>
      %210 = arith.mulf %205, %209 : vector<16x128xf32>
      %211 = vector.broadcast %191 : vector<1x128xf32> to vector<16x128xf32>
      %212 = arith.mulf %210, %211 : vector<16x128xf32>
      %213 = vector.broadcast %192 : vector<1x128xf32> to vector<16x128xf32>
      %214 = arith.addf %212, %213 : vector<16x128xf32>
      %c0_86 = arith.constant 0 : index
      %c0_87 = arith.constant 0 : index
      %215 = vector.load %arg20[%c0_86, %c0_87] : memref<16x128xf32, #tpu.memory_space<vmem>>, vector<16x128xf32>
      tpu.vector_store %arg20[%c0_86, %c0_87], %214 {strides = array<i32>} : memref<16x128xf32, #tpu.memory_space<vmem>>, vector<16x128xf32>,
    } else {
    }
    %c0 = arith.constant 0 : index
    %c0_1 = arith.constant 0 : index
    %3 = vector.load %arg20[%c0, %c0_1] : memref<16x128xf32, #tpu.memory_space<vmem>>, vector<16x128xf32>
    %c0_2 = arith.constant 0 : index
    %c0_3 = arith.constant 0 : index
    %c0_4 = arith.constant 0 : index
    %4 = vector.load %arg4[%c0_2, %c0_3, %c0_4] : memref<2x1x8xf32, #tpu.memory_space<vmem>>, vector<2x1x8xf32>
    %c0_5 = arith.constant 0 : index
    %c0_6 = arith.constant 0 : index
    %c0_7 = arith.constant 0 : index
    %5 = vector.load %arg7[%c0_5, %c0_6, %c0_7] : memref<1x128x384xbf16, #tpu.memory_space<vmem>>, vector<1x128x384xbf16>
    %6 = vector.shape_cast %5 : vector<1x128x384xbf16> to vector<128x384xbf16>
    %c0_8 = arith.constant 0 : index
    %c0_9 = arith.constant 0 : index
    %c0_10 = arith.constant 0 : index
    %7 = vector.load %arg8[%c0_8, %c0_9, %c0_10] : memref<1x1x384xf32, #tpu.memory_space<vmem>>, vector<1x1x384xf32>
    %8 = vector.shape_cast %7 : vector<1x1x384xf32> to vector<1x384xf32>
    %c0_11 = arith.constant 0 : index
    %c0_12 = arith.constant 0 : index
    %c0_13 = arith.constant 0 : index
    %9 = vector.load %arg9[%c0_11, %c0_12, %c0_13] : memref<1x128x128xbf16, #tpu.memory_space<vmem>>, vector<1x128x128xbf16>
    %10 = vector.shape_cast %9 : vector<1x128x128xbf16> to vector<128x128xbf16>
    %c0_14 = arith.constant 0 : index
    %c0_15 = arith.constant 0 : index
    %c0_16 = arith.constant 0 : index
    %11 = vector.load %arg10[%c0_14, %c0_15, %c0_16] : memref<1x1x128xf32, #tpu.memory_space<vmem>>, vector<1x1x128xf32>
    %12 = vector.shape_cast %11 : vector<1x1x128xf32> to vector<1x128xf32>
    %c0_17 = arith.constant 0 : index
    %c0_18 = arith.constant 0 : index
    %c0_19 = arith.constant 0 : index
    %13 = vector.load %arg11[%c0_17, %c0_18, %c0_19] : memref<1x1x128xf32, #tpu.memory_space<vmem>>, vector<1x1x128xf32>
    %14 = vector.shape_cast %13 : vector<1x1x128xf32> to vector<1x128xf32>
    %c0_20 = arith.constant 0 : index
    %c0_21 = arith.constant 0 : index
    %c0_22 = arith.constant 0 : index
    %15 = vector.load %arg12[%c0_20, %c0_21, %c0_22] : memref<1x1x128xf32, #tpu.memory_space<vmem>>, vector<1x1x128xf32>
    %16 = vector.shape_cast %15 : vector<1x1x128xf32> to vector<1x128xf32>
    %c0_23 = arith.constant 0 : index
    %c0_24 = arith.constant 0 : index
    %c0_25 = arith.constant 0 : index
    %17 = vector.load %arg13[%c0_23, %c0_24, %c0_25] : memref<1x128x256xbf16, #tpu.memory_space<vmem>>, vector<1x128x256xbf16>
    %18 = vector.shape_cast %17 : vector<1x128x256xbf16> to vector<128x256xbf16>
    %c0_26 = arith.constant 0 : index
    %c0_27 = arith.constant 0 : index
    %c0_28 = arith.constant 0 : index
    %19 = vector.load %arg14[%c0_26, %c0_27, %c0_28] : memref<1x1x256xf32, #tpu.memory_space<vmem>>, vector<1x1x256xf32>
    %20 = vector.shape_cast %19 : vector<1x1x256xf32> to vector<1x256xf32>
    %c0_29 = arith.constant 0 : index
    %c0_30 = arith.constant 0 : index
    %c0_31 = arith.constant 0 : index
    %21 = vector.load %arg15[%c0_29, %c0_30, %c0_31] : memref<1x256x128xbf16, #tpu.memory_space<vmem>>, vector<1x256x128xbf16>
    %22 = vector.shape_cast %21 : vector<1x256x128xbf16> to vector<256x128xbf16>
    %c0_32 = arith.constant 0 : index
    %c0_33 = arith.constant 0 : index
    %c0_34 = arith.constant 0 : index
    %23 = vector.load %arg16[%c0_32, %c0_33, %c0_34] : memref<1x1x128xf32, #tpu.memory_space<vmem>>, vector<1x1x128xf32>
    %24 = vector.shape_cast %23 : vector<1x1x128xf32> to vector<1x128xf32>
    %c0_35 = arith.constant 0 : index
    %c0_36 = arith.constant 0 : index
    %c0_37 = arith.constant 0 : index
    %25 = vector.load %arg17[%c0_35, %c0_36, %c0_37] : memref<1x1x128xf32, #tpu.memory_space<vmem>>, vector<1x1x128xf32>
    %26 = vector.shape_cast %25 : vector<1x1x128xf32> to vector<1x128xf32>
    %c0_38 = arith.constant 0 : index
    %c0_39 = arith.constant 0 : index
    %c0_40 = arith.constant 0 : index
    %27 = vector.load %arg18[%c0_38, %c0_39, %c0_40] : memref<1x1x128xf32, #tpu.memory_space<vmem>>, vector<1x1x128xf32>
    %28 = vector.shape_cast %27 : vector<1x1x128xf32> to vector<1x128xf32>
    %29 = arith.truncf %3 : vector<16x128xf32> to vector<16x128xbf16>
    %cst = arith.constant dense<0.000000e+00> : vector<16x384xf32>
    %30 = tpu.matmul %29, %6, %cst {dimension_numbers = #tpu.dot_dimension_numbers<[1], [0], [0], [1], [0, 0, 1, 1], [], []>} : vector<16x128xbf16>, vector<128x384xbf16>, vector<16x384xf32> -> vector<16x384xf32>
    %31 = vector.broadcast %8 : vector<1x384xf32> to vector<16x384xf32>
    %32 = arith.addf %30, %31 : vector<16x384xf32>
    %33 = vector.extract_strided_slice %32 {offsets = [0, 0], sizes = [16, 128], strides = [1, 1]} : vector<16x384xf32> to vector<16x128xf32>
    %34 = vector.shape_cast %33 : vector<16x128xf32> to vector<2x8x128xf32>
    %35 = vector.extract_strided_slice %32 {offsets = [0, 128], sizes = [16, 128], strides = [1, 1]} : vector<16x384xf32> to vector<16x128xf32>
    %36 = vector.shape_cast %35 : vector<16x128xf32> to vector<2x8x128xf32>
    %37 = vector.extract_strided_slice %32 {offsets = [0, 256], sizes = [16, 128], strides = [1, 1]} : vector<16x384xf32> to vector<16x128xf32>
    %38 = vector.shape_cast %37 : vector<16x128xf32> to vector<2x8x128xf32>
    %39 = vector.extract_strided_slice %34 {offsets = [0, 0, 0], sizes = [2, 8, 32], strides = [1, 1, 1]} : vector<2x8x128xf32> to vector<2x8x32xf32>
    %40 = arith.truncf %39 : vector<2x8x32xf32> to vector<2x8x32xbf16>
    %41 = vector.extract_strided_slice %36 {offsets = [0, 0, 0], sizes = [2, 8, 32], strides = [1, 1, 1]} : vector<2x8x128xf32> to vector<2x8x32xf32>
    %42 = arith.truncf %41 : vector<2x8x32xf32> to vector<2x8x32xbf16>
    %43 = vector.extract_strided_slice %38 {offsets = [0, 0, 0], sizes = [2, 8, 32], strides = [1, 1, 1]} : vector<2x8x128xf32> to vector<2x8x32xf32>
    %44 = arith.truncf %43 : vector<2x8x32xf32> to vector<2x8x32xbf16>
    "tpu.trace_start"() <{level = 10 : i32, message = "bqe,bke->bqk"}> : () -> ()
    %cst_41 = arith.constant dense<0.000000e+00> : vector<2x8x8xf32>
    %45 = tpu.matmul %40, %42, %cst_41 {dimension_numbers = #tpu.dot_dimension_numbers<[2], [2], [1], [1], [0, 0, 0, 1, 1, 1], [0], [0]>} : vector<2x8x32xbf16>, vector<2x8x32xbf16>, vector<2x8x8xf32> -> vector<2x8x8xf32>
    "tpu.trace_stop"() : () -> ()
    %46 = vector.broadcast %4 : vector<2x1x8xf32> to vector<2x8x8xf32>
    %47 = arith.addf %45, %46 : vector<2x8x8xf32>
    %cst_42 = arith.constant dense<0xFF800000> : vector<2x8xf32>
    %48 = vector.multi_reduction <maximumf>, %47, %cst_42 [2] : vector<2x8x8xf32> to vector<2x8xf32>
    %49 = vector.shape_cast %48 : vector<2x8xf32> to vector<2x8x1xf32>
    %50 = vector.broadcast %49 : vector<2x8x1xf32> to vector<2x8x8xf32>
    %51 = arith.subf %47, %50 : vector<2x8x8xf32>
    %52 = math.exp %51 : vector<2x8x8xf32>
    %cst_43 = arith.constant dense<0.000000e+00> : vector<2x8xf32>
    %53 = vector.multi_reduction <add>, %52, %cst_43 [2] : vector<2x8x8xf32> to vector<2x8xf32>
    %54 = vector.shape_cast %53 : vector<2x8xf32> to vector<2x8x1xf32>
    %55 = tpu.reciprocal %54 {approx = true} : vector<2x8x1xf32> -> vector<2x8x1xf32>
    %56 = vector.broadcast %55 : vector<2x8x1xf32> to vector<2x8x8xf32>
    %57 = arith.mulf %52, %56 : vector<2x8x8xf32>
    %58 = arith.truncf %57 : vector<2x8x8xf32> to vector<2x8x8xbf16>
    "tpu.trace_start"() <{level = 10 : i32, message = "bqk,bke->bqe"}> : () -> ()
    %cst_44 = arith.constant dense<0.000000e+00> : vector<2x8x32xf32>
    %59 = tpu.matmul %58, %44, %cst_44 {dimension_numbers = #tpu.dot_dimension_numbers<[2], [1], [1], [2], [0, 0, 0, 1, 1, 2], [0], [0]>} : vector<2x8x8xbf16>, vector<2x8x32xbf16>, vector<2x8x32xf32> -> vector<2x8x32xf32>
    "tpu.trace_stop"() : () -> ()
    %60 = vector.extract_strided_slice %34 {offsets = [0, 0, 32], sizes = [2, 8, 32], strides = [1, 1, 1]} : vector<2x8x128xf32> to vector<2x8x32xf32>
    %61 = arith.truncf %60 : vector<2x8x32xf32> to vector<2x8x32xbf16>
    %62 = vector.extract_strided_slice %36 {offsets = [0, 0, 32], sizes = [2, 8, 32], strides = [1, 1, 1]} : vector<2x8x128xf32> to vector<2x8x32xf32>
    %63 = arith.truncf %62 : vector<2x8x32xf32> to vector<2x8x32xbf16>
    %64 = vector.extract_strided_slice %38 {offsets = [0, 0, 32], sizes = [2, 8, 32], strides = [1, 1, 1]} : vector<2x8x128xf32> to vector<2x8x32xf32>
    %65 = arith.truncf %64 : vector<2x8x32xf32> to vector<2x8x32xbf16>
    "tpu.trace_start"() <{level = 10 : i32, message = "bqe,bke->bqk"}> : () -> ()
    %cst_45 = arith.constant dense<0.000000e+00> : vector<2x8x8xf32>
    %66 = tpu.matmul %61, %63, %cst_45 {dimension_numbers = #tpu.dot_dimension_numbers<[2], [2], [1], [1], [0, 0, 0, 1, 1, 1], [0], [0]>} : vector<2x8x32xbf16>, vector<2x8x32xbf16>, vector<2x8x8xf32> -> vector<2x8x8xf32>
    "tpu.trace_stop"() : () -> ()
    %67 = vector.broadcast %4 : vector<2x1x8xf32> to vector<2x8x8xf32>
    %68 = arith.addf %66, %67 : vector<2x8x8xf32>
    %cst_46 = arith.constant dense<0xFF800000> : vector<2x8xf32>
    %69 = vector.multi_reduction <maximumf>, %68, %cst_46 [2] : vector<2x8x8xf32> to vector<2x8xf32>
    %70 = vector.shape_cast %69 : vector<2x8xf32> to vector<2x8x1xf32>
    %71 = vector.broadcast %70 : vector<2x8x1xf32> to vector<2x8x8xf32>
    %72 = arith.subf %68, %71 : vector<2x8x8xf32>
    %73 = math.exp %72 : vector<2x8x8xf32>
    %cst_47 = arith.constant dense<0.000000e+00> : vector<2x8xf32>
    %74 = vector.multi_reduction <add>, %73, %cst_47 [2] : vector<2x8x8xf32> to vector<2x8xf32>
    %75 = vector.shape_cast %74 : vector<2x8xf32> to vector<2x8x1xf32>
    %76 = tpu.reciprocal %75 {approx = true} : vector<2x8x1xf32> -> vector<2x8x1xf32>
    %77 = vector.broadcast %76 : vector<2x8x1xf32> to vector<2x8x8xf32>
    %78 = arith.mulf %73, %77 : vector<2x8x8xf32>
    %79 = arith.truncf %78 : vector<2x8x8xf32> to vector<2x8x8xbf16>
    "tpu.trace_start"() <{level = 10 : i32, message = "bqk,bke->bqe"}> : () -> ()
    %cst_48 = arith.constant dense<0.000000e+00> : vector<2x8x32xf32>
    %80 = tpu.matmul %79, %65, %cst_48 {dimension_numbers = #tpu.dot_dimension_numbers<[2], [1], [1], [2], [0, 0, 0, 1, 1, 2], [0], [0]>} : vector<2x8x8xbf16>, vector<2x8x32xbf16>, vector<2x8x32xf32> -> vector<2x8x32xf32>
    "tpu.trace_stop"() : () -> ()
    %81 = vector.extract_strided_slice %34 {offsets = [0, 0, 64], sizes = [2, 8, 32], strides = [1, 1, 1]} : vector<2x8x128xf32> to vector<2x8x32xf32>
    %82 = arith.truncf %81 : vector<2x8x32xf32> to vector<2x8x32xbf16>
    %83 = vector.extract_strided_slice %36 {offsets = [0, 0, 64], sizes = [2, 8, 32], strides = [1, 1, 1]} : vector<2x8x128xf32> to vector<2x8x32xf32>
    %84 = arith.truncf %83 : vector<2x8x32xf32> to vector<2x8x32xbf16>
    %85 = vector.extract_strided_slice %38 {offsets = [0, 0, 64], sizes = [2, 8, 32], strides = [1, 1, 1]} : vector<2x8x128xf32> to vector<2x8x32xf32>
    %86 = arith.truncf %85 : vector<2x8x32xf32> to vector<2x8x32xbf16>
    "tpu.trace_start"() <{level = 10 : i32, message = "bqe,bke->bqk"}> : () -> ()
    %cst_49 = arith.constant dense<0.000000e+00> : vector<2x8x8xf32>
    %87 = tpu.matmul %82, %84, %cst_49 {dimension_numbers = #tpu.dot_dimension_numbers<[2], [2], [1], [1], [0, 0, 0, 1, 1, 1], [0], [0]>} : vector<2x8x32xbf16>, vector<2x8x32xbf16>, vector<2x8x8xf32> -> vector<2x8x8xf32>
    "tpu.trace_stop"() : () -> ()
    %88 = vector.broadcast %4 : vector<2x1x8xf32> to vector<2x8x8xf32>
    %89 = arith.addf %87, %88 : vector<2x8x8xf32>
    %cst_50 = arith.constant dense<0xFF800000> : vector<2x8xf32>
    %90 = vector.multi_reduction <maximumf>, %89, %cst_50 [2] : vector<2x8x8xf32> to vector<2x8xf32>
    %91 = vector.shape_cast %90 : vector<2x8xf32> to vector<2x8x1xf32>
    %92 = vector.broadcast %91 : vector<2x8x1xf32> to vector<2x8x8xf32>
    %93 = arith.subf %89, %92 : vector<2x8x8xf32>
    %94 = math.exp %93 : vector<2x8x8xf32>
    %cst_51 = arith.constant dense<0.000000e+00> : vector<2x8xf32>
    %95 = vector.multi_reduction <add>, %94, %cst_51 [2] : vector<2x8x8xf32> to vector<2x8xf32>
    %96 = vector.shape_cast %95 : vector<2x8xf32> to vector<2x8x1xf32>
    %97 = tpu.reciprocal %96 {approx = true} : vector<2x8x1xf32> -> vector<2x8x1xf32>
    %98 = vector.broadcast %97 : vector<2x8x1xf32> to vector<2x8x8xf32>
    %99 = arith.mulf %94, %98 : vector<2x8x8xf32>
    %100 = arith.truncf %99 : vector<2x8x8xf32> to vector<2x8x8xbf16>
    "tpu.trace_start"() <{level = 10 : i32, message = "bqk,bke->bqe"}> : () -> ()
    %cst_52 = arith.constant dense<0.000000e+00> : vector<2x8x32xf32>
    %101 = tpu.matmul %100, %86, %cst_52 {dimension_numbers = #tpu.dot_dimension_numbers<[2], [1], [1], [2], [0, 0, 0, 1, 1, 2], [0], [0]>} : vector<2x8x8xbf16>, vector<2x8x32xbf16>, vector<2x8x32xf32> -> vector<2x8x32xf32>
    "tpu.trace_stop"() : () -> ()
    %102 = vector.extract_strided_slice %34 {offsets = [0, 0, 96], sizes = [2, 8, 32], strides = [1, 1, 1]} : vector<2x8x128xf32> to vector<2x8x32xf32>
    %103 = arith.truncf %102 : vector<2x8x32xf32> to vector<2x8x32xbf16>
    %104 = vector.extract_strided_slice %36 {offsets = [0, 0, 96], sizes = [2, 8, 32], strides = [1, 1, 1]} : vector<2x8x128xf32> to vector<2x8x32xf32>
    %105 = arith.truncf %104 : vector<2x8x32xf32> to vector<2x8x32xbf16>
    %106 = vector.extract_strided_slice %38 {offsets = [0, 0, 96], sizes = [2, 8, 32], strides = [1, 1, 1]} : vector<2x8x128xf32> to vector<2x8x32xf32>
    %107 = arith.truncf %106 : vector<2x8x32xf32> to vector<2x8x32xbf16>
    "tpu.trace_start"() <{level = 10 : i32, message = "bqe,bke->bqk"}> : () -> ()
    %cst_53 = arith.constant dense<0.000000e+00> : vector<2x8x8xf32>
    %108 = tpu.matmul %103, %105, %cst_53 {dimension_numbers = #tpu.dot_dimension_numbers<[2], [2], [1], [1], [0, 0, 0, 1, 1, 1], [0], [0]>} : vector<2x8x32xbf16>, vector<2x8x32xbf16>, vector<2x8x8xf32> -> vector<2x8x8xf32>
    "tpu.trace_stop"() : () -> ()
    %109 = vector.broadcast %4 : vector<2x1x8xf32> to vector<2x8x8xf32>
    %110 = arith.addf %108, %109 : vector<2x8x8xf32>
    %cst_54 = arith.constant dense<0xFF800000> : vector<2x8xf32>
    %111 = vector.multi_reduction <maximumf>, %110, %cst_54 [2] : vector<2x8x8xf32> to vector<2x8xf32>
    %112 = vector.shape_cast %111 : vector<2x8xf32> to vector<2x8x1xf32>
    %113 = vector.broadcast %112 : vector<2x8x1xf32> to vector<2x8x8xf32>
    %114 = arith.subf %110, %113 : vector<2x8x8xf32>
    %115 = math.exp %114 : vector<2x8x8xf32>
    %cst_55 = arith.constant dense<0.000000e+00> : vector<2x8xf32>
    %116 = vector.multi_reduction <add>, %115, %cst_55 [2] : vector<2x8x8xf32> to vector<2x8xf32>
    %117 = vector.shape_cast %116 : vector<2x8xf32> to vector<2x8x1xf32>
    %118 = tpu.reciprocal %117 {approx = true} : vector<2x8x1xf32> -> vector<2x8x1xf32>
    %119 = vector.broadcast %118 : vector<2x8x1xf32> to vector<2x8x8xf32>
    %120 = arith.mulf %115, %119 : vector<2x8x8xf32>
    %121 = arith.truncf %120 : vector<2x8x8xf32> to vector<2x8x8xbf16>
    "tpu.trace_start"() <{level = 10 : i32, message = "bqk,bke->bqe"}> : () -> ()
    %cst_56 = arith.constant dense<0.000000e+00> : vector<2x8x32xf32>
    %122 = tpu.matmul %121, %107, %cst_56 {dimension_numbers = #tpu.dot_dimension_numbers<[2], [1], [1], [2], [0, 0, 0, 1, 1, 2], [0], [0]>} : vector<2x8x8xbf16>, vector<2x8x32xbf16>, vector<2x8x32xf32> -> vector<2x8x32xf32>
    "tpu.trace_stop"() : () -> ()
    %123 = tpu.concatenate %59, %80, %101, %122 in 2 : vector<2x8x32xf32>, vector<2x8x32xf32>, vector<2x8x32xf32>, vector<2x8x32xf32> -> vector<2x8x128xf32>
    %124 = vector.shape_cast %123 : vector<2x8x128xf32> to vector<16x128xf32>
    %125 = arith.truncf %124 : vector<16x128xf32> to vector<16x128xbf16>
    %cst_57 = arith.constant dense<0.000000e+00> : vector<16x128xf32>
    %126 = tpu.matmul %125, %10, %cst_57 {dimension_numbers = #tpu.dot_dimension_numbers<[1], [0], [0], [1], [0, 0, 1, 1], [], []>} : vector<16x128xbf16>, vector<128x128xbf16>, vector<16x128xf32> -> vector<16x128xf32>
    %127 = vector.broadcast %12 : vector<1x128xf32> to vector<16x128xf32>
    %128 = arith.addf %126, %127 : vector<16x128xf32>
    %129 = arith.addf %3, %128 : vector<16x128xf32>
    %cst_58 = arith.constant dense<0.000000e+00> : vector<16xf32>
    %130 = vector.multi_reduction <add>, %129, %cst_58 [1] : vector<16x128xf32> to vector<16xf32>
    %131 = vector.shape_cast %130 : vector<16xf32> to vector<16x1xf32>
    %cst_59 = arith.constant 1.280000e+02 : f32
    %132 = vector.broadcast %cst_59 : f32 to vector<16x1xf32>
    %133 = arith.divf %131, %132 : vector<16x1xf32>
    %134 = vector.broadcast %133 : vector<16x1xf32> to vector<16x128xf32>
    %135 = arith.subf %129, %134 : vector<16x128xf32>
    %136 = arith.mulf %135, %135 : vector<16x128xf32>
    %cst_60 = arith.constant dense<0.000000e+00> : vector<16xf32>
    %137 = vector.multi_reduction <add>, %136, %cst_60 [1] : vector<16x128xf32> to vector<16xf32>
    %138 = vector.shape_cast %137 : vector<16xf32> to vector<16x1xf32>
    %cst_61 = arith.constant 1.280000e+02 : f32
    %139 = vector.broadcast %cst_61 : f32 to vector<16x1xf32>
    %140 = arith.divf %138, %139 : vector<16x1xf32>
    %141 = vector.broadcast %133 : vector<16x1xf32> to vector<16x128xf32>
    %142 = arith.subf %129, %141 : vector<16x128xf32>
    %cst_62 = arith.constant 9.99999974E-6 : f32
    %143 = vector.broadcast %cst_62 : f32 to vector<16x1xf32>
    %144 = arith.addf %140, %143 : vector<16x1xf32>
    %145 = math.rsqrt %144 : vector<16x1xf32>
    %146 = vector.broadcast %145 : vector<16x1xf32> to vector<16x128xf32>
    %147 = arith.mulf %142, %146 : vector<16x128xf32>
    %148 = vector.broadcast %14 : vector<1x128xf32> to vector<16x128xf32>
    %149 = arith.mulf %147, %148 : vector<16x128xf32>
    %150 = vector.broadcast %16 : vector<1x128xf32> to vector<16x128xf32>
    %151 = arith.addf %149, %150 : vector<16x128xf32>
    %152 = arith.truncf %151 : vector<16x128xf32> to vector<16x128xbf16>
    %cst_63 = arith.constant dense<0.000000e+00> : vector<16x256xf32>
    %153 = tpu.matmul %152, %18, %cst_63 {dimension_numbers = #tpu.dot_dimension_numbers<[1], [0], [0], [1], [0, 0, 1, 1], [], []>} : vector<16x128xbf16>, vector<128x256xbf16>, vector<16x256xf32> -> vector<16x256xf32>
    %154 = vector.broadcast %20 : vector<1x256xf32> to vector<16x256xf32>
    %155 = arith.addf %153, %154 : vector<16x256xf32>
    %cst_64 = arith.constant 0.000000e+00 : f32
    %156 = vector.broadcast %cst_64 : f32 to vector<16x256xf32>
    %157 = arith.maximumf %155, %156 : vector<16x256xf32>
    %158 = arith.truncf %157 : vector<16x256xf32> to vector<16x256xbf16>
    %cst_65 = arith.constant dense<0.000000e+00> : vector<16x128xf32>
    %159 = tpu.matmul %158, %22, %cst_65 {dimension_numbers = #tpu.dot_dimension_numbers<[1], [0], [0], [1], [0, 0, 1, 1], [], []>} : vector<16x256xbf16>, vector<256x128xbf16>, vector<16x128xf32> -> vector<16x128xf32>
    %160 = vector.broadcast %24 : vector<1x128xf32> to vector<16x128xf32>
    %161 = arith.addf %159, %160 : vector<16x128xf32>
    %162 = arith.addf %151, %161 : vector<16x128xf32>
    %cst_66 = arith.constant dense<0.000000e+00> : vector<16xf32>
    %163 = vector.multi_reduction <add>, %162, %cst_66 [1] : vector<16x128xf32> to vector<16xf32>
    %164 = vector.shape_cast %163 : vector<16xf32> to vector<16x1xf32>
    %cst_67 = arith.constant 1.280000e+02 : f32
    %165 = vector.broadcast %cst_67 : f32 to vector<16x1xf32>
    %166 = arith.divf %164, %165 : vector<16x1xf32>
    %167 = vector.broadcast %166 : vector<16x1xf32> to vector<16x128xf32>
    %168 = arith.subf %162, %167 : vector<16x128xf32>
    %169 = arith.mulf %168, %168 : vector<16x128xf32>
    %cst_68 = arith.constant dense<0.000000e+00> : vector<16xf32>
    %170 = vector.multi_reduction <add>, %169, %cst_68 [1] : vector<16x128xf32> to vector<16xf32>
    %171 = vector.shape_cast %170 : vector<16xf32> to vector<16x1xf32>
    %cst_69 = arith.constant 1.280000e+02 : f32
    %172 = vector.broadcast %cst_69 : f32 to vector<16x1xf32>
    %173 = arith.divf %171, %172 : vector<16x1xf32>
    %174 = vector.broadcast %166 : vector<16x1xf32> to vector<16x128xf32>
    %175 = arith.subf %162, %174 : vector<16x128xf32>
    %cst_70 = arith.constant 9.99999974E-6 : f32
    %176 = vector.broadcast %cst_70 : f32 to vector<16x1xf32>
    %177 = arith.addf %173, %176 : vector<16x1xf32>
    %178 = math.rsqrt %177 : vector<16x1xf32>
    %179 = vector.broadcast %178 : vector<16x1xf32> to vector<16x128xf32>
    %180 = arith.mulf %175, %179 : vector<16x128xf32>
    %181 = vector.broadcast %26 : vector<1x128xf32> to vector<16x128xf32>
    %182 = arith.mulf %180, %181 : vector<16x128xf32>
    %183 = vector.broadcast %28 : vector<1x128xf32> to vector<16x128xf32>
    %184 = arith.addf %182, %183 : vector<16x128xf32>
    %c0_71 = arith.constant 0 : index
    %c0_72 = arith.constant 0 : index
    %185 = vector.load %arg20[%c0_71, %c0_72] : memref<16x128xf32, #tpu.memory_space<vmem>>, vector<16x128xf32>
    tpu.vector_store %arg20[%c0_71, %c0_72], %184 {strides = array<i32>} : memref<16x128xf32, #tpu.memory_space<vmem>>, vector<16x128xf32>,
    %c1_i32 = arith.constant 1 : i32
    %186 = arith.cmpi eq, %arg1, %c1_i32 : i32
    %187 = arith.extui %186 : i1 to i32
    %c0_i32_73 = arith.constant 0 : i32
    %188 = arith.cmpi ne, %187, %c0_i32_73 : i32
    scf.if %188 {
      %c0_74 = arith.constant 0 : index
      %c0_75 = arith.constant 0 : index
      %c0_76 = arith.constant 0 : index
      %189 = vector.load %arg3[%c0_74, %c0_75, %c0_76] : memref<2x1x8xf32, #tpu.memory_space<vmem>>, vector<2x1x8xf32>
      %190 = vector.shape_cast %184 : vector<16x128xf32> to vector<2x8x128xf32>
      "tpu.trace_start"() <{level = 10 : i32, message = "bis,bsd->bid"}> : () -> ()
      %cst_77 = arith.constant dense<0.000000e+00> : vector<2x1x128xf32>
      %191 = tpu.matmul %189, %190, %cst_77 {dimension_numbers = #tpu.dot_dimension_numbers<[2], [1], [1], [2], [0, 0, 0, 1, 1, 2], [0], [0]>} : vector<2x1x8xf32>, vector<2x8x128xf32>, vector<2x1x128xf32> -> vector<2x1x128xf32>
      "tpu.trace_stop"() : () -> ()
      %cst_78 = arith.constant dense<0.000000e+00> : vector<2x1xf32>
      %192 = vector.multi_reduction <add>, %189, %cst_78 [2] : vector<2x1x8xf32> to vector<2x1xf32>
      %193 = vector.shape_cast %192 : vector<2x1xf32> to vector<2x1x1xf32>
      %cst_79 = arith.constant 9.99999971E-10 : f32
      %194 = vector.broadcast %cst_79 : f32 to vector<2x1x1xf32>
      %195 = arith.maximumf %193, %194 : vector<2x1x1xf32>
      %196 = vector.broadcast %195 : vector<2x1x1xf32> to vector<2x1x128xf32>
      %197 = arith.divf %191, %196 : vector<2x1x128xf32>
      %c0_80 = arith.constant 0 : index
      %c0_81 = arith.constant 0 : index
      %c0_82 = arith.constant 0 : index
      %198 = vector.load %arg19[%c0_80, %c0_81, %c0_82] : memref<2x1x128xf32, #tpu.memory_space<vmem>>, vector<2x1x128xf32>
      tpu.vector_store %arg19[%c0_80, %c0_81, %c0_82], %197 {strides = array<i32>} : memref<2x1x128xf32, #tpu.memory_space<vmem>>, vector<2x1x128xf32>,
    } else {
    }
    return
  }
  func.func @transform_0(%arg0: i32, %arg1: i32) -> (i32, i32, i32) {
    %c0_i32 = arith.constant 0 : i32
    %c0_i32_0 = arith.constant 0 : i32
    %c0_i32_1 = arith.constant 0 : i32
    return %arg0, %c0_i32, %c0_i32_0 : i32, i32, i32
  }
  func.func @transform_1(%arg0: i32, %arg1: i32) -> (i32, i32, i32) {
    %c0_i32 = arith.constant 0 : i32
    %c0_i32_0 = arith.constant 0 : i32
    %c0_i32_1 = arith.constant 0 : i32
    return %arg0, %c0_i32, %c0_i32_0 : i32, i32, i32
  }
  func.func @transform_2(%arg0: i32, %arg1: i32) -> (i32, i32, i32) {
    %c0_i32 = arith.constant 0 : i32
    %c0_i32_0 = arith.constant 0 : i32
    %c0_i32_1 = arith.constant 0 : i32
    return %arg0, %c0_i32, %c0_i32_0 : i32, i32, i32
  }
  func.func @transform_3(%arg0: i32, %arg1: i32) -> (i32, i32) {
    %c0_i32 = arith.constant 0 : i32
    %c0_i32_0 = arith.constant 0 : i32
    %c0_i32_1 = arith.constant 0 : i32
    return %c0_i32, %c0_i32_0 : i32, i32
  }
  func.func @transform_4(%arg0: i32, %arg1: i32) -> (i32, i32) {
    %c0_i32 = arith.constant 0 : i32
    %c0_i32_0 = arith.constant 0 : i32
    %c0_i32_1 = arith.constant 0 : i32
    return %c0_i32, %c0_i32_0 : i32, i32
  }
  func.func @transform_5(%arg0: i32, %arg1: i32) -> (i32, i32, i32) {
    %c0_i32 = arith.constant 0 : i32
    %c0_i32_0 = arith.constant 0 : i32
    %c0_i32_1 = arith.constant 0 : i32
    return %arg1, %c0_i32, %c0_i32_0 : i32, i32, i32
  }
  func.func @transform_6(%arg0: i32, %arg1: i32) -> (i32, i32, i32) {
    %c0_i32 = arith.constant 0 : i32
    %c0_i32_0 = arith.constant 0 : i32
    %c0_i32_1 = arith.constant 0 : i32
    return %arg1, %c0_i32, %c0_i32_0 : i32, i32, i32
  }
  func.func @transform_7(%arg0: i32, %arg1: i32) -> (i32, i32, i32) {
    %c0_i32 = arith.constant 0 : i32
    %c0_i32_0 = arith.constant 0 : i32
    %c0_i32_1 = arith.constant 0 : i32
    return %arg1, %c0_i32, %c0_i32_0 : i32, i32, i32
  }
  func.func @transform_8(%arg0: i32, %arg1: i32) -> (i32, i32, i32) {
    %c0_i32 = arith.constant 0 : i32
    %c0_i32_0 = arith.constant 0 : i32
    %c0_i32_1 = arith.constant 0 : i32
    return %arg1, %c0_i32, %c0_i32_0 : i32, i32, i32
  }
  func.func @transform_9(%arg0: i32, %arg1: i32) -> (i32, i32, i32) {
    %c0_i32 = arith.constant 0 : i32
    %c0_i32_0 = arith.constant 0 : i32
    %c0_i32_1 = arith.constant 0 : i32
    return %arg1, %c0_i32, %c0_i32_0 : i32, i32, i32
  }
  func.func @transform_10(%arg0: i32, %arg1: i32) -> (i32, i32, i32) {
    %c0_i32 = arith.constant 0 : i32
    %c0_i32_0 = arith.constant 0 : i32
    %c0_i32_1 = arith.constant 0 : i32
    return %arg1, %c0_i32, %c0_i32_0 : i32, i32, i32
  }
  func.func @transform_11(%arg0: i32, %arg1: i32) -> (i32, i32, i32) {
    %c0_i32 = arith.constant 0 : i32
    %c0_i32_0 = arith.constant 0 : i32
    %c0_i32_1 = arith.constant 0 : i32
    return %arg1, %c0_i32, %c0_i32_0 : i32, i32, i32
  }
  func.func @transform_12(%arg0: i32, %arg1: i32) -> (i32, i32, i32) {
    %c0_i32 = arith.constant 0 : i32
    %c0_i32_0 = arith.constant 0 : i32
    %c0_i32_1 = arith.constant 0 : i32
    return %arg1, %c0_i32, %c0_i32_0 : i32, i32, i32
  }
  func.func @transform_13(%arg0: i32, %arg1: i32) -> (i32, i32, i32) {
    %c0_i32 = arith.constant 0 : i32
    %c0_i32_0 = arith.constant 0 : i32
    %c0_i32_1 = arith.constant 0 : i32
    return %arg1, %c0_i32, %c0_i32_0 : i32, i32, i32
  }
  func.func @transform_14(%arg0: i32, %arg1: i32) -> (i32, i32, i32) {
    %c0_i32 = arith.constant 0 : i32
    %c0_i32_0 = arith.constant 0 : i32
    %c0_i32_1 = arith.constant 0 : i32
    return %arg1, %c0_i32, %c0_i32_0 : i32, i32, i32
  }
  func.func @transform_15(%arg0: i32, %arg1: i32) -> (i32, i32, i32) {
    %c0_i32 = arith.constant 0 : i32
    %c0_i32_0 = arith.constant 0 : i32
    %c0_i32_1 = arith.constant 0 : i32
    return %arg1, %c0_i32, %c0_i32_0 : i32, i32, i32
  }
  func.func @transform_16(%arg0: i32, %arg1: i32) -> (i32, i32, i32) {
    %c0_i32 = arith.constant 0 : i32
    %c0_i32_0 = arith.constant 0 : i32
    %c0_i32_1 = arith.constant 0 : i32
    return %arg1, %c0_i32, %c0_i32_0 : i32, i32, i32
  }
  func.func @transform_17(%arg0: i32, %arg1: i32) -> (i32, i32, i32) {
    %c0_i32 = arith.constant 0 : i32
    %c0_i32_0 = arith.constant 0 : i32
    %c0_i32_1 = arith.constant 0 : i32
    return %arg0, %c0_i32, %c0_i32_0 : i32, i32, i32
  }
}

</mosaic_0001>

<llo_original>
// kernel: tpu_custom_call.1
$region0: #{tpu_custom_call.1}
  #allocation0 [shape = 'u32[]', space=smem, size = 0x4, offset = 0x4, fixed_abs, tag = 'smem constant byte address 0x4 - core index']
  #allocation1 [shape = 'u32[144,128]{1,0:T(1,128)}', space=vmem, size = 0x12000, scoped, tag = 'internal scratch']
  #allocation2 [shape = 'f32[16,128]{1,0:T(8,128)}', space=vmem, size = 0x2000, scoped, tag = 'scratch operand']
  %s0 = inlined_call_operand.hbm [shape: f32[2,8,128], index: 0, kind: input, shape index: {}]
  %s1 = inlined_call_operand.hbm [shape: f32[2,1,8], index: 1, kind: input, shape index: {}]
  %s2 = inlined_call_operand.hbm [shape: f32[2,1,8], index: 2, kind: input, shape index: {}]
  %s3 = inlined_call_operand.hbm [shape: f32[1,128], index: 3, kind: input, shape index: {}]
  %s4 = inlined_call_operand.hbm [shape: f32[1,128], index: 4, kind: input, shape index: {}]
  %s5 = inlined_call_operand.hbm [shape: bf16[2,128,384], index: 5, kind: input, shape index: {}]
  %s6 = inlined_call_operand.vmem [shape: f32[2,1,384], index: 6, kind: input, shape index: {}]
  %s7 = inlined_call_operand.hbm [shape: bf16[2,128,128], index: 7, kind: input, shape index: {}]
  %s8 = inlined_call_operand.vmem [shape: f32[2,1,128], index: 8, kind: input, shape index: {}]
  %s9 = inlined_call_operand.vmem [shape: f32[2,1,128], index: 9, kind: input, shape index: {}]
  %s10 = inlined_call_operand.vmem [shape: f32[2,1,128], index: 10, kind: input, shape index: {}]
  %s11 = inlined_call_operand.hbm [shape: bf16[2,128,256], index: 11, kind: input, shape index: {}]
  %s12 = inlined_call_operand.vmem [shape: f32[2,1,256], index: 12, kind: input, shape index: {}]
  %s13 = inlined_call_operand.hbm [shape: bf16[2,256,128], index: 13, kind: input, shape index: {}]
  %s14 = inlined_call_operand.vmem [shape: f32[2,1,128], index: 14, kind: input, shape index: {}]
  %s15 = inlined_call_operand.vmem [shape: f32[2,1,128], index: 15, kind: input, shape index: {}]
  %s16 = inlined_call_operand.vmem [shape: f32[2,1,128], index: 16, kind: input, shape index: {}]
  %s17 = inlined_call_operand.hbm [shape: f32[2,1,128], index: 17, kind: output, shape index: {}]
  %s18 = sld [smem:[#allocation0]]
  $region145: #{tpu_custom_call.1} parent=0
    _
  %s20 = ssub.s32 1, %s18
  %s21 = scalar_select 0, %s20, %s18
  $region1: #{tpu_custom_call.1} parent=0
    #allocation3 [shape = 'u8[8192]{0}', space=vmem, size = 0x2000, scoped, tag = 'input window, operand 0, single buffered']
    #allocation4 [shape = 's32[2]{0}', space=sflag, size = 0x8, scoped, tag = 'scoped memory for tpu_custom_call.1']
    #allocation5 [shape = 's32[2]{0}', space=sflag, size = 0x8, scoped, tag = 'scoped memory for tpu_custom_call.1']
    #allocation6 [shape = 'u8[1024]{0}', space=vmem, size = 0x400, scoped, tag = 'input window, operand 1, single buffered']
    #allocation7 [shape = 's32[1]{0}', space=sflag, size = 0x4, scoped, tag = 'scoped memory for tpu_custom_call.1']
    #allocation8 [shape = 'u8[1024]{0}', space=vmem, size = 0x400, scoped, tag = 'input window, operand 2, single buffered']
    #allocation9 [shape = 'u8[512]{0}', space=vmem, size = 0x400, scoped, tag = 'input window, operand 3, single buffered']
    #allocation10 [shape = 's32[1]{0}', space=sflag, size = 0x4, scoped, tag = 'scoped memory for tpu_custom_call.1']
    #allocation11 [shape = 'u8[512]{0}', space=vmem, size = 0x400, scoped, tag = 'input window, operand 4, single buffered']
    #allocation12 [shape = 'u8[196608]{0}', space=vmem, size = 0x30000, scoped, tag = 'input window, operand 5']
    #allocation13 [shape = 's32[2]{0}', space=sflag, size = 0x8, scoped, tag = 'scoped memory for tpu_custom_call.1']
    #allocation14 [shape = 'u8[65536]{0}', space=vmem, size = 0x10000, scoped, tag = 'input window, operand 7']
    #allocation15 [shape = 'u8[131072]{0}', space=vmem, size = 0x20000, scoped, tag = 'input window, operand 11']
    #allocation16 [shape = 's32[2]{0}', space=sflag, size = 0x8, scoped, tag = 'scoped memory for tpu_custom_call.1']
    #allocation17 [shape = 'u8[131072]{0}', space=vmem, size = 0x20000, scoped, tag = 'input window, operand 13']
    #allocation18 [shape = 'u8[1024]{0}', space=vmem, size = 0x400, scoped, tag = 'output window, operand 0, single buffered']
    %22 = vsyncpa [#allocation4], 0
    %23 = vsyncpa [#allocation7], 0
    %24 = vsyncpa [#allocation10], 0
    %25 = vsyncpa [#allocation13], 0
    %s26 = scalar_lea.sflag [#allocation13], 1
    %27 = vsyncpa %s26, 0
    %28 = vsyncpa [#allocation16], 0
    %s29 = scalar_lea.sflag [#allocation16], 1
    %30 = vsyncpa %s29, 0
    %31 = vsyncpa [#allocation5], 0
    loop: start=0, step=1, limit=4
    $region2: #{tpu_custom_call.1} parent=1 // loop_pre_header
      _
    $region3: #{tpu_custom_call.1} parent=1 // loop_header
      %s33 = sphi 0, %s37
      %p34 = scmp.ge.s32.totalorder %s33, 4
      %s40 = sphi 0, %s52
      %s41 = sphi 0, %s48
      %s42 = sphi 0, %s40
      %s43 = sphi 0, %s41
      %s44 = sphi 0, %s42
      %s45 = sphi 0, %s43
      %s55 = sphi 0, %s57
      %s58 = sphi 0, %s55
      %s59 = sphi 0, %s58
      %s75 = sphi 0, %s59
      %s81 = sphi 0, %s83
      %s84 = sphi 0, %s81
      %s85 = sphi 0, %s84
      %s101 = sphi 0, %s85
      %s107 = sphi 0, %s109
      %s110 = sphi 0, %s107
      %s111 = sphi 0, %s110
      %s127 = sphi 0, %s111
      %s131 = sphi 0, %s131
      %s133 = sphi 0, %s131
      %s134 = sphi 0, %s133
      %s148 = sphi 0, %s134
      %s152 = sphi 0, %s152
      %s154 = sphi 0, %s152
      %s155 = sphi 0, %s154
      %s169 = sphi 0, %s155
      %s175 = sphi 0, %s177
      %s178 = sphi 0, %s175
      %s179 = sphi 0, %s178
      %s195 = sphi 0, %s179
      %s201 = sphi 0, %s203
      %s204 = sphi 0, %s201
      %s205 = sphi 0, %s204
      %s221 = sphi 0, %s205
      %s227 = sphi 0, %s229
      %s230 = sphi 0, %s227
      %s231 = sphi 0, %s230
      %s247 = sphi 0, %s231
      %s253 = sphi 0, %s255
      %s256 = sphi 0, %s253
      %s257 = sphi 0, %s256
      %s273 = sphi 0, %s257
      %s279 = sphi 0, %s281
      %s282 = sphi 0, %s279
      %s283 = sphi 0, %s282
      %s299 = sphi 0, %s283
      %s305 = sphi 0, %s307
      %s308 = sphi 0, %s305
      %s309 = sphi 0, %s308
      %s325 = sphi 0, %s309
      %s331 = sphi 0, %s333
      %s334 = sphi 0, %s331
      %s335 = sphi 0, %s334
      %s351 = sphi 0, %s335
      %s357 = sphi 0, %s359
      %s360 = sphi 0, %s357
      %s361 = sphi 0, %s360
      %s377 = sphi 0, %s361
      %s383 = sphi 0, %s385
      %s386 = sphi 0, %s383
      %s387 = sphi 0, %s386
      %s403 = sphi 0, %s387
      %s409 = sphi 0, %s411
      %s412 = sphi 0, %s409
      %s413 = sphi 0, %s412
      %s429 = sphi 0, %s413
      %s435 = sphi 0, %s437
      %s438 = sphi 0, %s435
      %s439 = sphi 0, %s438
      %s455 = sphi 0, %s439
      %s461 = sphi 0, %s463
      %s464 = sphi 0, %s461
      %s465 = sphi 0, %s464
      %s481 = sphi 0, %s465
      %s487 = sphi 0, %s489
      %s490 = sphi 0, %s487
      %s491 = sphi 0, %s490
      %s507 = sphi 0, %s491
    $region4: #{tpu_custom_call.1} parent=1 // loop_header_branch
      %36 = sbr.rel (%p34) target = $region8
    $region5: #{tpu_custom_call.1} parent=1 // loop_body
      %s38 = ssub.s32 %s33, 1
      %s39 = ssub.s32 %s33, 2
      %s46 = sadd.s32 1, %s41
      %p47 = scmp.ge.s32.totalorder %s46, 2
      %s48 = scalar_select %p47, 0, %s46
      %s49 = sadd.s32 1, %s40
      %s50 = scalar_select %p47, %s49, %s40
      %p51 = scmp.ge.s32.totalorder %s50, 1
      %s52 = scalar_select %p51, 0, %s50
      %s53 = ssub.s32 %s40, %s52
      %p54 = scmp.eq.s32.totalorder %s53, 0
      %s56 = sadd.s32 %s55, 1
      %s57 = scalar_select %p54, %s55, %s56
      %p60 = pneg %p54
      %p61 = scmp.eq.s32.totalorder %s33, 1
      %p62 = por %p60, %p61
      %p63 = scmp.ne.s32.totalorder %s55, %s58
      %p64 = scmp.eq.s32.totalorder %s33, 0
      %p65 = por %p63, %p64
      %p66 = scmp.ne.s32.totalorder %s55, %s58
      %p67 = scmp.eq.s32.totalorder %s38, 1
      %p68 = por %p66, %p67
      %p69 = scmp.ne.s32.totalorder %s58, %s59
      %p70 = scmp.eq.s32.totalorder %s38, 0
      %p71 = por %p69, %p70
      %p72 = scmp.ne.s32.totalorder %s58, %s59
      %p73 = scmp.eq.s32.totalorder %s39, 1
      %p74 = por %p72, %p73
      %p76 = scmp.ne.s32.totalorder %s59, %s75
      %p77 = scmp.eq.s32.totalorder %s39, 0
      %p78 = por %p76, %p77
      %s79 = ssub.s32 %s40, %s52
      %p80 = scmp.eq.s32.totalorder %s79, 0
      %s82 = sadd.s32 %s81, 1
      %s83 = scalar_select %p80, %s81, %s82
      %p86 = pneg %p80
      %p87 = scmp.eq.s32.totalorder %s33, 1
      %p88 = por %p86, %p87
      %p89 = scmp.ne.s32.totalorder %s81, %s84
      %p90 = scmp.eq.s32.totalorder %s33, 0
      %p91 = por %p89, %p90
      %p92 = scmp.ne.s32.totalorder %s81, %s84
      %p93 = scmp.eq.s32.totalorder %s38, 1
      %p94 = por %p92, %p93
      %p95 = scmp.ne.s32.totalorder %s84, %s85
      %p96 = scmp.eq.s32.totalorder %s38, 0
      %p97 = por %p95, %p96
      %p98 = scmp.ne.s32.totalorder %s84, %s85
      %p99 = scmp.eq.s32.totalorder %s39, 1
      %p100 = por %p98, %p99
      %p102 = scmp.ne.s32.totalorder %s85, %s101
      %p103 = scmp.eq.s32.totalorder %s39, 0
      %p104 = por %p102, %p103
      %s105 = ssub.s32 %s40, %s52
      %p106 = scmp.eq.s32.totalorder %s105, 0
      %s108 = sadd.s32 %s107, 1
      %s109 = scalar_select %p106, %s107, %s108
      %p112 = pneg %p106
      %p113 = scmp.eq.s32.totalorder %s33, 1
      %p114 = por %p112, %p113
      %p115 = scmp.ne.s32.totalorder %s107, %s110
      %p116 = scmp.eq.s32.totalorder %s33, 0
      %p117 = por %p115, %p116
      %p118 = scmp.ne.s32.totalorder %s107, %s110
      %p119 = scmp.eq.s32.totalorder %s38, 1
      %p120 = por %p118, %p119
      %p121 = scmp.ne.s32.totalorder %s110, %s111
      %p122 = scmp.eq.s32.totalorder %s38, 0
      %p123 = por %p121, %p122
      %p124 = scmp.ne.s32.totalorder %s110, %s111
      %p125 = scmp.eq.s32.totalorder %s39, 1
      %p126 = por %p124, %p125
      %p128 = scmp.ne.s32.totalorder %s111, %s127
      %p129 = scmp.eq.s32.totalorder %s39, 0
      %p130 = por %p128, %p129
      %s132 = sadd.s32 %s131, 1
      %p135 = scmp.eq.s32.totalorder %s33, 1
      %p136 = scmp.ne.s32.totalorder %s131, %s133
      %p137 = scmp.eq.s32.totalorder %s33, 0
      %p138 = por %p136, %p137
      %p139 = scmp.ne.s32.totalorder %s131, %s133
      %p140 = scmp.eq.s32.totalorder %s38, 1
      %p141 = por %p139, %p140
      %p142 = scmp.ne.s32.totalorder %s133, %s134
      %p143 = scmp.eq.s32.totalorder %s38, 0
      %p144 = por %p142, %p143
      %p145 = scmp.ne.s32.totalorder %s133, %s134
      %p146 = scmp.eq.s32.totalorder %s39, 1
      %p147 = por %p145, %p146
      %p149 = scmp.ne.s32.totalorder %s134, %s148
      %p150 = scmp.eq.s32.totalorder %s39, 0
      %p151 = por %p149, %p150
      %s153 = sadd.s32 %s152, 1
      %p156 = scmp.eq.s32.totalorder %s33, 1
      %p157 = scmp.ne.s32.totalorder %s152, %s154
      %p158 = scmp.eq.s32.totalorder %s33, 0
      %p159 = por %p157, %p158
      %p160 = scmp.ne.s32.totalorder %s152, %s154
      %p161 = scmp.eq.s32.totalorder %s38, 1
      %p162 = por %p160, %p161
      %p163 = scmp.ne.s32.totalorder %s154, %s155
      %p164 = scmp.eq.s32.totalorder %s38, 0
      %p165 = por %p163, %p164
      %p166 = scmp.ne.s32.totalorder %s154, %s155
      %p167 = scmp.eq.s32.totalorder %s39, 1
      %p168 = por %p166, %p167
      %p170 = scmp.ne.s32.totalorder %s155, %s169
      %p171 = scmp.eq.s32.totalorder %s39, 0
      %p172 = por %p170, %p171
      %s173 = ssub.s32 %s41, %s48
      %p174 = scmp.eq.s32.totalorder %s173, 0
      %s176 = sadd.s32 %s175, 1
      %s177 = scalar_select %p174, %s175, %s176
      %p180 = pneg %p174
      %p181 = scmp.eq.s32.totalorder %s33, 1
      %p182 = por %p180, %p181
      %p183 = scmp.ne.s32.totalorder %s175, %s178
      %p184 = scmp.eq.s32.totalorder %s33, 0
      %p185 = por %p183, %p184
      %p186 = scmp.ne.s32.totalorder %s175, %s178
      %p187 = scmp.eq.s32.totalorder %s38, 1
      %p188 = por %p186, %p187
      %p189 = scmp.ne.s32.totalorder %s178, %s179
      %p190 = scmp.eq.s32.totalorder %s38, 0
      %p191 = por %p189, %p190
      %p192 = scmp.ne.s32.totalorder %s178, %s179
      %p193 = scmp.eq.s32.totalorder %s39, 1
      %p194 = por %p192, %p193
      %p196 = scmp.ne.s32.totalorder %s179, %s195
      %p197 = scmp.eq.s32.totalorder %s39, 0
      %p198 = por %p196, %p197
      %s199 = ssub.s32 %s41, %s48
      %p200 = scmp.eq.s32.totalorder %s199, 0
      %s202 = sadd.s32 %s201, 1
      %s203 = scalar_select %p200, %s201, %s202
      %p206 = pneg %p200
      %p207 = scmp.eq.s32.totalorder %s33, 1
      %p208 = por %p206, %p207
      %p209 = scmp.ne.s32.totalorder %s201, %s204
      %p210 = scmp.eq.s32.totalorder %s33, 0
      %p211 = por %p209, %p210
      %p212 = scmp.ne.s32.totalorder %s201, %s204
      %p213 = scmp.eq.s32.totalorder %s38, 1
      %p214 = por %p212, %p213
      %p215 = scmp.ne.s32.totalorder %s204, %s205
      %p216 = scmp.eq.s32.totalorder %s38, 0
      %p217 = por %p215, %p216
      %p218 = scmp.ne.s32.totalorder %s204, %s205
      %p219 = scmp.eq.s32.totalorder %s39, 1
      %p220 = por %p218, %p219
      %p222 = scmp.ne.s32.totalorder %s205, %s221
      %p223 = scmp.eq.s32.totalorder %s39, 0
      %p224 = por %p222, %p223
      %s225 = ssub.s32 %s41, %s48
      %p226 = scmp.eq.s32.totalorder %s225, 0
      %s228 = sadd.s32 %s227, 1
      %s229 = scalar_select %p226, %s227, %s228
      %p232 = pneg %p226
      %p233 = scmp.eq.s32.totalorder %s33, 1
      %p234 = por %p232, %p233
      %p235 = scmp.ne.s32.totalorder %s227, %s230
      %p236 = scmp.eq.s32.totalorder %s33, 0
      %p237 = por %p235, %p236
      %p238 = scmp.ne.s32.totalorder %s227, %s230
      %p239 = scmp.eq.s32.totalorder %s38, 1
      %p240 = por %p238, %p239
      %p241 = scmp.ne.s32.totalorder %s230, %s231
      %p242 = scmp.eq.s32.totalorder %s38, 0
      %p243 = por %p241, %p242
      %p244 = scmp.ne.s32.totalorder %s230, %s231
      %p245 = scmp.eq.s32.totalorder %s39, 1
      %p246 = por %p244, %p245
      %p248 = scmp.ne.s32.totalorder %s231, %s247
      %p249 = scmp.eq.s32.totalorder %s39, 0
      %p250 = por %p248, %p249
      %s251 = ssub.s32 %s41, %s48
      %p252 = scmp.eq.s32.totalorder %s251, 0
      %s254 = sadd.s32 %s253, 1
      %s255 = scalar_select %p252, %s253, %s254
      %p258 = pneg %p252
      %p259 = scmp.eq.s32.totalorder %s33, 1
      %p260 = por %p258, %p259
      %p261 = scmp.ne.s32.totalorder %s253, %s256
      %p262 = scmp.eq.s32.totalorder %s33, 0
      %p263 = por %p261, %p262
      %p264 = scmp.ne.s32.totalorder %s253, %s256
      %p265 = scmp.eq.s32.totalorder %s38, 1
      %p266 = por %p264, %p265
      %p267 = scmp.ne.s32.totalorder %s256, %s257
      %p268 = scmp.eq.s32.totalorder %s38, 0
      %p269 = por %p267, %p268
      %p270 = scmp.ne.s32.totalorder %s256, %s257
      %p271 = scmp.eq.s32.totalorder %s39, 1
      %p272 = por %p270, %p271
      %p274 = scmp.ne.s32.totalorder %s257, %s273
      %p275 = scmp.eq.s32.totalorder %s39, 0
      %p276 = por %p274, %p275
      %s277 = ssub.s32 %s41, %s48
      %p278 = scmp.eq.s32.totalorder %s277, 0
      %s280 = sadd.s32 %s279, 1
      %s281 = scalar_select %p278, %s279, %s280
      %p284 = pneg %p278
      %p285 = scmp.eq.s32.totalorder %s33, 1
      %p286 = por %p284, %p285
      %p287 = scmp.ne.s32.totalorder %s279, %s282
      %p288 = scmp.eq.s32.totalorder %s33, 0
      %p289 = por %p287, %p288
      %p290 = scmp.ne.s32.totalorder %s279, %s282
      %p291 = scmp.eq.s32.totalorder %s38, 1
      %p292 = por %p290, %p291
      %p293 = scmp.ne.s32.totalorder %s282, %s283
      %p294 = scmp.eq.s32.totalorder %s38, 0
      %p295 = por %p293, %p294
      %p296 = scmp.ne.s32.totalorder %s282, %s283
      %p297 = scmp.eq.s32.totalorder %s39, 1
      %p298 = por %p296, %p297
      %p300 = scmp.ne.s32.totalorder %s283, %s299
      %p301 = scmp.eq.s32.totalorder %s39, 0
      %p302 = por %p300, %p301
      %s303 = ssub.s32 %s41, %s48
      %p304 = scmp.eq.s32.totalorder %s303, 0
      %s306 = sadd.s32 %s305, 1
      %s307 = scalar_select %p304, %s305, %s306
      %p310 = pneg %p304
      %p311 = scmp.eq.s32.totalorder %s33, 1
      %p312 = por %p310, %p311
      %p313 = scmp.ne.s32.totalorder %s305, %s308
      %p314 = scmp.eq.s32.totalorder %s33, 0
      %p315 = por %p313, %p314
      %p316 = scmp.ne.s32.totalorder %s305, %s308
      %p317 = scmp.eq.s32.totalorder %s38, 1
      %p318 = por %p316, %p317
      %p319 = scmp.ne.s32.totalorder %s308, %s309
      %p320 = scmp.eq.s32.totalorder %s38, 0
      %p321 = por %p319, %p320
      %p322 = scmp.ne.s32.totalorder %s308, %s309
      %p323 = scmp.eq.s32.totalorder %s39, 1
      %p324 = por %p322, %p323
      %p326 = scmp.ne.s32.totalorder %s309, %s325
      %p327 = scmp.eq.s32.totalorder %s39, 0
      %p328 = por %p326, %p327
      %s329 = ssub.s32 %s41, %s48
      %p330 = scmp.eq.s32.totalorder %s329, 0
      %s332 = sadd.s32 %s331, 1
      %s333 = scalar_select %p330, %s331, %s332
      %p336 = pneg %p330
      %p337 = scmp.eq.s32.totalorder %s33, 1
      %p338 = por %p336, %p337
      %p339 = scmp.ne.s32.totalorder %s331, %s334
      %p340 = scmp.eq.s32.totalorder %s33, 0
      %p341 = por %p339, %p340
      %p342 = scmp.ne.s32.totalorder %s331, %s334
      %p343 = scmp.eq.s32.totalorder %s38, 1
      %p344 = por %p342, %p343
      %p345 = scmp.ne.s32.totalorder %s334, %s335
      %p346 = scmp.eq.s32.totalorder %s38, 0
      %p347 = por %p345, %p346
      %p348 = scmp.ne.s32.totalorder %s334, %s335
      %p349 = scmp.eq.s32.totalorder %s39, 1
      %p350 = por %p348, %p349
      %p352 = scmp.ne.s32.totalorder %s335, %s351
      %p353 = scmp.eq.s32.totalorder %s39, 0
      %p354 = por %p352, %p353
      %s355 = ssub.s32 %s41, %s48
      %p356 = scmp.eq.s32.totalorder %s355, 0
      %s358 = sadd.s32 %s357, 1
      %s359 = scalar_select %p356, %s357, %s358
      %p362 = pneg %p356
      %p363 = scmp.eq.s32.totalorder %s33, 1
      %p364 = por %p362, %p363
      %p365 = scmp.ne.s32.totalorder %s357, %s360
      %p366 = scmp.eq.s32.totalorder %s33, 0
      %p367 = por %p365, %p366
      %p368 = scmp.ne.s32.totalorder %s357, %s360
      %p369 = scmp.eq.s32.totalorder %s38, 1
      %p370 = por %p368, %p369
      %p371 = scmp.ne.s32.totalorder %s360, %s361
      %p372 = scmp.eq.s32.totalorder %s38, 0
      %p373 = por %p371, %p372
      %p374 = scmp.ne.s32.totalorder %s360, %s361
      %p375 = scmp.eq.s32.totalorder %s39, 1
      %p376 = por %p374, %p375
      %p378 = scmp.ne.s32.totalorder %s361, %s377
      %p379 = scmp.eq.s32.totalorder %s39, 0
      %p380 = por %p378, %p379
      %s381 = ssub.s32 %s41, %s48
      %p382 = scmp.eq.s32.totalorder %s381, 0
      %s384 = sadd.s32 %s383, 1
      %s385 = scalar_select %p382, %s383, %s384
      %p388 = pneg %p382
      %p389 = scmp.eq.s32.totalorder %s33, 1
      %p390 = por %p388, %p389
      %p391 = scmp.ne.s32.totalorder %s383, %s386
      %p392 = scmp.eq.s32.totalorder %s33, 0
      %p393 = por %p391, %p392
      %p394 = scmp.ne.s32.totalorder %s383, %s386
      %p395 = scmp.eq.s32.totalorder %s38, 1
      %p396 = por %p394, %p395
      %p397 = scmp.ne.s32.totalorder %s386, %s387
      %p398 = scmp.eq.s32.totalorder %s38, 0
      %p399 = por %p397, %p398
      %p400 = scmp.ne.s32.totalorder %s386, %s387
      %p401 = scmp.eq.s32.totalorder %s39, 1
      %p402 = por %p400, %p401
      %p404 = scmp.ne.s32.totalorder %s387, %s403
      %p405 = scmp.eq.s32.totalorder %s39, 0
      %p406 = por %p404, %p405
      %s407 = ssub.s32 %s41, %s48
      %p408 = scmp.eq.s32.totalorder %s407, 0
      %s410 = sadd.s32 %s409, 1
      %s411 = scalar_select %p408, %s409, %s410
      %p414 = pneg %p408
      %p415 = scmp.eq.s32.totalorder %s33, 1
      %p416 = por %p414, %p415
      %p417 = scmp.ne.s32.totalorder %s409, %s412
      %p418 = scmp.eq.s32.totalorder %s33, 0
      %p419 = por %p417, %p418
      %p420 = scmp.ne.s32.totalorder %s409, %s412
      %p421 = scmp.eq.s32.totalorder %s38, 1
      %p422 = por %p420, %p421
      %p423 = scmp.ne.s32.totalorder %s412, %s413
      %p424 = scmp.eq.s32.totalorder %s38, 0
      %p425 = por %p423, %p424
      %p426 = scmp.ne.s32.totalorder %s412, %s413
      %p427 = scmp.eq.s32.totalorder %s39, 1
      %p428 = por %p426, %p427
      %p430 = scmp.ne.s32.totalorder %s413, %s429
      %p431 = scmp.eq.s32.totalorder %s39, 0
      %p432 = por %p430, %p431
      %s433 = ssub.s32 %s41, %s48
      %p434 = scmp.eq.s32.totalorder %s433, 0
      %s436 = sadd.s32 %s435, 1
      %s437 = scalar_select %p434, %s435, %s436
      %p440 = pneg %p434
      %p441 = scmp.eq.s32.totalorder %s33, 1
      %p442 = por %p440, %p441
      %p443 = scmp.ne.s32.totalorder %s435, %s438
      %p444 = scmp.eq.s32.totalorder %s33, 0
      %p445 = por %p443, %p444
      %p446 = scmp.ne.s32.totalorder %s435, %s438
      %p447 = scmp.eq.s32.totalorder %s38, 1
      %p448 = por %p446, %p447
      %p449 = scmp.ne.s32.totalorder %s438, %s439
      %p450 = scmp.eq.s32.totalorder %s38, 0
      %p451 = por %p449, %p450
      %p452 = scmp.ne.s32.totalorder %s438, %s439
      %p453 = scmp.eq.s32.totalorder %s39, 1
      %p454 = por %p452, %p453
      %p456 = scmp.ne.s32.totalorder %s439, %s455
      %p457 = scmp.eq.s32.totalorder %s39, 0
      %p458 = por %p456, %p457
      %s459 = ssub.s32 %s41, %s48
      %p460 = scmp.eq.s32.totalorder %s459, 0
      %s462 = sadd.s32 %s461, 1
      %s463 = scalar_select %p460, %s461, %s462
      %p466 = pneg %p460
      %p467 = scmp.eq.s32.totalorder %s33, 1
      %p468 = por %p466, %p467
      %p469 = scmp.ne.s32.totalorder %s461, %s464
      %p470 = scmp.eq.s32.totalorder %s33, 0
      %p471 = por %p469, %p470
      %p472 = scmp.ne.s32.totalorder %s461, %s464
      %p473 = scmp.eq.s32.totalorder %s38, 1
      %p474 = por %p472, %p473
      %p475 = scmp.ne.s32.totalorder %s464, %s465
      %p476 = scmp.eq.s32.totalorder %s38, 0
      %p477 = por %p475, %p476
      %p478 = scmp.ne.s32.totalorder %s464, %s465
      %p479 = scmp.eq.s32.totalorder %s39, 1
      %p480 = por %p478, %p479
      %p482 = scmp.ne.s32.totalorder %s465, %s481
      %p483 = scmp.eq.s32.totalorder %s39, 0
      %p484 = por %p482, %p483
      %s485 = ssub.s32 %s40, %s52
      %p486 = scmp.eq.s32.totalorder %s485, 0
      %s488 = sadd.s32 %s487, 1
      %s489 = scalar_select %p486, %s487, %s488
      %p492 = pneg %p486
      %p493 = scmp.eq.s32.totalorder %s33, 1
      %p494 = por %p492, %p493
      %p495 = scmp.ne.s32.totalorder %s487, %s490
      %p496 = scmp.eq.s32.totalorder %s33, 0
      %p497 = por %p495, %p496
      %p498 = scmp.ne.s32.totalorder %s487, %s490
      %p499 = scmp.eq.s32.totalorder %s38, 1
      %p500 = por %p498, %p499
      %p501 = scmp.ne.s32.totalorder %s490, %s491
      %p502 = scmp.eq.s32.totalorder %s38, 0
      %p503 = por %p501, %p502
      %p504 = scmp.ne.s32.totalorder %s490, %s491
      %p505 = scmp.eq.s32.totalorder %s39, 1
      %p506 = por %p504, %p505
      %p508 = scmp.ne.s32.totalorder %s491, %s507
      %p509 = scmp.eq.s32.totalorder %s39, 0
      %p510 = por %p508, %p509
      %p511 = scmp.le.s32.totalorder 1, %s33
      %p512 = scmp.lt.s32.totalorder %s33, 3
      %p513 = pnand %p511, %p512
      %p514 = pneg %p513
      // Predicated region
      $region9: #{tpu_custom_call.1} parent=5 // pred_check
        _
      $region10: #{tpu_custom_call.1} parent=5 // pred_check_branch
        %516 = sbr.rel (%p513) target = $region12
      $region11: #{tpu_custom_call.1} parent=5 // pred_region
        %s517 = ssub.s32 %s33, 1
        // Predicated region
        $region13: #{tpu_custom_call.1} parent=11 // pred_check
          %p518 = pneg %p71
        $region14: #{tpu_custom_call.1} parent=11 // pred_check_branch
          %520 = sbr.rel (%p518) target = $region16
        $region15: #{tpu_custom_call.1} parent=11 // pred_region
          %s521 = smul.u32 2, %s42
          %s523 = ssub.s32 256, 256
          %524 = vsyncadd [#allocation4], %s523
          %s525 = smul.addr %s521, 128
          %s526 = scalar_lea.hbm %s0, %s525
          %s527 = sshll.u32 [#allocation3], 4
          %s528 = int_to_ptr.vmem [resolvable:$true] %s527
          %533 = dma.hbm_to_vmem [thread:$0]  %s526, 256, %s528, [#allocation4], 128, 128, 8
        $region16: #{tpu_custom_call.1} parent=11 // pred_fallthru
          _
        // Predicated region
        $region17: #{tpu_custom_call.1} parent=11 // pred_check
          %p534 = pneg %p97
        $region18: #{tpu_custom_call.1} parent=11 // pred_check_branch
          %536 = sbr.rel (%p534) target = $region20
        $region19: #{tpu_custom_call.1} parent=11 // pred_region
          %s537 = smul.u32 2, %s42
          %s539 = ssub.s32 32, 32
          %540 = vsyncadd [#allocation7], %s539
          %s541 = smul.addr %s537, 16
          %s542 = scalar_lea.hbm %s1, %s541
          %s543 = sshll.u32 [#allocation6], 4
          %s544 = int_to_ptr.vmem [resolvable:$true] %s543
          %549 = dma.hbm_to_vmem [thread:$0]  %s542, 32, %s544, [#allocation7], 16, 16, 1
        $region20: #{tpu_custom_call.1} parent=11 // pred_fallthru
          _
        // Predicated region
        $region21: #{tpu_custom_call.1} parent=11 // pred_check
          %p550 = pneg %p123
        $region22: #{tpu_custom_call.1} parent=11 // pred_check_branch
          %552 = sbr.rel (%p550) target = $region24
        $region23: #{tpu_custom_call.1} parent=11 // pred_region
          %s553 = smul.u32 2, %s42
          %s555 = ssub.s32 32, 32
          %556 = vsyncadd [#allocation7], %s555
          %s557 = smul.addr %s553, 16
          %s558 = scalar_lea.hbm %s2, %s557
          %s559 = sshll.u32 [#allocation8], 4
          %s560 = int_to_ptr.vmem [resolvable:$true] %s559
          %565 = dma.hbm_to_vmem [thread:$0]  %s558, 32, %s560, [#allocation7], 16, 16, 1
        $region24: #{tpu_custom_call.1} parent=11 // pred_fallthru
          _
        // Predicated region
        $region25: #{tpu_custom_call.1} parent=11 // pred_check
          %p566 = pneg %p144
        $region26: #{tpu_custom_call.1} parent=11 // pred_check_branch
          %568 = sbr.rel (%p566) target = $region28
        $region27: #{tpu_custom_call.1} parent=11 // pred_region
          %s570 = ssub.s32 16, 16
          %571 = vsyncadd [#allocation10], %s570
          %s573 = sshll.u32 [#allocation9], 4
          %s574 = int_to_ptr.vmem [resolvable:$true] %s573
          %576 = dma.hbm_to_vmem [thread:$0]  %s3, 16, %s574, [#allocation10]
        $region28: #{tpu_custom_call.1} parent=11 // pred_fallthru
          _
        // Predicated region
        $region29: #{tpu_custom_call.1} parent=11 // pred_check
          %p577 = pneg %p165
        $region30: #{tpu_custom_call.1} parent=11 // pred_check_branch
          %579 = sbr.rel (%p577) target = $region32
        $region31: #{tpu_custom_call.1} parent=11 // pred_region
          %s581 = ssub.s32 16, 16
          %582 = vsyncadd [#allocation10], %s581
          %s584 = sshll.u32 [#allocation11], 4
          %s585 = int_to_ptr.vmem [resolvable:$true] %s584
          %587 = dma.hbm_to_vmem [thread:$0]  %s4, 16, %s585, [#allocation10]
        $region32: #{tpu_custom_call.1} parent=11 // pred_fallthru
          _
      $region12: #{tpu_custom_call.1} parent=5 // pred_fallthru
        _
      %p588 = scmp.lt.s32.totalorder %s33, 2
      // Predicated region
      $region33: #{tpu_custom_call.1} parent=5 // pred_check
        %p589 = pneg %p588
      $region34: #{tpu_custom_call.1} parent=5 // pred_check_branch
        %591 = sbr.rel (%p589) target = $region36
      $region35: #{tpu_custom_call.1} parent=5 // pred_region
        // Predicated region
        $region37: #{tpu_custom_call.1} parent=35 // pred_check
          %p592 = pneg %p185
        $region38: #{tpu_custom_call.1} parent=35 // pred_check_branch
          %594 = sbr.rel (%p592) target = $region40
        $region39: #{tpu_custom_call.1} parent=35 // pred_region
          %s595 = sand.u32 %s33, 1
          %s596 = scalar_lea.sflag [#allocation13], %s595
          %s597 = sand.u32 %s175, 1
          %s598 = smul.addr %s597, 192
          %s599 = scalar_lea.vmem [#allocation12], %s598
          %s601 = ssub.s32 3072, 3072
          %602 = vsyncadd %s596, %s601
          %s603 = smul.addr %s41, 48
          %s604 = smul.addr %s603, 64
          %s605 = scalar_lea.hbm %s5, %s604
          %s606 = sshll.u32 %s599, 4
          %s607 = int_to_ptr.vmem [resolvable:$true] %s606
          %612 = dma.hbm_to_vmem [thread:$0]  %s605, 3072, %s607, %s596, 192, 192, 12
        $region40: #{tpu_custom_call.1} parent=35 // pred_fallthru
          _
        // Predicated region
        $region41: #{tpu_custom_call.1} parent=35 // pred_check
          %p613 = pneg %p211
        $region42: #{tpu_custom_call.1} parent=35 // pred_check_branch
          %615 = sbr.rel (%p613) target = $region44
        $region43: #{tpu_custom_call.1} parent=35 // pred_region
          %p616 = scmp.lt.s32.totalorder %s41, 1
          %s617 = scalar_select %p616, %s41, 1
          %s618 = smul.addr %s617, 3
          %s619 = scalar_lea.vmem %s6, %s618
        $region44: #{tpu_custom_call.1} parent=35 // pred_fallthru
          _
        // Predicated region
        $region45: #{tpu_custom_call.1} parent=35 // pred_check
          %p620 = pneg %p237
        $region46: #{tpu_custom_call.1} parent=35 // pred_check_branch
          %622 = sbr.rel (%p620) target = $region48
        $region47: #{tpu_custom_call.1} parent=35 // pred_region
          %s623 = sand.u32 %s33, 1
          %s624 = scalar_lea.sflag [#allocation13], %s623
          %s625 = sand.u32 %s227, 1
          %s626 = smul.addr %s625, 64
          %s627 = scalar_lea.vmem [#allocation14], %s626
          %s629 = ssub.s32 1024, 1024
          %630 = vsyncadd %s624, %s629
          %s631 = smul.addr %s41, 16
          %s632 = smul.addr %s631, 64
          %s633 = scalar_lea.hbm %s7, %s632
          %s634 = sshll.u32 %s627, 4
          %s635 = int_to_ptr.vmem [resolvable:$true] %s634
          %640 = dma.hbm_to_vmem [thread:$0]  %s633, 1024, %s635, %s624, 64, 64, 4
        $region48: #{tpu_custom_call.1} parent=35 // pred_fallthru
          _
        // Predicated region
        $region49: #{tpu_custom_call.1} parent=35 // pred_check
          %p641 = pneg %p263
        $region50: #{tpu_custom_call.1} parent=35 // pred_check_branch
          %643 = sbr.rel (%p641) target = $region52
        $region51: #{tpu_custom_call.1} parent=35 // pred_region
          %p644 = scmp.lt.s32.totalorder %s41, 1
          %s645 = scalar_select %p644, %s41, 1
          %s646 = scalar_lea.vmem %s8, %s645
        $region52: #{tpu_custom_call.1} parent=35 // pred_fallthru
          _
        // Predicated region
        $region53: #{tpu_custom_call.1} parent=35 // pred_check
          %p647 = pneg %p289
        $region54: #{tpu_custom_call.1} parent=35 // pred_check_branch
          %649 = sbr.rel (%p647) target = $region56
        $region55: #{tpu_custom_call.1} parent=35 // pred_region
          %p650 = scmp.lt.s32.totalorder %s41, 1
          %s651 = scalar_select %p650, %s41, 1
          %s652 = scalar_lea.vmem %s9, %s651
        $region56: #{tpu_custom_call.1} parent=35 // pred_fallthru
          _
        // Predicated region
        $region57: #{tpu_custom_call.1} parent=35 // pred_check
          %p653 = pneg %p315
        $region58: #{tpu_custom_call.1} parent=35 // pred_check_branch
          %655 = sbr.rel (%p653) target = $region60
        $region59: #{tpu_custom_call.1} parent=35 // pred_region
          %p656 = scmp.lt.s32.totalorder %s41, 1
          %s657 = scalar_select %p656, %s41, 1
          %s658 = scalar_lea.vmem %s10, %s657
        $region60: #{tpu_custom_call.1} parent=35 // pred_fallthru
          _
        // Predicated region
        $region61: #{tpu_custom_call.1} parent=35 // pred_check
          %p659 = pneg %p341
        $region62: #{tpu_custom_call.1} parent=35 // pred_check_branch
          %661 = sbr.rel (%p659) target = $region64
        $region63: #{tpu_custom_call.1} parent=35 // pred_region
          %s662 = sand.u32 %s33, 1
          %s663 = scalar_lea.sflag [#allocation16], %s662
          %s664 = sand.u32 %s331, 1
          %s665 = smul.addr %s664, 128
          %s666 = scalar_lea.vmem [#allocation15], %s665
          %s668 = ssub.s32 2048, 2048
          %669 = vsyncadd %s663, %s668
          %s670 = smul.addr %s41, 32
          %s671 = smul.addr %s670, 64
          %s672 = scalar_lea.hbm %s11, %s671
          %s673 = sshll.u32 %s666, 4
          %s674 = int_to_ptr.vmem [resolvable:$true] %s673
          %679 = dma.hbm_to_vmem [thread:$0]  %s672, 2048, %s674, %s663, 128, 128, 8
        $region64: #{tpu_custom_call.1} parent=35 // pred_fallthru
          _
        // Predicated region
        $region65: #{tpu_custom_call.1} parent=35 // pred_check
          %p680 = pneg %p367
        $region66: #{tpu_custom_call.1} parent=35 // pred_check_branch
          %682 = sbr.rel (%p680) target = $region68
        $region67: #{tpu_custom_call.1} parent=35 // pred_region
          %p683 = scmp.lt.s32.totalorder %s41, 1
          %s684 = scalar_select %p683, %s41, 1
          %s685 = smul.addr %s684, 2
          %s686 = scalar_lea.vmem %s12, %s685
        $region68: #{tpu_custom_call.1} parent=35 // pred_fallthru
          _
        // Predicated region
        $region69: #{tpu_custom_call.1} parent=35 // pred_check
          %p687 = pneg %p393
        $region70: #{tpu_custom_call.1} parent=35 // pred_check_branch
          %689 = sbr.rel (%p687) target = $region72
        $region71: #{tpu_custom_call.1} parent=35 // pred_region
          %s690 = sand.u32 %s33, 1
          %s691 = scalar_lea.sflag [#allocation16], %s690
          %s692 = sand.u32 %s383, 1
          %s693 = smul.addr %s692, 128
          %s694 = scalar_lea.vmem [#allocation17], %s693
          %s696 = ssub.s32 2048, 2048
          %697 = vsyncadd %s691, %s696
          %s698 = smul.addr %s41, 32
          %s699 = smul.addr %s698, 64
          %s700 = scalar_lea.hbm %s13, %s699
          %s701 = sshll.u32 %s694, 4
          %s702 = int_to_ptr.vmem [resolvable:$true] %s701
          %707 = dma.hbm_to_vmem [thread:$0]  %s700, 2048, %s702, %s691, 64, 64, 4
        $region72: #{tpu_custom_call.1} parent=35 // pred_fallthru
          _
        // Predicated region
        $region73: #{tpu_custom_call.1} parent=35 // pred_check
          %p708 = pneg %p419
        $region74: #{tpu_custom_call.1} parent=35 // pred_check_branch
          %710 = sbr.rel (%p708) target = $region76
        $region75: #{tpu_custom_call.1} parent=35 // pred_region
          %p711 = scmp.lt.s32.totalorder %s41, 1
          %s712 = scalar_select %p711, %s41, 1
          %s713 = scalar_lea.vmem %s14, %s712
        $region76: #{tpu_custom_call.1} parent=35 // pred_fallthru
          _
        // Predicated region
        $region77: #{tpu_custom_call.1} parent=35 // pred_check
          %p714 = pneg %p445
        $region78: #{tpu_custom_call.1} parent=35 // pred_check_branch
          %716 = sbr.rel (%p714) target = $region80
        $region79: #{tpu_custom_call.1} parent=35 // pred_region
          %p717 = scmp.lt.s32.totalorder %s41, 1
          %s718 = scalar_select %p717, %s41, 1
          %s719 = scalar_lea.vmem %s15, %s718
        $region80: #{tpu_custom_call.1} parent=35 // pred_fallthru
          _
        // Predicated region
        $region81: #{tpu_custom_call.1} parent=35 // pred_check
          %p720 = pneg %p471
        $region82: #{tpu_custom_call.1} parent=35 // pred_check_branch
          %722 = sbr.rel (%p720) target = $region84
        $region83: #{tpu_custom_call.1} parent=35 // pred_region
          %p723 = scmp.lt.s32.totalorder %s41, 1
          %s724 = scalar_select %p723, %s41, 1
          %s725 = scalar_lea.vmem %s16, %s724
        $region84: #{tpu_custom_call.1} parent=35 // pred_fallthru
          _
      $region36: #{tpu_custom_call.1} parent=5 // pred_fallthru
        _
      %p726 = scmp.le.s32.totalorder 1, %s33
      %p727 = scmp.lt.s32.totalorder %s33, 3
      %p728 = pnand %p726, %p727
      %p729 = pneg %p728
      // Predicated region
      $region85: #{tpu_custom_call.1} parent=5 // pred_check
        _
      $region86: #{tpu_custom_call.1} parent=5 // pred_check_branch
        %731 = sbr.rel (%p728) target = $region88
      $region87: #{tpu_custom_call.1} parent=5 // pred_region
        %s732 = ssub.s32 %s33, 1
        // Predicated region
        $region89: #{tpu_custom_call.1} parent=87 // pred_check
          %p733 = pneg %p71
        $region90: #{tpu_custom_call.1} parent=87 // pred_check_branch
          %735 = sbr.rel (%p733) target = $region92
        $region91: #{tpu_custom_call.1} parent=87 // pred_region
          %736 = dma.done [#allocation4], 256
        $region92: #{tpu_custom_call.1} parent=87 // pred_fallthru
          _
        // Predicated region
        $region93: #{tpu_custom_call.1} parent=87 // pred_check
          %p737 = pneg %p97
        $region94: #{tpu_custom_call.1} parent=87 // pred_check_branch
          %739 = sbr.rel (%p737) target = $region96
        $region95: #{tpu_custom_call.1} parent=87 // pred_region
          %740 = dma.done [#allocation7], 32
        $region96: #{tpu_custom_call.1} parent=87 // pred_fallthru
          _
        // Predicated region
        $region97: #{tpu_custom_call.1} parent=87 // pred_check
          %p741 = pneg %p123
        $region98: #{tpu_custom_call.1} parent=87 // pred_check_branch
          %743 = sbr.rel (%p741) target = $region100
        $region99: #{tpu_custom_call.1} parent=87 // pred_region
          %744 = dma.done [#allocation7], 32
        $region100: #{tpu_custom_call.1} parent=87 // pred_fallthru
          _
        // Predicated region
        $region101: #{tpu_custom_call.1} parent=87 // pred_check
          %p745 = pneg %p144
        $region102: #{tpu_custom_call.1} parent=87 // pred_check_branch
          %747 = sbr.rel (%p745) target = $region104
        $region103: #{tpu_custom_call.1} parent=87 // pred_region
          %748 = dma.done [#allocation10], 16
        $region104: #{tpu_custom_call.1} parent=87 // pred_fallthru
          _
        // Predicated region
        $region105: #{tpu_custom_call.1} parent=87 // pred_check
          %p749 = pneg %p165
        $region106: #{tpu_custom_call.1} parent=87 // pred_check_branch
          %751 = sbr.rel (%p749) target = $region108
        $region107: #{tpu_custom_call.1} parent=87 // pred_region
          %752 = dma.done [#allocation10], 16
        $region108: #{tpu_custom_call.1} parent=87 // pred_fallthru
          _
        %s753 = sand.u32 %s38, 1
        %s754 = scalar_lea.sflag [#allocation13], %s753
        %s755 = sand.u32 %s178, 1
        %s756 = smul.addr %s755, 192
        %s757 = scalar_lea.vmem [#allocation12], %s756
        // Predicated region
        $region109: #{tpu_custom_call.1} parent=87 // pred_check
          %p758 = pneg %p191
        $region110: #{tpu_custom_call.1} parent=87 // pred_check_branch
          %760 = sbr.rel (%p758) target = $region112
        $region111: #{tpu_custom_call.1} parent=87 // pred_region
          %761 = dma.done %s754, 3072
        $region112: #{tpu_custom_call.1} parent=87 // pred_fallthru
          _
        %s762 = sand.u32 %s38, 1
        %s763 = scalar_lea.sflag [#allocation13], %s762
        %s764 = sand.u32 %s230, 1
        %s765 = smul.addr %s764, 64
        %s766 = scalar_lea.vmem [#allocation14], %s765
        // Predicated region
        $region113: #{tpu_custom_call.1} parent=87 // pred_check
          %p767 = pneg %p243
        $region114: #{tpu_custom_call.1} parent=87 // pred_check_branch
          %769 = sbr.rel (%p767) target = $region116
        $region115: #{tpu_custom_call.1} parent=87 // pred_region
          %770 = dma.done %s763, 1024
        $region116: #{tpu_custom_call.1} parent=87 // pred_fallthru
          _
        %s771 = sand.u32 %s38, 1
        %s772 = scalar_lea.sflag [#allocation16], %s771
        %s773 = sand.u32 %s334, 1
        %s774 = smul.addr %s773, 128
        %s775 = scalar_lea.vmem [#allocation15], %s774
        // Predicated region
        $region117: #{tpu_custom_call.1} parent=87 // pred_check
          %p776 = pneg %p347
        $region118: #{tpu_custom_call.1} parent=87 // pred_check_branch
          %778 = sbr.rel (%p776) target = $region120
        $region119: #{tpu_custom_call.1} parent=87 // pred_region
          %779 = dma.done %s772, 2048
        $region120: #{tpu_custom_call.1} parent=87 // pred_fallthru
          _
        %s780 = sand.u32 %s38, 1
        %s781 = scalar_lea.sflag [#allocation16], %s780
        %s782 = sand.u32 %s386, 1
        %s783 = smul.addr %s782, 128
        %s784 = scalar_lea.vmem [#allocation17], %s783
        // Predicated region
        $region121: #{tpu_custom_call.1} parent=87 // pred_check
          %p785 = pneg %p399
        $region122: #{tpu_custom_call.1} parent=87 // pred_check_branch
          %787 = sbr.rel (%p785) target = $region124
        $region123: #{tpu_custom_call.1} parent=87 // pred_region
          %788 = dma.done %s781, 2048
        $region124: #{tpu_custom_call.1} parent=87 // pred_fallthru
          _
        %p789 = pneg %p71
        %p790 = pneg %p68
        %p791 = pneg %p97
        %p792 = pneg %p94
        %p793 = pneg %p123
        %p794 = pneg %p120
        %p795 = pneg %p144
        %p796 = pneg %p141
        %p797 = pneg %p165
        %p798 = pneg %p162
        %s799 = sand.u32 %s38, 1
        %s800 = scalar_lea.sflag [#allocation13], %s799
        %s801 = sand.u32 %s178, 1
        %s802 = smul.addr %s801, 192
        %s803 = scalar_lea.vmem [#allocation12], %s802
        %p804 = pneg %p191
        %p805 = pneg %p188
        %p806 = scmp.lt.s32.totalorder %s43, 1
        %s807 = scalar_select %p806, %s43, 1
        %s808 = smul.addr %s807, 3
        %s809 = scalar_lea.vmem %s6, %s808
        %p810 = pneg %p217
        %p811 = pneg %p214
        %s812 = sand.u32 %s38, 1
        %s813 = scalar_lea.sflag [#allocation13], %s812
        %s814 = sand.u32 %s230, 1
        %s815 = smul.addr %s814, 64
        %s816 = scalar_lea.vmem [#allocation14], %s815
        %p817 = pneg %p243
        %p818 = pneg %p240
        %p819 = scmp.lt.s32.totalorder %s43, 1
        %s820 = scalar_select %p819, %s43, 1
        %s821 = scalar_lea.vmem %s8, %s820
        %p822 = pneg %p269
        %p823 = pneg %p266
        %p824 = scmp.lt.s32.totalorder %s43, 1
        %s825 = scalar_select %p824, %s43, 1
        %s826 = scalar_lea.vmem %s9, %s825
        %p827 = pneg %p295
        %p828 = pneg %p292
        %p829 = scmp.lt.s32.totalorder %s43, 1
        %s830 = scalar_select %p829, %s43, 1
        %s831 = scalar_lea.vmem %s10, %s830
        %p832 = pneg %p321
        %p833 = pneg %p318
        %s834 = sand.u32 %s38, 1
        %s835 = scalar_lea.sflag [#allocation16], %s834
        %s836 = sand.u32 %s334, 1
        %s837 = smul.addr %s836, 128
        %s838 = scalar_lea.vmem [#allocation15], %s837
        %p839 = pneg %p347
        %p840 = pneg %p344
        %p841 = scmp.lt.s32.totalorder %s43, 1
        %s842 = scalar_select %p841, %s43, 1
        %s843 = smul.addr %s842, 2
        %s844 = scalar_lea.vmem %s12, %s843
        %p845 = pneg %p373
        %p846 = pneg %p370
        %s847 = sand.u32 %s38, 1
        %s848 = scalar_lea.sflag [#allocation16], %s847
        %s849 = sand.u32 %s386, 1
        %s850 = smul.addr %s849, 128
        %s851 = scalar_lea.vmem [#allocation17], %s850
        %p852 = pneg %p399
        %p853 = pneg %p396
        %p854 = scmp.lt.s32.totalorder %s43, 1
        %s855 = scalar_select %p854, %s43, 1
        %s856 = scalar_lea.vmem %s14, %s855
        %p857 = pneg %p425
        %p858 = pneg %p422
        %p859 = scmp.lt.s32.totalorder %s43, 1
        %s860 = scalar_select %p859, %s43, 1
        %s861 = scalar_lea.vmem %s15, %s860
        %p862 = pneg %p451
        %p863 = pneg %p448
        %p864 = scmp.lt.s32.totalorder %s43, 1
        %s865 = scalar_select %p864, %s43, 1
        %s866 = scalar_lea.vmem %s16, %s865
        %p867 = pneg %p477
        %p868 = pneg %p474
        %p869 = pneg %p503
        %p870 = pneg %p500
        %s871 = smul.u32 2, %s42
        %s872 = smul.u32 2, %s42
        %s873 = smul.u32 2, %s42
        %p874 = scmp.lt.s32.totalorder %s43, 1
        %s875 = scalar_select %p874, %s43, 1
        %s876 = smul.addr %s875, 3
        %s877 = scalar_lea.vmem %s6, %s876
        %p878 = scmp.lt.s32.totalorder %s43, 1
        %s879 = scalar_select %p878, %s43, 1
        %s880 = scalar_lea.vmem %s8, %s879
        %p881 = scmp.lt.s32.totalorder %s43, 1
        %s882 = scalar_select %p881, %s43, 1
        %s883 = scalar_lea.vmem %s9, %s882
        %p884 = scmp.lt.s32.totalorder %s43, 1
        %s885 = scalar_select %p884, %s43, 1
        %s886 = scalar_lea.vmem %s10, %s885
        %p887 = scmp.lt.s32.totalorder %s43, 1
        %s888 = scalar_select %p887, %s43, 1
        %s889 = smul.addr %s888, 2
        %s890 = scalar_lea.vmem %s12, %s889
        %p891 = scmp.lt.s32.totalorder %s43, 1
        %s892 = scalar_select %p891, %s43, 1
        %s893 = scalar_lea.vmem %s14, %s892
        %p894 = scmp.lt.s32.totalorder %s43, 1
        %s895 = scalar_select %p894, %s43, 1
        %s896 = scalar_lea.vmem %s15, %s895
        %p897 = scmp.lt.s32.totalorder %s43, 1
        %s898 = scalar_select %p897, %s43, 1
        %s899 = scalar_lea.vmem %s16, %s898
        %s900 = smul.u32 2, %s42
        %p902 = scmp.eq.s32.totalorder %s43, 0
        // Predicated region
        $region125: #{tpu_custom_call.1} parent=87 // pred_check
          %p903 = pneg %p902
        $region126: #{tpu_custom_call.1} parent=87 // pred_check_branch
          %905 = sbr.rel (%p903) target = $region128
        $region127: #{tpu_custom_call.1} parent=87 // pred_region
          %v906 = vld [vmem:[#allocation3] sm:$0xff]
          %v907 = vld [vmem:[#allocation3 + $0x8] sm:$0xff]
          %v908 = vld [vmem:[#allocation9] sm:$0x1]
          %v909 = vld [vmem:[#allocation11] sm:$0x1]
          %910 = vadd.xlane.f32.xlu0 %v906
          %v911 = vpop.xlane.xlu0 %910
          %912 = vadd.xlane.f32.xlu0 %v907
          %v913 = vpop.xlane.xlu0 %912
          %v914 = vrcp.pop 128.0
          %v915 = vmul.f32 %v911, %v914
          %v916 = vmul.f32 %v913, %v914
          %v917 = vsub.f32 %v906, %v915
          %v918 = vsub.f32 %v907, %v916
          %v919 = vmul.f32 %v917, %v917
          %v920 = vmul.f32 %v918, %v918
          %921 = vadd.xlane.f32.xlu0 %v919
          %v922 = vpop.xlane.xlu0 %921
          %923 = vadd.xlane.f32.xlu0 %v920
          %v924 = vpop.xlane.xlu0 %923
          %v925 = vmul.f32 %v922, %v914
          %v926 = vmul.f32 %v924, %v914
          %v927 = vadd.f32 %v925, 1e-05
          %v928 = vadd.f32 %v926, 1e-05
          %v929 = vrsqrt.pop %v927
          %v930 = vrsqrt.pop %v928
          %v931 = vmul.f32 %v917, %v929
          %v932 = vmul.f32 %v918, %v930
          %v934 = vlaneseq
          %v935 = vshrl.u32 %v934, 7
          %v936 = vsub.s32 0, %v935
          %v937 = vrot.slane %v908, %v936
          %v939 = vmul.f32 %v931, %v937
          %v940 = vmul.f32 %v932, %v937
          %v942 = vlaneseq
          %v943 = vshrl.u32 %v942, 7
          %v944 = vsub.s32 0, %v943
          %v945 = vrot.slane %v909, %v944
          %v947 = vadd.f32 %v939, %v945
          %v948 = vadd.f32 %v940, %v945
          %949 = vst [vmem:[#allocation2] sm:$0xff] %v947
          %950 = vst [vmem:[#allocation2 + $0x8] sm:$0xff] %v948
        $region128: #{tpu_custom_call.1} parent=87 // pred_fallthru
          _
        %v951 = vld [vmem:[#allocation2] sm:$0xff]
        %v952 = vld [vmem:[#allocation2 + $0x8] sm:$0xff]
        %v953 = vld [vmem:[#allocation8] sm:$0x1]
        %v954 = vld [vmem:[#allocation8 + $0x1] sm:$0x1]
        %v955 = vld [vmem:[%s757] sm:$0xff]
        %v956 = vld [vmem:[%s757 + $0x8] sm:$0xf]
        %v957 = vld [vmem:[%s757 + $0xc] sm:$0xff]
        %v958 = vld [vmem:[%s757 + $0x14] sm:$0xf]
        %v959 = vld [vmem:[%s757 + $0x18] sm:$0xff]
        %v960 = vld [vmem:[%s757 + $0x20] sm:$0xf]
        %v961 = vld [vmem:[%s757 + $0x24] sm:$0xff]
        %v962 = vld [vmem:[%s757 + $0x2c] sm:$0xf]
        %v963 = vld [vmem:[%s757 + $0x30] sm:$0xff]
        %v964 = vld [vmem:[%s757 + $0x38] sm:$0xf]
        %v965 = vld [vmem:[%s757 + $0x3c] sm:$0xff]
        %v966 = vld [vmem:[%s757 + $0x44] sm:$0xf]
        %v967 = vld [vmem:[%s757 + $0x48] sm:$0xff]
        %v968 = vld [vmem:[%s757 + $0x50] sm:$0xf]
        %v969 = vld [vmem:[%s757 + $0x54] sm:$0xff]
        %v970 = vld [vmem:[%s757 + $0x5c] sm:$0xf]
        %v971 = vld [vmem:[%s757 + $0x60] sm:$0xff]
        %v972 = vld [vmem:[%s757 + $0x68] sm:$0xf]
        %v973 = vld [vmem:[%s757 + $0x6c] sm:$0xff]
        %v974 = vld [vmem:[%s757 + $0x74] sm:$0xf]
        %v975 = vld [vmem:[%s757 + $0x78] sm:$0xff]
        %v976 = vld [vmem:[%s757 + $0x80] sm:$0xf]
        %v977 = vld [vmem:[%s757 + $0x84] sm:$0xff]
        %v978 = vld [vmem:[%s757 + $0x8c] sm:$0xf]
        %v979 = vld [vmem:[%s757 + $0x90] sm:$0xff]
        %v980 = vld [vmem:[%s757 + $0x98] sm:$0xf]
        %v981 = vld [vmem:[%s757 + $0x9c] sm:$0xff]
        %v982 = vld [vmem:[%s757 + $0xa4] sm:$0xf]
        %v983 = vld [vmem:[%s757 + $0xa8] sm:$0xff]
        %v984 = vld [vmem:[%s757 + $0xb0] sm:$0xf]
        %v985 = vld [vmem:[%s757 + $0xb4] sm:$0xff]
        %v986 = vld [vmem:[%s757 + $0xbc] sm:$0xf]
        %v987 = vld [vmem:[%s877] sm:$0x7]
        %v988 = vld [vmem:[%s766] sm:$0xf]
        %v989 = vld [vmem:[%s766 + $0x4] sm:$0xf]
        %v990 = vld [vmem:[%s766 + $0x8] sm:$0xf]
        %v991 = vld [vmem:[%s766 + $0xc] sm:$0xf]
        %v992 = vld [vmem:[%s766 + $0x10] sm:$0xf]
        %v993 = vld [vmem:[%s766 + $0x14] sm:$0xf]
        %v994 = vld [vmem:[%s766 + $0x18] sm:$0xf]
        %v995 = vld [vmem:[%s766 + $0x1c] sm:$0xf]
        %v996 = vld [vmem:[%s766 + $0x20] sm:$0xf]
        %v997 = vld [vmem:[%s766 + $0x24] sm:$0xf]
        %v998 = vld [vmem:[%s766 + $0x28] sm:$0xf]
        %v999 = vld [vmem:[%s766 + $0x2c] sm:$0xf]
        %v1000 = vld [vmem:[%s766 + $0x30] sm:$0xf]
        %v1001 = vld [vmem:[%s766 + $0x34] sm:$0xf]
        %v1002 = vld [vmem:[%s766 + $0x38] sm:$0xf]
        %v1003 = vld [vmem:[%s766 + $0x3c] sm:$0xf]
        %v1004 = vld [vmem:[%s880] sm:$0x1]
        %v1005 = vld [vmem:[%s883] sm:$0x1]
        %v1006 = vld [vmem:[%s886] sm:$0x1]
        %v1007 = vld [vmem:[%s775] sm:$0xff]
        %v1008 = vld [vmem:[%s775 + $0x8] sm:$0xff]
        %v1009 = vld [vmem:[%s775 + $0x10] sm:$0xff]
        %v1010 = vld [vmem:[%s775 + $0x18] sm:$0xff]
        %v1011 = vld [vmem:[%s775 + $0x20] sm:$0xff]
        %v1012 = vld [vmem:[%s775 + $0x28] sm:$0xff]
        %v1013 = vld [vmem:[%s775 + $0x30] sm:$0xff]
        %v1014 = vld [vmem:[%s775 + $0x38] sm:$0xff]
        %v1015 = vld [vmem:[%s775 + $0x40] sm:$0xff]
        %v1016 = vld [vmem:[%s775 + $0x48] sm:$0xff]
        %v1017 = vld [vmem:[%s775 + $0x50] sm:$0xff]
        %v1018 = vld [vmem:[%s775 + $0x58] sm:$0xff]
        %v1019 = vld [vmem:[%s775 + $0x60] sm:$0xff]
        %v1020 = vld [vmem:[%s775 + $0x68] sm:$0xff]
        %v1021 = vld [vmem:[%s775 + $0x70] sm:$0xff]
        %v1022 = vld [vmem:[%s775 + $0x78] sm:$0xff]
        %v1023 = vld [vmem:[%s890] sm:$0x3]
        %v1024 = vld [vmem:[%s784] sm:$0xf]
        %v1025 = vld [vmem:[%s784 + $0x4] sm:$0xf]
        %v1026 = vld [vmem:[%s784 + $0x8] sm:$0xf]
        %v1027 = vld [vmem:[%s784 + $0xc] sm:$0xf]
        %v1028 = vld [vmem:[%s784 + $0x10] sm:$0xf]
        %v1029 = vld [vmem:[%s784 + $0x14] sm:$0xf]
        %v1030 = vld [vmem:[%s784 + $0x18] sm:$0xf]
        %v1031 = vld [vmem:[%s784 + $0x1c] sm:$0xf]
        %v1032 = vld [vmem:[%s784 + $0x20] sm:$0xf]
        %v1033 = vld [vmem:[%s784 + $0x24] sm:$0xf]
        %v1034 = vld [vmem:[%s784 + $0x28] sm:$0xf]
        %v1035 = vld [vmem:[%s784 + $0x2c] sm:$0xf]
        %v1036 = vld [vmem:[%s784 + $0x30] sm:$0xf]
        %v1037 = vld [vmem:[%s784 + $0x34] sm:$0xf]
        %v1038 = vld [vmem:[%s784 + $0x38] sm:$0xf]
        %v1039 = vld [vmem:[%s784 + $0x3c] sm:$0xf]
        %v1040 = vld [vmem:[%s784 + $0x40] sm:$0xf]
        %v1041 = vld [vmem:[%s784 + $0x44] sm:$0xf]
        %v1042 = vld [vmem:[%s784 + $0x48] sm:$0xf]
        %v1043 = vld [vmem:[%s784 + $0x4c] sm:$0xf]
        %v1044 = vld [vmem:[%s784 + $0x50] sm:$0xf]
        %v1045 = vld [vmem:[%s784 + $0x54] sm:$0xf]
        %v1046 = vld [vmem:[%s784 + $0x58] sm:$0xf]
        %v1047 = vld [vmem:[%s784 + $0x5c] sm:$0xf]
        %v1048 = vld [vmem:[%s784 + $0x60] sm:$0xf]
        %v1049 = vld [vmem:[%s784 + $0x64] sm:$0xf]
        %v1050 = vld [vmem:[%s784 + $0x68] sm:$0xf]
        %v1051 = vld [vmem:[%s784 + $0x6c] sm:$0xf]
        %v1052 = vld [vmem:[%s784 + $0x70] sm:$0xf]
        %v1053 = vld [vmem:[%s784 + $0x74] sm:$0xf]
        %v1054 = vld [vmem:[%s784 + $0x78] sm:$0xf]
        %v1055 = vld [vmem:[%s784 + $0x7c] sm:$0xf]
        %v1056 = vld [vmem:[%s893] sm:$0x1]
        %v1057 = vld [vmem:[%s896] sm:$0x1]
        %v1058 = vld [vmem:[%s899] sm:$0x1]
        %v1059 = vpack.c.bf16 %v952, %v951
        %v1061 = vlaneseq
        %v1062 = vshrl.u32 %v1061, 7
        %v1063 = vsub.s32 0, %v1062
        %v1064 = vrot.slane %v987, %v1063
        %v1065 = vlaneseq
        %v1066 = vshrl.u32 %v1065, 7
        %v1067 = vsub.s32 1, %v1066
        %v1068 = vrot.slane %v987, %v1067
        %v1069 = vlaneseq
        %v1070 = vshrl.u32 %v1069, 7
        %v1071 = vsub.s32 2, %v1070
        %v1072 = vrot.slane %v987, %v1071
        %v1108 = vunpack.c.l.b16 %v955
        %v1109 = vunpack.c.h.b16 %v955
        %v1110 = vunpack.c.l.b16 %v956
        %v1111 = vunpack.c.l.b16 %v957
        %v1112 = vunpack.c.h.b16 %v957
        %v1113 = vunpack.c.l.b16 %v958
        %v1114 = vunpack.c.l.b16 %v959
        %v1115 = vunpack.c.h.b16 %v959
        %v1116 = vunpack.c.l.b16 %v960
        %v1117 = vunpack.c.l.b16 %v961
        %v1118 = vunpack.c.h.b16 %v961
        %v1119 = vunpack.c.l.b16 %v962
        %v1120 = vunpack.c.l.b16 %v963
        %v1121 = vunpack.c.h.b16 %v963
        %v1122 = vunpack.c.l.b16 %v964
        %v1123 = vunpack.c.l.b16 %v965
        %v1124 = vunpack.c.h.b16 %v965
        %v1125 = vunpack.c.l.b16 %v966
        %v1126 = vunpack.c.l.b16 %v967
        %v1127 = vunpack.c.h.b16 %v967
        %v1128 = vunpack.c.l.b16 %v968
        %v1129 = vunpack.c.l.b16 %v969
        %v1130 = vunpack.c.h.b16 %v969
        %v1131 = vunpack.c.l.b16 %v970
        %v1132 = vunpack.c.l.b16 %v971
        %v1133 = vunpack.c.h.b16 %v971
        %v1134 = vunpack.c.l.b16 %v972
        %v1135 = vunpack.c.l.b16 %v973
        %v1136 = vunpack.c.h.b16 %v973
        %v1137 = vunpack.c.l.b16 %v974
        %v1138 = vunpack.c.l.b16 %v975
        %v1139 = vunpack.c.h.b16 %v975
        %v1140 = vunpack.c.l.b16 %v976
        %v1141 = vunpack.c.l.b16 %v977
        %v1142 = vunpack.c.h.b16 %v977
        %v1143 = vunpack.c.l.b16 %v978
        %v1144 = vunpack.c.l.b16 %v979
        %v1145 = vunpack.c.h.b16 %v979
        %v1146 = vunpack.c.l.b16 %v980
        %v1147 = vunpack.c.l.b16 %v981
        %v1148 = vunpack.c.h.b16 %v981
        %v1149 = vunpack.c.l.b16 %v982
        %v1150 = vunpack.c.l.b16 %v983
        %v1151 = vunpack.c.h.b16 %v983
        %v1152 = vunpack.c.l.b16 %v984
        %v1153 = vunpack.c.l.b16 %v985
        %v1154 = vunpack.c.h.b16 %v985
        %v1155 = vunpack.c.l.b16 %v986
        %v1156 = vpack.c.b16 %v1111, %v1108
        %v1157 = vpack.c.b16 %v1112, %v1109
        %v1158 = vpack.c.b16 %v1113, %v1110
        %v1159 = vpack.c.b16 %v1117, %v1114
        %v1160 = vpack.c.b16 %v1118, %v1115
        %v1161 = vpack.c.b16 %v1119, %v1116
        %v1162 = vpack.c.b16 %v1123, %v1120
        %v1163 = vpack.c.b16 %v1124, %v1121
        %v1164 = vpack.c.b16 %v1125, %v1122
        %v1165 = vpack.c.b16 %v1129, %v1126
        %v1166 = vpack.c.b16 %v1130, %v1127
        %v1167 = vpack.c.b16 %v1131, %v1128
        %v1168 = vpack.c.b16 %v1135, %v1132
        %v1169 = vpack.c.b16 %v1136, %v1133
        %v1170 = vpack.c.b16 %v1137, %v1134
        %v1171 = vpack.c.b16 %v1141, %v1138
        %v1172 = vpack.c.b16 %v1142, %v1139
        %v1173 = vpack.c.b16 %v1143, %v1140
        %v1174 = vpack.c.b16 %v1147, %v1144
        %v1175 = vpack.c.b16 %v1148, %v1145
        %v1176 = vpack.c.b16 %v1149, %v1146
        %v1177 = vpack.c.b16 %v1153, %v1150
        %v1178 = vpack.c.b16 %v1154, %v1151
        %v1179 = vpack.c.b16 %v1155, %v1152
        %1204 = vmatprep.subr.bf16.mxu0 %v1157
        %1205 = vmatpush1.bf16.msra.mxu0 %v1156
        %1206 = vmatprep.subr.bf16.mxu0 %v1160
        %1207 = vmatpush1.bf16.msra.mxu0 %v1159
        %1208 = vmatprep.subr.bf16.mxu0 %v1163
        %1209 = vmatpush1.bf16.msra.mxu0 %v1162
        %1210 = vmatprep.subr.bf16.mxu0 %v1166
        %1211 = vmatpush1.bf16.msra.mxu0 %v1165
        %1212 = vmatprep.subr.bf16.mxu0 %v1169
        %1213 = vmatpush1.bf16.msra.mxu0 %v1168
        %1214 = vmatprep.subr.bf16.mxu0 %v1172
        %1215 = vmatpush1.bf16.msra.mxu0 %v1171
        %1216 = vmatprep.subr.bf16.mxu0 %v1175
        %1217 = vmatpush1.bf16.msra.mxu0 %v1174
        %1218 = vmatprep.subr.bf16.mxu0 %v1178
        %1219 = vmatpush1.bf16.msra.mxu0 %v1177
        %1220 = vmatprep.subr.bf16.mxu0 0
        %1221 = vmatpush1.bf16.msra.mxu0 0
        %1222 = vmatprep.subr.bf16.mxu0 0
        %1223 = vmatpush1.bf16.msra.mxu0 0
        %1224 = vmatprep.subr.bf16.mxu0 0
        %1225 = vmatpush1.bf16.msra.mxu0 0
        %1226 = vmatprep.subr.bf16.mxu0 0
        %1227 = vmatpush1.bf16.msra.mxu0 0
        %1228 = vmatprep.subr.bf16.mxu0 0
        %1229 = vmatpush1.bf16.msra.mxu0 0
        %1230 = vmatprep.subr.bf16.mxu0 0
        %1231 = vmatpush1.bf16.msra.mxu0 0
        %1232 = vmatprep.subr.bf16.mxu0 0
        %1233 = vmatpush1.bf16.msra.mxu0 0
        %1234 = vmatprep.subr.bf16.mxu0 0
        %1235 = vmatpush1.bf16.msra.mxu0 0
        %1236 = vmatprep.mubr.bf16.mxu0 0
        %1237 = vmatmul.mubr.bf16.gmra.mrb[0].mxu0 %v1059
        %v1238 = vpop.f32.mrb[0].mxu0
        %v1239 = vadd.f32 %v1064, %v1238
        %v1240 = vpop.f32.mrb[0].mxu0
        %v1241 = vadd.f32 %v1068, %v1240
        %v1242 = vpop.f32.mrb[0].mxu0
        %v1243 = vadd.f32 %v1064, %v1242
        %v1244 = vpop.f32.mrb[0].mxu0
        %v1245 = vadd.f32 %v1068, %v1244
        %1246 = vdwg.mxu0
        %1247 = vmatprep.subr.bf16.mxu0 0
        %1248 = vmatpush1.bf16.msra.mxu0 %v1158
        %1249 = vmatprep.subr.bf16.mxu0 0
        %1250 = vmatpush1.bf16.msra.mxu0 %v1161
        %1251 = vmatprep.subr.bf16.mxu0 0
        %1252 = vmatpush1.bf16.msra.mxu0 %v1164
        %1253 = vmatprep.subr.bf16.mxu0 0
        %1254 = vmatpush1.bf16.msra.mxu0 %v1167
        %1255 = vmatprep.subr.bf16.mxu0 0
        %1256 = vmatpush1.bf16.msra.mxu0 %v1170
        %1257 = vmatprep.subr.bf16.mxu0 0
        %1258 = vmatpush1.bf16.msra.mxu0 %v1173
        %1259 = vmatprep.subr.bf16.mxu0 0
        %1260 = vmatpush1.bf16.msra.mxu0 %v1176
        %1261 = vmatprep.subr.bf16.mxu0 0
        %1262 = vmatpush1.bf16.msra.mxu0 %v1179
        %1263 = vmatprep.subr.bf16.mxu0 0
        %1264 = vmatpush1.bf16.msra.mxu0 0
        %1265 = vmatprep.subr.bf16.mxu0 0
        %1266 = vmatpush1.bf16.msra.mxu0 0
        %1267 = vmatprep.subr.bf16.mxu0 0
        %1268 = vmatpush1.bf16.msra.mxu0 0
        %1269 = vmatprep.subr.bf16.mxu0 0
        %1270 = vmatpush1.bf16.msra.mxu0 0
        %1271 = vmatprep.subr.bf16.mxu0 0
        %1272 = vmatpush1.bf16.msra.mxu0 0
        %1273 = vmatprep.subr.bf16.mxu0 0
        %1274 = vmatpush1.bf16.msra.mxu0 0
        %1275 = vmatprep.subr.bf16.mxu0 0
        %1276 = vmatpush1.bf16.msra.mxu0 0
        %1277 = vmatprep.subr.bf16.mxu0 0
        %1278 = vmatpush1.bf16.msra.mxu0 0
        %1279 = vmatprep.mubr.bf16.mxu0 0
        %1280 = vmatmul.mubr.bf16.gmra.mrb[0].mxu0 %v1059
        %v1281 = vpop.f32.mrb[0].mxu0
        %v1282 = vadd.f32 %v1072, %v1281
        %v1283 = vpop.f32.mrb[0].mxu0
        %v1284 = vpop.f32.mrb[0].mxu0
        %v1285 = vadd.f32 %v1072, %v1284
        %v1286 = vpop.f32.mrb[0].mxu0
        %1287 = vdwg.mxu0
        %v1288 = vpack.c.bf16 %v1239, %v1239
        %v1289 = vpack.c.bf16 %v1243, %v1243
        %v1290 = vpack.c.bf16 %v1241, %v1241
        %v1291 = vpack.c.bf16 %v1245, %v1245
        %v1292 = vpack.c.bf16 %v1282, %v1282
        %v1293 = vpack.c.bf16 %v1285, %v1285
        %v1296 = vlaneseq
        %v1297 = vshrl.u32 %v1296, 7
        %v1298 = vsub.s32 0, %v1297
        %v1299 = vrot.slane %v953, %v1298
        %v1300 = vlaneseq
        %v1301 = vshrl.u32 %v1300, 7
        %v1302 = vsub.s32 0, %v1301
        %v1303 = vrot.slane %v954, %v1302
        %vm1306 = vcmask 261120
        %v1308 = vsel %vm1306, %v1288, 0
        %v1311 = vsel %vm1306, %v1290, 0
        %1313 = vmatprep.subr.bf16.mxu0 0
        %1314 = vmatpush1.bf16.xpose.msra.mxu0 %v1311
        %1315 = vmatprep.subr.bf16.mxu0 0
        %1316 = vmatpush1.bf16.xpose.msra.mxu0 0
        %1317 = vmatprep.subr.bf16.mxu0 0
        %1318 = vmatpush1.bf16.xpose.msra.mxu0 0
        %1319 = vmatprep.subr.bf16.mxu0 0
        %1320 = vmatpush1.bf16.xpose.msra.mxu0 0
        %1321 = vmatprep.subr.bf16.mxu0 0
        %1322 = vmatpush1.bf16.xpose.msra.mxu0 0
        %1323 = vmatprep.subr.bf16.mxu0 0
        %1324 = vmatpush1.bf16.xpose.msra.mxu0 0
        %1325 = vmatprep.subr.bf16.mxu0 0
        %1326 = vmatpush1.bf16.xpose.msra.mxu0 0
        %1327 = vmatprep.subr.bf16.mxu0 0
        %1328 = vmatpush1.bf16.xpose.msra.mxu0 0
        %1329 = vmatprep.subr.bf16.mxu0 0
        %1330 = vmatpush1.bf16.xpose.msra.mxu0 0
        %1331 = vmatprep.subr.bf16.mxu0 0
        %1332 = vmatpush1.bf16.xpose.msra.mxu0 0
        %1333 = vmatprep.subr.bf16.mxu0 0
        %1334 = vmatpush1.bf16.xpose.msra.mxu0 0
        %1335 = vmatprep.subr.bf16.mxu0 0
        %1336 = vmatpush1.bf16.xpose.msra.mxu0 0
        %1337 = vmatprep.subr.bf16.mxu0 0
        %1338 = vmatpush1.bf16.xpose.msra.mxu0 0
        %1339 = vmatprep.subr.bf16.mxu0 0
        %1340 = vmatpush1.bf16.xpose.msra.mxu0 0
        %1341 = vmatprep.subr.bf16.mxu0 0
        %1342 = vmatpush1.bf16.xpose.msra.mxu0 0
        %1343 = vmatprep.subr.bf16.mxu0 0
        %1344 = vmatpush1.bf16.xpose.msra.mxu0 0
        %1345 = vmatprep.mubr.bf16.mxu0 0
        %1346 = vmatmul.mubr.bf16.gmra.mrb[0].mxu0 %v1308
        %v1347 = vpop.f32.mrb[0].mxu0
        %v1348 = vadd.f32 %v1299, %v1347
        %v1349 = vpop.f32.mrb[0].mxu0
        %v1350 = vpop.f32.mrb[0].mxu0
        %v1351 = vpop.f32.mrb[0].mxu0
        %1352 = vdwg.mxu0
        %v1354 = vsel %vm1306, %v1289, 0
        %v1357 = vsel %vm1306, %v1291, 0
        %1359 = vmatprep.subr.bf16.mxu0 0
        %1360 = vmatpush1.bf16.xpose.msra.mxu0 %v1357
        %1361 = vmatprep.subr.bf16.mxu0 0
        %1362 = vmatpush1.bf16.xpose.msra.mxu0 0
        %1363 = vmatprep.subr.bf16.mxu0 0
        %1364 = vmatpush1.bf16.xpose.msra.mxu0 0
        %1365 = vmatprep.subr.bf16.mxu0 0
        %1366 = vmatpush1.bf16.xpose.msra.mxu0 0
        %1367 = vmatprep.subr.bf16.mxu0 0
        %1368 = vmatpush1.bf16.xpose.msra.mxu0 0
        %1369 = vmatprep.subr.bf16.mxu0 0
        %1370 = vmatpush1.bf16.xpose.msra.mxu0 0
        %1371 = vmatprep.subr.bf16.mxu0 0
        %1372 = vmatpush1.bf16.xpose.msra.mxu0 0
        %1373 = vmatprep.subr.bf16.mxu0 0
        %1374 = vmatpush1.bf16.xpose.msra.mxu0 0
        %1375 = vmatprep.subr.bf16.mxu0 0
        %1376 = vmatpush1.bf16.xpose.msra.mxu0 0
        %1377 = vmatprep.subr.bf16.mxu0 0
        %1378 = vmatpush1.bf16.xpose.msra.mxu0 0
        %1379 = vmatprep.subr.bf16.mxu0 0
        %1380 = vmatpush1.bf16.xpose.msra.mxu0 0
        %1381 = vmatprep.subr.bf16.mxu0 0
        %1382 = vmatpush1.bf16.xpose.msra.mxu0 0
        %1383 = vmatprep.subr.bf16.mxu0 0
        %1384 = vmatpush1.bf16.xpose.msra.mxu0 0
        %1385 = vmatprep.subr.bf16.mxu0 0
        %1386 = vmatpush1.bf16.xpose.msra.mxu0 0
        %1387 = vmatprep.subr.bf16.mxu0 0
        %1388 = vmatpush1.bf16.xpose.msra.mxu0 0
        %1389 = vmatprep.subr.bf16.mxu0 0
        %1390 = vmatpush1.bf16.xpose.msra.mxu0 0
        %1391 = vmatprep.mubr.bf16.mxu0 0
        %1392 = vmatmul.mubr.bf16.gmra.mrb[0].mxu0 %v1354
        %v1393 = vpop.f32.mrb[0].mxu0
        %v1394 = vadd.f32 %v1303, %v1393
        %v1395 = vpop.f32.mrb[0].mxu0
        %v1396 = vpop.f32.mrb[0].mxu0
        %v1397 = vpop.f32.mrb[0].mxu0
        %1398 = vdwg.mxu0
        %vm1399 = vcmask 64512
        %v1400 = vsel %vm1399, %v1348, -inf
        %1401 = vmax.xlane.f32.xlu0 %v1400
        %v1402 = vpop.xlane.xlu0 %1401
        %v1403 = vsel %vm1399, %v1394, -inf
        %1404 = vmax.xlane.f32.xlu0 %v1403
        %v1405 = vpop.xlane.xlu0 %1404
        %v1406 = vsub.f32 %v1348, %v1402
        %v1407 = vsub.f32 %v1394, %v1405
        %v1408 = vmul.f32 %v1406, 1.442695
        %v1409 = vpow.pop %v1408
        %v1410 = vmul.f32 %v1407, 1.442695
        %v1411 = vpow.pop %v1410
        %v1412 = vsel %vm1399, %v1409, 0.0
        %1413 = vadd.xlane.f32.xlu0 %v1412
        %v1414 = vpop.xlane.xlu0 %1413
        %v1415 = vsel %vm1399, %v1411, 0.0
        %1416 = vadd.xlane.f32.xlu0 %v1415
        %v1417 = vpop.xlane.xlu0 %1416
        %v1418 = vrcp.pop %v1414
        %v1419 = vrcp.pop %v1417
        %v1420 = vmul.f32 %v1409, %v1418
        %v1421 = vmul.f32 %v1411, %v1419
        %v1422 = vpack.c.bf16 %v1420, %v1420
        %v1423 = vpack.c.bf16 %v1421, %v1421
        %v1425 = vsel %vm1399, %v1422, 0
        %vm1427 = vcmask 1043456
        %v1429 = vsel %vm1427, %v1292, 0
        %1431 = vmatprep.subr.bf16.mxu0 0
        %1432 = vmatpush1.bf16.msra.mxu0 %v1429
        %1433 = vmatprep.subr.bf16.mxu0 0
        %1434 = vmatpush1.bf16.msra.mxu0 0
        %1435 = vmatprep.subr.bf16.mxu0 0
        %1436 = vmatpush1.bf16.msra.mxu0 0
        %1437 = vmatprep.subr.bf16.mxu0 0
        %1438 = vmatpush1.bf16.msra.mxu0 0
        %1439 = vmatprep.subr.bf16.mxu0 0
        %1440 = vmatpush1.bf16.msra.mxu0 0
        %1441 = vmatprep.subr.bf16.mxu0 0
        %1442 = vmatpush1.bf16.msra.mxu0 0
        %1443 = vmatprep.subr.bf16.mxu0 0
        %1444 = vmatpush1.bf16.msra.mxu0 0
        %1445 = vmatprep.subr.bf16.mxu0 0
        %1446 = vmatpush1.bf16.msra.mxu0 0
        %1447 = vmatprep.subr.bf16.mxu0 0
        %1448 = vmatpush1.bf16.msra.mxu0 0
        %1449 = vmatprep.subr.bf16.mxu0 0
        %1450 = vmatpush1.bf16.msra.mxu0 0
        %1451 = vmatprep.subr.bf16.mxu0 0
        %1452 = vmatpush1.bf16.msra.mxu0 0
        %1453 = vmatprep.subr.bf16.mxu0 0
        %1454 = vmatpush1.bf16.msra.mxu0 0
        %1455 = vmatprep.subr.bf16.mxu0 0
        %1456 = vmatpush1.bf16.msra.mxu0 0
        %1457 = vmatprep.subr.bf16.mxu0 0
        %1458 = vmatpush1.bf16.msra.mxu0 0
        %1459 = vmatprep.subr.bf16.mxu0 0
        %1460 = vmatpush1.bf16.msra.mxu0 0
        %1461 = vmatprep.subr.bf16.mxu0 0
        %1462 = vmatpush1.bf16.msra.mxu0 0
        %1463 = vmatprep.mubr.bf16.mxu0 0
        %1464 = vmatmul.mubr.bf16.gmra.mrb[0].mxu0 %v1425
        %v1465 = vpop.f32.mrb[0].mxu0
        %v1466 = vadd.f32 0.0, %v1465
        %v1467 = vpop.f32.mrb[0].mxu0
        %v1468 = vpop.f32.mrb[0].mxu0
        %v1469 = vpop.f32.mrb[0].mxu0
        %1470 = vdwg.mxu0
        %v1472 = vsel %vm1399, %v1423, 0
        %v1475 = vsel %vm1427, %v1293, 0
        %1477 = vmatprep.subr.bf16.mxu0 0
        %1478 = vmatpush1.bf16.msra.mxu0 %v1475
        %1479 = vmatprep.subr.bf16.mxu0 0
        %1480 = vmatpush1.bf16.msra.mxu0 0
        %1481 = vmatprep.subr.bf16.mxu0 0
        %1482 = vmatpush1.bf16.msra.mxu0 0
        %1483 = vmatprep.subr.bf16.mxu0 0
        %1484 = vmatpush1.bf16.msra.mxu0 0
        %1485 = vmatprep.subr.bf16.mxu0 0
        %1486 = vmatpush1.bf16.msra.mxu0 0
        %1487 = vmatprep.subr.bf16.mxu0 0
        %1488 = vmatpush1.bf16.msra.mxu0 0
        %1489 = vmatprep.subr.bf16.mxu0 0
        %1490 = vmatpush1.bf16.msra.mxu0 0
        %1491 = vmatprep.subr.bf16.mxu0 0
        %1492 = vmatpush1.bf16.msra.mxu0 0
        %1493 = vmatprep.subr.bf16.mxu0 0
        %1494 = vmatpush1.bf16.msra.mxu0 0
        %1495 = vmatprep.subr.bf16.mxu0 0
        %1496 = vmatpush1.bf16.msra.mxu0 0
        %1497 = vmatprep.subr.bf16.mxu0 0
        %1498 = vmatpush1.bf16.msra.mxu0 0
        %1499 = vmatprep.subr.bf16.mxu0 0
        %1500 = vmatpush1.bf16.msra.mxu0 0
        %1501 = vmatprep.subr.bf16.mxu0 0
        %1502 = vmatpush1.bf16.msra.mxu0 0
        %1503 = vmatprep.subr.bf16.mxu0 0
        %1504 = vmatpush1.bf16.msra.mxu0 0
        %1505 = vmatprep.subr.bf16.mxu0 0
        %1506 = vmatpush1.bf16.msra.mxu0 0
        %1507 = vmatprep.subr.bf16.mxu0 0
        %1508 = vmatpush1.bf16.msra.mxu0 0
        %1509 = vmatprep.mubr.bf16.mxu0 0
        %1510 = vmatmul.mubr.bf16.gmra.mrb[0].mxu0 %v1472
        %v1511 = vpop.f32.mrb[0].mxu0
        %v1512 = vadd.f32 0.0, %v1511
        %v1513 = vpop.f32.mrb[0].mxu0
        %v1514 = vpop.f32.mrb[0].mxu0
        %v1515 = vpop.f32.mrb[0].mxu0
        %1516 = vdwg.mxu0
        %1518 = vrot.lane.b32.xlu0 %v1288, 96
        %v1519 = vpop.permute.xlu0 %1518
        %1521 = vrot.lane.b32.xlu0 %v1290, 96
        %v1522 = vpop.permute.xlu0 %1521
        %v1524 = vsel %vm1306, %v1519, 0
        %v1527 = vsel %vm1306, %v1522, 0
        %1529 = vmatprep.subr.bf16.mxu0 0
        %1530 = vmatpush1.bf16.xpose.msra.mxu0 %v1527
        %1531 = vmatprep.subr.bf16.mxu0 0
        %1532 = vmatpush1.bf16.xpose.msra.mxu0 0
        %1533 = vmatprep.subr.bf16.mxu0 0
        %1534 = vmatpush1.bf16.xpose.msra.mxu0 0
        %1535 = vmatprep.subr.bf16.mxu0 0
        %1536 = vmatpush1.bf16.xpose.msra.mxu0 0
        %1537 = vmatprep.subr.bf16.mxu0 0
        %1538 = vmatpush1.bf16.xpose.msra.mxu0 0
        %1539 = vmatprep.subr.bf16.mxu0 0
        %1540 = vmatpush1.bf16.xpose.msra.mxu0 0
        %1541 = vmatprep.subr.bf16.mxu0 0
        %1542 = vmatpush1.bf16.xpose.msra.mxu0 0
        %1543 = vmatprep.subr.bf16.mxu0 0
        %1544 = vmatpush1.bf16.xpose.msra.mxu0 0
        %1545 = vmatprep.subr.bf16.mxu0 0
        %1546 = vmatpush1.bf16.xpose.msra.mxu0 0
        %1547 = vmatprep.subr.bf16.mxu0 0
        %1548 = vmatpush1.bf16.xpose.msra.mxu0 0
        %1549 = vmatprep.subr.bf16.mxu0 0
        %1550 = vmatpush1.bf16.xpose.msra.mxu0 0
        %1551 = vmatprep.subr.bf16.mxu0 0
        %1552 = vmatpush1.bf16.xpose.msra.mxu0 0
        %1553 = vmatprep.subr.bf16.mxu0 0
        %1554 = vmatpush1.bf16.xpose.msra.mxu0 0
        %1555 = vmatprep.subr.bf16.mxu0 0
        %1556 = vmatpush1.bf16.xpose.msra.mxu0 0
        %1557 = vmatprep.subr.bf16.mxu0 0
        %1558 = vmatpush1.bf16.xpose.msra.mxu0 0
        %1559 = vmatprep.subr.bf16.mxu0 0
        %1560 = vmatpush1.bf16.xpose.msra.mxu0 0
        %1561 = vmatprep.mubr.bf16.mxu0 0
        %1562 = vmatmul.mubr.bf16.gmra.mrb[0].mxu0 %v1524
        %v1563 = vpop.f32.mrb[0].mxu0
        %v1564 = vadd.f32 %v1299, %v1563
        %v1565 = vpop.f32.mrb[0].mxu0
        %v1566 = vpop.f32.mrb[0].mxu0
        %v1567 = vpop.f32.mrb[0].mxu0
        %1568 = vdwg.mxu0
        %1570 = vrot.lane.b32.xlu0 %v1289, 96
        %v1571 = vpop.permute.xlu0 %1570
        %1573 = vrot.lane.b32.xlu0 %v1291, 96
        %v1574 = vpop.permute.xlu0 %1573
        %v1576 = vsel %vm1306, %v1571, 0
        %v1579 = vsel %vm1306, %v1574, 0
        %1581 = vmatprep.subr.bf16.mxu0 0
        %1582 = vmatpush1.bf16.xpose.msra.mxu0 %v1579
        %1583 = vmatprep.subr.bf16.mxu0 0
        %1584 = vmatpush1.bf16.xpose.msra.mxu0 0
        %1585 = vmatprep.subr.bf16.mxu0 0
        %1586 = vmatpush1.bf16.xpose.msra.mxu0 0
        %1587 = vmatprep.subr.bf16.mxu0 0
        %1588 = vmatpush1.bf16.xpose.msra.mxu0 0
        %1589 = vmatprep.subr.bf16.mxu0 0
        %1590 = vmatpush1.bf16.xpose.msra.mxu0 0
        %1591 = vmatprep.subr.bf16.mxu0 0
        %1592 = vmatpush1.bf16.xpose.msra.mxu0 0
        %1593 = vmatprep.subr.bf16.mxu0 0
        %1594 = vmatpush1.bf16.xpose.msra.mxu0 0
        %1595 = vmatprep.subr.bf16.mxu0 0
        %1596 = vmatpush1.bf16.xpose.msra.mxu0 0
        %1597 = vmatprep.subr.bf16.mxu0 0
        %1598 = vmatpush1.bf16.xpose.msra.mxu0 0
        %1599 = vmatprep.subr.bf16.mxu0 0
        %1600 = vmatpush1.bf16.xpose.msra.mxu0 0
        %1601 = vmatprep.subr.bf16.mxu0 0
        %1602 = vmatpush1.bf16.xpose.msra.mxu0 0
        %1603 = vmatprep.subr.bf16.mxu0 0
        %1604 = vmatpush1.bf16.xpose.msra.mxu0 0
        %1605 = vmatprep.subr.bf16.mxu0 0
        %1606 = vmatpush1.bf16.xpose.msra.mxu0 0
        %1607 = vmatprep.subr.bf16.mxu0 0
        %1608 = vmatpush1.bf16.xpose.msra.mxu0 0
        %1609 = vmatprep.subr.bf16.mxu0 0
        %1610 = vmatpush1.bf16.xpose.msra.mxu0 0
        %1611 = vmatprep.subr.bf16.mxu0 0
        %1612 = vmatpush1.bf16.xpose.msra.mxu0 0
        %1613 = vmatprep.mubr.bf16.mxu0 0
        %1614 = vmatmul.mubr.bf16.gmra.mrb[0].mxu0 %v1576
        %v1615 = vpop.f32.mrb[0].mxu0
        %v1616 = vadd.f32 %v1303, %v1615
        %v1617 = vpop.f32.mrb[0].mxu0
        %v1618 = vpop.f32.mrb[0].mxu0
        %v1619 = vpop.f32.mrb[0].mxu0
        %1620 = vdwg.mxu0
        %v1621 = vsel %vm1399, %v1564, -inf
        %1622 = vmax.xlane.f32.xlu0 %v1621
        %v1623 = vpop.xlane.xlu0 %1622
        %v1624 = vsel %vm1399, %v1616, -inf
        %1625 = vmax.xlane.f32.xlu0 %v1624
        %v1626 = vpop.xlane.xlu0 %1625
        %v1627 = vsub.f32 %v1564, %v1623
        %v1628 = vsub.f32 %v1616, %v1626
        %v1629 = vmul.f32 %v1627, 1.442695
        %v1630 = vpow.pop %v1629
        %v1631 = vmul.f32 %v1628, 1.442695
        %v1632 = vpow.pop %v1631
        %v1633 = vsel %vm1399, %v1630, 0.0
        %1634 = vadd.xlane.f32.xlu0 %v1633
        %v1635 = vpop.xlane.xlu0 %1634
        %v1636 = vsel %vm1399, %v1632, 0.0
        %1637 = vadd.xlane.f32.xlu0 %v1636
        %v1638 = vpop.xlane.xlu0 %1637
        %v1639 = vrcp.pop %v1635
        %v1640 = vrcp.pop %v1638
        %v1641 = vmul.f32 %v1630, %v1639
        %v1642 = vmul.f32 %v1632, %v1640
        %v1643 = vpack.c.bf16 %v1641, %v1641
        %v1644 = vpack.c.bf16 %v1642, %v1642
        %1646 = vrot.lane.b32.xlu0 %v1292, 96
        %v1647 = vpop.permute.xlu0 %1646
        %v1649 = vsel %vm1399, %v1643, 0
        %v1652 = vsel %vm1427, %v1647, 0
        %1654 = vmatprep.subr.bf16.mxu0 0
        %1655 = vmatpush1.bf16.msra.mxu0 %v1652
        %1656 = vmatprep.subr.bf16.mxu0 0
        %1657 = vmatpush1.bf16.msra.mxu0 0
        %1658 = vmatprep.subr.bf16.mxu0 0
        %1659 = vmatpush1.bf16.msra.mxu0 0
        %1660 = vmatprep.subr.bf16.mxu0 0
        %1661 = vmatpush1.bf16.msra.mxu0 0
        %1662 = vmatprep.subr.bf16.mxu0 0
        %1663 = vmatpush1.bf16.msra.mxu0 0
        %1664 = vmatprep.subr.bf16.mxu0 0
        %1665 = vmatpush1.bf16.msra.mxu0 0
        %1666 = vmatprep.subr.bf16.mxu0 0
        %1667 = vmatpush1.bf16.msra.mxu0 0
        %1668 = vmatprep.subr.bf16.mxu0 0
        %1669 = vmatpush1.bf16.msra.mxu0 0
        %1670 = vmatprep.subr.bf16.mxu0 0
        %1671 = vmatpush1.bf16.msra.mxu0 0
        %1672 = vmatprep.subr.bf16.mxu0 0
        %1673 = vmatpush1.bf16.msra.mxu0 0
        %1674 = vmatprep.subr.bf16.mxu0 0
        %1675 = vmatpush1.bf16.msra.mxu0 0
        %1676 = vmatprep.subr.bf16.mxu0 0
        %1677 = vmatpush1.bf16.msra.mxu0 0
        %1678 = vmatprep.subr.bf16.mxu0 0
        %1679 = vmatpush1.bf16.msra.mxu0 0
        %1680 = vmatprep.subr.bf16.mxu0 0
        %1681 = vmatpush1.bf16.msra.mxu0 0
        %1682 = vmatprep.subr.bf16.mxu0 0
        %1683 = vmatpush1.bf16.msra.mxu0 0
        %1684 = vmatprep.subr.bf16.mxu0 0
        %1685 = vmatpush1.bf16.msra.mxu0 0
        %1686 = vmatprep.mubr.bf16.mxu0 0
        %1687 = vmatmul.mubr.bf16.gmra.mrb[0].mxu0 %v1649
        %v1688 = vpop.f32.mrb[0].mxu0
        %v1689 = vadd.f32 0.0, %v1688
        %v1690 = vpop.f32.mrb[0].mxu0
        %v1691 = vpop.f32.mrb[0].mxu0
        %v1692 = vpop.f32.mrb[0].mxu0
        %1693 = vdwg.mxu0
        %1695 = vrot.lane.b32.xlu0 %v1293, 96
        %v1696 = vpop.permute.xlu0 %1695
        %v1698 = vsel %vm1399, %v1644, 0
        %v1701 = vsel %vm1427, %v1696, 0
        %1703 = vmatprep.subr.bf16.mxu0 0
        %1704 = vmatpush1.bf16.msra.mxu0 %v1701
        %1705 = vmatprep.subr.bf16.mxu0 0
        %1706 = vmatpush1.bf16.msra.mxu0 0
        %1707 = vmatprep.subr.bf16.mxu0 0
        %1708 = vmatpush1.bf16.msra.mxu0 0
        %1709 = vmatprep.subr.bf16.mxu0 0
        %1710 = vmatpush1.bf16.msra.mxu0 0
        %1711 = vmatprep.subr.bf16.mxu0 0
        %1712 = vmatpush1.bf16.msra.mxu0 0
        %1713 = vmatprep.subr.bf16.mxu0 0
        %1714 = vmatpush1.bf16.msra.mxu0 0
        %1715 = vmatprep.subr.bf16.mxu0 0
        %1716 = vmatpush1.bf16.msra.mxu0 0
        %1717 = vmatprep.subr.bf16.mxu0 0
        %1718 = vmatpush1.bf16.msra.mxu0 0
        %1719 = vmatprep.subr.bf16.mxu0 0
        %1720 = vmatpush1.bf16.msra.mxu0 0
        %1721 = vmatprep.subr.bf16.mxu0 0
        %1722 = vmatpush1.bf16.msra.mxu0 0
        %1723 = vmatprep.subr.bf16.mxu0 0
        %1724 = vmatpush1.bf16.msra.mxu0 0
        %1725 = vmatprep.subr.bf16.mxu0 0
        %1726 = vmatpush1.bf16.msra.mxu0 0
        %1727 = vmatprep.subr.bf16.mxu0 0
        %1728 = vmatpush1.bf16.msra.mxu0 0
        %1729 = vmatprep.subr.bf16.mxu0 0
        %1730 = vmatpush1.bf16.msra.mxu0 0
        %1731 = vmatprep.subr.bf16.mxu0 0
        %1732 = vmatpush1.bf16.msra.mxu0 0
        %1733 = vmatprep.subr.bf16.mxu0 0
        %1734 = vmatpush1.bf16.msra.mxu0 0
        %1735 = vmatprep.mubr.bf16.mxu0 0
        %1736 = vmatmul.mubr.bf16.gmra.mrb[0].mxu0 %v1698
        %v1737 = vpop.f32.mrb[0].mxu0
        %v1738 = vadd.f32 0.0, %v1737
        %v1739 = vpop.f32.mrb[0].mxu0
        %v1740 = vpop.f32.mrb[0].mxu0
        %v1741 = vpop.f32.mrb[0].mxu0
        %1742 = vdwg.mxu0
        %1743 = vrot.lane.b32.xlu0 %v1288, 64
        %v1744 = vpop.permute.xlu0 %1743
        %1745 = vrot.lane.b32.xlu0 %v1290, 64
        %v1746 = vpop.permute.xlu0 %1745
        %v1748 = vsel %vm1306, %v1744, 0
        %v1751 = vsel %vm1306, %v1746, 0
        %1753 = vmatprep.subr.bf16.mxu0 0
        %1754 = vmatpush1.bf16.xpose.msra.mxu0 %v1751
        %1755 = vmatprep.subr.bf16.mxu0 0
        %1756 = vmatpush1.bf16.xpose.msra.mxu0 0
        %1757 = vmatprep.subr.bf16.mxu0 0
        %1758 = vmatpush1.bf16.xpose.msra.mxu0 0
        %1759 = vmatprep.subr.bf16.mxu0 0
        %1760 = vmatpush1.bf16.xpose.msra.mxu0 0
        %1761 = vmatprep.subr.bf16.mxu0 0
        %1762 = vmatpush1.bf16.xpose.msra.mxu0 0
        %1763 = vmatprep.subr.bf16.mxu0 0
        %1764 = vmatpush1.bf16.xpose.msra.mxu0 0
        %1765 = vmatprep.subr.bf16.mxu0 0
        %1766 = vmatpush1.bf16.xpose.msra.mxu0 0
        %1767 = vmatprep.subr.bf16.mxu0 0
        %1768 = vmatpush1.bf16.xpose.msra.mxu0 0
        %1769 = vmatprep.subr.bf16.mxu0 0
        %1770 = vmatpush1.bf16.xpose.msra.mxu0 0
        %1771 = vmatprep.subr.bf16.mxu0 0
        %1772 = vmatpush1.bf16.xpose.msra.mxu0 0
        %1773 = vmatprep.subr.bf16.mxu0 0
        %1774 = vmatpush1.bf16.xpose.msra.mxu0 0
        %1775 = vmatprep.subr.bf16.mxu0 0
        %1776 = vmatpush1.bf16.xpose.msra.mxu0 0
        %1777 = vmatprep.subr.bf16.mxu0 0
        %1778 = vmatpush1.bf16.xpose.msra.mxu0 0
        %1779 = vmatprep.subr.bf16.mxu0 0
        %1780 = vmatpush1.bf16.xpose.msra.mxu0 0
        %1781 = vmatprep.subr.bf16.mxu0 0
        %1782 = vmatpush1.bf16.xpose.msra.mxu0 0
        %1783 = vmatprep.subr.bf16.mxu0 0
        %1784 = vmatpush1.bf16.xpose.msra.mxu0 0
        %1785 = vmatprep.mubr.bf16.mxu0 0
        %1786 = vmatmul.mubr.bf16.gmra.mrb[0].mxu0 %v1748
        %v1787 = vpop.f32.mrb[0].mxu0
        %v1788 = vadd.f32 %v1299, %v1787
        %v1789 = vpop.f32.mrb[0].mxu0
        %v1790 = vpop.f32.mrb[0].mxu0
        %v1791 = vpop.f32.mrb[0].mxu0
        %1792 = vdwg.mxu0
        %1793 = vrot.lane.b32.xlu0 %v1289, 64
        %v1794 = vpop.permute.xlu0 %1793
        %1795 = vrot.lane.b32.xlu0 %v1291, 64
        %v1796 = vpop.permute.xlu0 %1795
        %v1798 = vsel %vm1306, %v1794, 0
        %v1801 = vsel %vm1306, %v1796, 0
        %1803 = vmatprep.subr.bf16.mxu0 0
        %1804 = vmatpush1.bf16.xpose.msra.mxu0 %v1801
        %1805 = vmatprep.subr.bf16.mxu0 0
        %1806 = vmatpush1.bf16.xpose.msra.mxu0 0
        %1807 = vmatprep.subr.bf16.mxu0 0
        %1808 = vmatpush1.bf16.xpose.msra.mxu0 0
        %1809 = vmatprep.subr.bf16.mxu0 0
        %1810 = vmatpush1.bf16.xpose.msra.mxu0 0
        %1811 = vmatprep.subr.bf16.mxu0 0
        %1812 = vmatpush1.bf16.xpose.msra.mxu0 0
        %1813 = vmatprep.subr.bf16.mxu0 0
        %1814 = vmatpush1.bf16.xpose.msra.mxu0 0
        %1815 = vmatprep.subr.bf16.mxu0 0
        %1816 = vmatpush1.bf16.xpose.msra.mxu0 0
        %1817 = vmatprep.subr.bf16.mxu0 0
        %1818 = vmatpush1.bf16.xpose.msra.mxu0 0
        %1819 = vmatprep.subr.bf16.mxu0 0
        %1820 = vmatpush1.bf16.xpose.msra.mxu0 0
        %1821 = vmatprep.subr.bf16.mxu0 0
        %1822 = vmatpush1.bf16.xpose.msra.mxu0 0
        %1823 = vmatprep.subr.bf16.mxu0 0
        %1824 = vmatpush1.bf16.xpose.msra.mxu0 0
        %1825 = vmatprep.subr.bf16.mxu0 0
        %1826 = vmatpush1.bf16.xpose.msra.mxu0 0
        %1827 = vmatprep.subr.bf16.mxu0 0
        %1828 = vmatpush1.bf16.xpose.msra.mxu0 0
        %1829 = vmatprep.subr.bf16.mxu0 0
        %1830 = vmatpush1.bf16.xpose.msra.mxu0 0
        %1831 = vmatprep.subr.bf16.mxu0 0
        %1832 = vmatpush1.bf16.xpose.msra.mxu0 0
        %1833 = vmatprep.subr.bf16.mxu0 0
        %1834 = vmatpush1.bf16.xpose.msra.mxu0 0
        %1835 = vmatprep.mubr.bf16.mxu0 0
        %1836 = vmatmul.mubr.bf16.gmra.mrb[0].mxu0 %v1798
        %v1837 = vpop.f32.mrb[0].mxu0
        %v1838 = vadd.f32 %v1303, %v1837
        %v1839 = vpop.f32.mrb[0].mxu0
        %v1840 = vpop.f32.mrb[0].mxu0
        %v1841 = vpop.f32.mrb[0].mxu0
        %1842 = vdwg.mxu0
        %v1843 = vsel %vm1399, %v1788, -inf
        %1844 = vmax.xlane.f32.xlu0 %v1843
        %v1845 = vpop.xlane.xlu0 %1844
        %v1846 = vsel %vm1399, %v1838, -inf
        %1847 = vmax.xlane.f32.xlu0 %v1846
        %v1848 = vpop.xlane.xlu0 %1847
        %v1849 = vsub.f32 %v1788, %v1845
        %v1850 = vsub.f32 %v1838, %v1848
        %v1851 = vmul.f32 %v1849, 1.442695
        %v1852 = vpow.pop %v1851
        %v1853 = vmul.f32 %v1850, 1.442695
        %v1854 = vpow.pop %v1853
        %v1855 = vsel %vm1399, %v1852, 0.0
        %1856 = vadd.xlane.f32.xlu0 %v1855
        %v1857 = vpop.xlane.xlu0 %1856
        %v1858 = vsel %vm1399, %v1854, 0.0
        %1859 = vadd.xlane.f32.xlu0 %v1858
        %v1860 = vpop.xlane.xlu0 %1859
        %v1861 = vrcp.pop %v1857
        %v1862 = vrcp.pop %v1860
        %v1863 = vmul.f32 %v1852, %v1861
        %v1864 = vmul.f32 %v1854, %v1862
        %v1865 = vpack.c.bf16 %v1863, %v1863
        %v1866 = vpack.c.bf16 %v1864, %v1864
        %1867 = vrot.lane.b32.xlu0 %v1292, 64
        %v1868 = vpop.permute.xlu0 %1867
        %v1870 = vsel %vm1399, %v1865, 0
        %v1873 = vsel %vm1427, %v1868, 0
        %1875 = vmatprep.subr.bf16.mxu0 0
        %1876 = vmatpush1.bf16.msra.mxu0 %v1873
        %1877 = vmatprep.subr.bf16.mxu0 0
        %1878 = vmatpush1.bf16.msra.mxu0 0
        %1879 = vmatprep.subr.bf16.mxu0 0
        %1880 = vmatpush1.bf16.msra.mxu0 0
        %1881 = vmatprep.subr.bf16.mxu0 0
        %1882 = vmatpush1.bf16.msra.mxu0 0
        %1883 = vmatprep.subr.bf16.mxu0 0
        %1884 = vmatpush1.bf16.msra.mxu0 0
        %1885 = vmatprep.subr.bf16.mxu0 0
        %1886 = vmatpush1.bf16.msra.mxu0 0
        %1887 = vmatprep.subr.bf16.mxu0 0
        %1888 = vmatpush1.bf16.msra.mxu0 0
        %1889 = vmatprep.subr.bf16.mxu0 0
        %1890 = vmatpush1.bf16.msra.mxu0 0
        %1891 = vmatprep.subr.bf16.mxu0 0
        %1892 = vmatpush1.bf16.msra.mxu0 0
        %1893 = vmatprep.subr.bf16.mxu0 0
        %1894 = vmatpush1.bf16.msra.mxu0 0
        %1895 = vmatprep.subr.bf16.mxu0 0
        %1896 = vmatpush1.bf16.msra.mxu0 0
        %1897 = vmatprep.subr.bf16.mxu0 0
        %1898 = vmatpush1.bf16.msra.mxu0 0
        %1899 = vmatprep.subr.bf16.mxu0 0
        %1900 = vmatpush1.bf16.msra.mxu0 0
        %1901 = vmatprep.subr.bf16.mxu0 0
        %1902 = vmatpush1.bf16.msra.mxu0 0
        %1903 = vmatprep.subr.bf16.mxu0 0
        %1904 = vmatpush1.bf16.msra.mxu0 0
        %1905 = vmatprep.subr.bf16.mxu0 0
        %1906 = vmatpush1.bf16.msra.mxu0 0
        %1907 = vmatprep.mubr.bf16.mxu0 0
        %1908 = vmatmul.mubr.bf16.gmra.mrb[0].mxu0 %v1870
        %v1909 = vpop.f32.mrb[0].mxu0
        %v1910 = vadd.f32 0.0, %v1909
        %v1911 = vpop.f32.mrb[0].mxu0
        %v1912 = vpop.f32.mrb[0].mxu0
        %v1913 = vpop.f32.mrb[0].mxu0
        %1914 = vdwg.mxu0
        %1915 = vrot.lane.b32.xlu0 %v1293, 64
        %v1916 = vpop.permute.xlu0 %1915
        %v1918 = vsel %vm1399, %v1866, 0
        %v1921 = vsel %vm1427, %v1916, 0
        %1923 = vmatprep.subr.bf16.mxu0 0
        %1924 = vmatpush1.bf16.msra.mxu0 %v1921
        %1925 = vmatprep.subr.bf16.mxu0 0
        %1926 = vmatpush1.bf16.msra.mxu0 0
        %1927 = vmatprep.subr.bf16.mxu0 0
        %1928 = vmatpush1.bf16.msra.mxu0 0
        %1929 = vmatprep.subr.bf16.mxu0 0
        %1930 = vmatpush1.bf16.msra.mxu0 0
        %1931 = vmatprep.subr.bf16.mxu0 0
        %1932 = vmatpush1.bf16.msra.mxu0 0
        %1933 = vmatprep.subr.bf16.mxu0 0
        %1934 = vmatpush1.bf16.msra.mxu0 0
        %1935 = vmatprep.subr.bf16.mxu0 0
        %1936 = vmatpush1.bf16.msra.mxu0 0
        %1937 = vmatprep.subr.bf16.mxu0 0
        %1938 = vmatpush1.bf16.msra.mxu0 0
        %1939 = vmatprep.subr.bf16.mxu0 0
        %1940 = vmatpush1.bf16.msra.mxu0 0
        %1941 = vmatprep.subr.bf16.mxu0 0
        %1942 = vmatpush1.bf16.msra.mxu0 0
        %1943 = vmatprep.subr.bf16.mxu0 0
        %1944 = vmatpush1.bf16.msra.mxu0 0
        %1945 = vmatprep.subr.bf16.mxu0 0
        %1946 = vmatpush1.bf16.msra.mxu0 0
        %1947 = vmatprep.subr.bf16.mxu0 0
        %1948 = vmatpush1.bf16.msra.mxu0 0
        %1949 = vmatprep.subr.bf16.mxu0 0
        %1950 = vmatpush1.bf16.msra.mxu0 0
        %1951 = vmatprep.subr.bf16.mxu0 0
        %1952 = vmatpush1.bf16.msra.mxu0 0
        %1953 = vmatprep.subr.bf16.mxu0 0
        %1954 = vmatpush1.bf16.msra.mxu0 0
        %1955 = vmatprep.mubr.bf16.mxu0 0
        %1956 = vmatmul.mubr.bf16.gmra.mrb[0].mxu0 %v1918
        %v1957 = vpop.f32.mrb[0].mxu0
        %v1958 = vadd.f32 0.0, %v1957
        %v1959 = vpop.f32.mrb[0].mxu0
        %v1960 = vpop.f32.mrb[0].mxu0
        %v1961 = vpop.f32.mrb[0].mxu0
        %1962 = vdwg.mxu0
        %1963 = vrot.lane.b32.xlu0 %v1288, 32
        %v1964 = vpop.permute.xlu0 %1963
        %1965 = vrot.lane.b32.xlu0 %v1290, 32
        %v1966 = vpop.permute.xlu0 %1965
        %v1968 = vsel %vm1306, %v1964, 0
        %v1971 = vsel %vm1306, %v1966, 0
        %1973 = vmatprep.subr.bf16.mxu0 0
        %1974 = vmatpush1.bf16.xpose.msra.mxu0 %v1971
        %1975 = vmatprep.subr.bf16.mxu0 0
        %1976 = vmatpush1.bf16.xpose.msra.mxu0 0
        %1977 = vmatprep.subr.bf16.mxu0 0
        %1978 = vmatpush1.bf16.xpose.msra.mxu0 0
        %1979 = vmatprep.subr.bf16.mxu0 0
        %1980 = vmatpush1.bf16.xpose.msra.mxu0 0
        %1981 = vmatprep.subr.bf16.mxu0 0
        %1982 = vmatpush1.bf16.xpose.msra.mxu0 0
        %1983 = vmatprep.subr.bf16.mxu0 0
        %1984 = vmatpush1.bf16.xpose.msra.mxu0 0
        %1985 = vmatprep.subr.bf16.mxu0 0
        %1986 = vmatpush1.bf16.xpose.msra.mxu0 0
        %1987 = vmatprep.subr.bf16.mxu0 0
        %1988 = vmatpush1.bf16.xpose.msra.mxu0 0
        %1989 = vmatprep.subr.bf16.mxu0 0
        %1990 = vmatpush1.bf16.xpose.msra.mxu0 0
        %1991 = vmatprep.subr.bf16.mxu0 0
        %1992 = vmatpush1.bf16.xpose.msra.mxu0 0
        %1993 = vmatprep.subr.bf16.mxu0 0
        %1994 = vmatpush1.bf16.xpose.msra.mxu0 0
        %1995 = vmatprep.subr.bf16.mxu0 0
        %1996 = vmatpush1.bf16.xpose.msra.mxu0 0
        %1997 = vmatprep.subr.bf16.mxu0 0
        %1998 = vmatpush1.bf16.xpose.msra.mxu0 0
        %1999 = vmatprep.subr.bf16.mxu0 0
        %2000 = vmatpush1.bf16.xpose.msra.mxu0 0
        %2001 = vmatprep.subr.bf16.mxu0 0
        %2002 = vmatpush1.bf16.xpose.msra.mxu0 0
        %2003 = vmatprep.subr.bf16.mxu0 0
        %2004 = vmatpush1.bf16.xpose.msra.mxu0 0
        %2005 = vmatprep.mubr.bf16.mxu0 0
        %2006 = vmatmul.mubr.bf16.gmra.mrb[0].mxu0 %v1968
        %v2007 = vpop.f32.mrb[0].mxu0
        %v2008 = vadd.f32 %v1299, %v2007
        %v2009 = vpop.f32.mrb[0].mxu0
        %v2010 = vpop.f32.mrb[0].mxu0
        %v2011 = vpop.f32.mrb[0].mxu0
        %2012 = vdwg.mxu0
        %2013 = vrot.lane.b32.xlu0 %v1289, 32
        %v2014 = vpop.permute.xlu0 %2013
        %2015 = vrot.lane.b32.xlu0 %v1291, 32
        %v2016 = vpop.permute.xlu0 %2015
        %v2018 = vsel %vm1306, %v2014, 0
        %v2021 = vsel %vm1306, %v2016, 0
        %2023 = vmatprep.subr.bf16.mxu0 0
        %2024 = vmatpush1.bf16.xpose.msra.mxu0 %v2021
        %2025 = vmatprep.subr.bf16.mxu0 0
        %2026 = vmatpush1.bf16.xpose.msra.mxu0 0
        %2027 = vmatprep.subr.bf16.mxu0 0
        %2028 = vmatpush1.bf16.xpose.msra.mxu0 0
        %2029 = vmatprep.subr.bf16.mxu0 0
        %2030 = vmatpush1.bf16.xpose.msra.mxu0 0
        %2031 = vmatprep.subr.bf16.mxu0 0
        %2032 = vmatpush1.bf16.xpose.msra.mxu0 0
        %2033 = vmatprep.subr.bf16.mxu0 0
        %2034 = vmatpush1.bf16.xpose.msra.mxu0 0
        %2035 = vmatprep.subr.bf16.mxu0 0
        %2036 = vmatpush1.bf16.xpose.msra.mxu0 0
        %2037 = vmatprep.subr.bf16.mxu0 0
        %2038 = vmatpush1.bf16.xpose.msra.mxu0 0
        %2039 = vmatprep.subr.bf16.mxu0 0
        %2040 = vmatpush1.bf16.xpose.msra.mxu0 0
        %2041 = vmatprep.subr.bf16.mxu0 0
        %2042 = vmatpush1.bf16.xpose.msra.mxu0 0
        %2043 = vmatprep.subr.bf16.mxu0 0
        %2044 = vmatpush1.bf16.xpose.msra.mxu0 0
        %2045 = vmatprep.subr.bf16.mxu0 0
        %2046 = vmatpush1.bf16.xpose.msra.mxu0 0
        %2047 = vmatprep.subr.bf16.mxu0 0
        %2048 = vmatpush1.bf16.xpose.msra.mxu0 0
        %2049 = vmatprep.subr.bf16.mxu0 0
        %2050 = vmatpush1.bf16.xpose.msra.mxu0 0
        %2051 = vmatprep.subr.bf16.mxu0 0
        %2052 = vmatpush1.bf16.xpose.msra.mxu0 0
        %2053 = vmatprep.subr.bf16.mxu0 0
        %2054 = vmatpush1.bf16.xpose.msra.mxu0 0
        %2055 = vmatprep.mubr.bf16.mxu0 0
        %2056 = vmatmul.mubr.bf16.gmra.mrb[0].mxu0 %v2018
        %v2057 = vpop.f32.mrb[0].mxu0
        %v2058 = vadd.f32 %v1303, %v2057
        %v2059 = vpop.f32.mrb[0].mxu0
        %v2060 = vpop.f32.mrb[0].mxu0
        %v2061 = vpop.f32.mrb[0].mxu0
        %2062 = vdwg.mxu0
        %v2063 = vsel %vm1399, %v2008, -inf
        %2064 = vmax.xlane.f32.xlu0 %v2063
        %v2065 = vpop.xlane.xlu0 %2064
        %v2066 = vsel %vm1399, %v2058, -inf
        %2067 = vmax.xlane.f32.xlu0 %v2066
        %v2068 = vpop.xlane.xlu0 %2067
        %v2069 = vsub.f32 %v2008, %v2065
        %v2070 = vsub.f32 %v2058, %v2068
        %v2071 = vmul.f32 %v2069, 1.442695
        %v2072 = vpow.pop %v2071
        %v2073 = vmul.f32 %v2070, 1.442695
        %v2074 = vpow.pop %v2073
        %v2075 = vsel %vm1399, %v2072, 0.0
        %2076 = vadd.xlane.f32.xlu0 %v2075
        %v2077 = vpop.xlane.xlu0 %2076
        %v2078 = vsel %vm1399, %v2074, 0.0
        %2079 = vadd.xlane.f32.xlu0 %v2078
        %v2080 = vpop.xlane.xlu0 %2079
        %v2081 = vrcp.pop %v2077
        %v2082 = vrcp.pop %v2080
        %v2083 = vmul.f32 %v2072, %v2081
        %v2084 = vmul.f32 %v2074, %v2082
        %v2085 = vpack.c.bf16 %v2083, %v2083
        %v2086 = vpack.c.bf16 %v2084, %v2084
        %2087 = vrot.lane.b32.xlu0 %v1292, 32
        %v2088 = vpop.permute.xlu0 %2087
        %v2090 = vsel %vm1399, %v2085, 0
        %v2093 = vsel %vm1427, %v2088, 0
        %2095 = vmatprep.subr.bf16.mxu0 0
        %2096 = vmatpush1.bf16.msra.mxu0 %v2093
        %2097 = vmatprep.subr.bf16.mxu0 0
        %2098 = vmatpush1.bf16.msra.mxu0 0
        %2099 = vmatprep.subr.bf16.mxu0 0
        %2100 = vmatpush1.bf16.msra.mxu0 0
        %2101 = vmatprep.subr.bf16.mxu0 0
        %2102 = vmatpush1.bf16.msra.mxu0 0
        %2103 = vmatprep.subr.bf16.mxu0 0
        %2104 = vmatpush1.bf16.msra.mxu0 0
        %2105 = vmatprep.subr.bf16.mxu0 0
        %2106 = vmatpush1.bf16.msra.mxu0 0
        %2107 = vmatprep.subr.bf16.mxu0 0
        %2108 = vmatpush1.bf16.msra.mxu0 0
        %2109 = vmatprep.subr.bf16.mxu0 0
        %2110 = vmatpush1.bf16.msra.mxu0 0
        %2111 = vmatprep.subr.bf16.mxu0 0
        %2112 = vmatpush1.bf16.msra.mxu0 0
        %2113 = vmatprep.subr.bf16.mxu0 0
        %2114 = vmatpush1.bf16.msra.mxu0 0
        %2115 = vmatprep.subr.bf16.mxu0 0
        %2116 = vmatpush1.bf16.msra.mxu0 0
        %2117 = vmatprep.subr.bf16.mxu0 0
        %2118 = vmatpush1.bf16.msra.mxu0 0
        %2119 = vmatprep.subr.bf16.mxu0 0
        %2120 = vmatpush1.bf16.msra.mxu0 0
        %2121 = vmatprep.subr.bf16.mxu0 0
        %2122 = vmatpush1.bf16.msra.mxu0 0
        %2123 = vmatprep.subr.bf16.mxu0 0
        %2124 = vmatpush1.bf16.msra.mxu0 0
        %2125 = vmatprep.subr.bf16.mxu0 0
        %2126 = vmatpush1.bf16.msra.mxu0 0
        %2127 = vmatprep.mubr.bf16.mxu0 0
        %2128 = vmatmul.mubr.bf16.gmra.mrb[0].mxu0 %v2090
        %v2129 = vpop.f32.mrb[0].mxu0
        %v2130 = vadd.f32 0.0, %v2129
        %v2131 = vpop.f32.mrb[0].mxu0
        %v2132 = vpop.f32.mrb[0].mxu0
        %v2133 = vpop.f32.mrb[0].mxu0
        %2134 = vdwg.mxu0
        %2135 = vrot.lane.b32.xlu0 %v1293, 32
        %v2136 = vpop.permute.xlu0 %2135
        %v2138 = vsel %vm1399, %v2086, 0
        %v2141 = vsel %vm1427, %v2136, 0
        %2143 = vmatprep.subr.bf16.mxu0 0
        %2144 = vmatpush1.bf16.msra.mxu0 %v2141
        %2145 = vmatprep.subr.bf16.mxu0 0
        %2146 = vmatpush1.bf16.msra.mxu0 0
        %2147 = vmatprep.subr.bf16.mxu0 0
        %2148 = vmatpush1.bf16.msra.mxu0 0
        %2149 = vmatprep.subr.bf16.mxu0 0
        %2150 = vmatpush1.bf16.msra.mxu0 0
        %2151 = vmatprep.subr.bf16.mxu0 0
        %2152 = vmatpush1.bf16.msra.mxu0 0
        %2153 = vmatprep.subr.bf16.mxu0 0
        %2154 = vmatpush1.bf16.msra.mxu0 0
        %2155 = vmatprep.subr.bf16.mxu0 0
        %2156 = vmatpush1.bf16.msra.mxu0 0
        %2157 = vmatprep.subr.bf16.mxu0 0
        %2158 = vmatpush1.bf16.msra.mxu0 0
        %2159 = vmatprep.subr.bf16.mxu0 0
        %2160 = vmatpush1.bf16.msra.mxu0 0
        %2161 = vmatprep.subr.bf16.mxu0 0
        %2162 = vmatpush1.bf16.msra.mxu0 0
        %2163 = vmatprep.subr.bf16.mxu0 0
        %2164 = vmatpush1.bf16.msra.mxu0 0
        %2165 = vmatprep.subr.bf16.mxu0 0
        %2166 = vmatpush1.bf16.msra.mxu0 0
        %2167 = vmatprep.subr.bf16.mxu0 0
        %2168 = vmatpush1.bf16.msra.mxu0 0
        %2169 = vmatprep.subr.bf16.mxu0 0
        %2170 = vmatpush1.bf16.msra.mxu0 0
        %2171 = vmatprep.subr.bf16.mxu0 0
        %2172 = vmatpush1.bf16.msra.mxu0 0
        %2173 = vmatprep.subr.bf16.mxu0 0
        %2174 = vmatpush1.bf16.msra.mxu0 0
        %2175 = vmatprep.mubr.bf16.mxu0 0
        %2176 = vmatmul.mubr.bf16.gmra.mrb[0].mxu0 %v2138
        %v2177 = vpop.f32.mrb[0].mxu0
        %v2178 = vadd.f32 0.0, %v2177
        %v2179 = vpop.f32.mrb[0].mxu0
        %v2180 = vpop.f32.mrb[0].mxu0
        %v2181 = vpop.f32.mrb[0].mxu0
        %2182 = vdwg.mxu0
        %2185 = vrot.lane.b32.xlu0 %v1689, 32
        %v2186 = vpop.permute.xlu0 %2185
        %2187 = vrot.lane.b32.xlu0 %v1738, 32
        %v2188 = vpop.permute.xlu0 %2187
        %2193 = vrot.lane.b32.xlu0 %v1910, 64
        %v2194 = vpop.permute.xlu0 %2193
        %2195 = vrot.lane.b32.xlu0 %v1958, 64
        %v2196 = vpop.permute.xlu0 %2195
        %2201 = vrot.lane.b32.xlu0 %v2130, 96
        %v2202 = vpop.permute.xlu0 %2201
        %2203 = vrot.lane.b32.xlu0 %v2178, 96
        %v2204 = vpop.permute.xlu0 %2203
        %v2207 = vsel %vm1306, %v1466, %v2186
        %v2208 = vsel %vm1306, %v1512, %v2188
        %vm2209 = vcmask 523264
        %v2210 = vsel %vm2209, %v2207, %v2194
        %v2211 = vsel %vm2209, %v2208, %v2196
        %vm2212 = vcmask 785408
        %v2213 = vsel %vm2212, %v2210, %v2202
        %v2214 = vsel %vm2212, %v2211, %v2204
        %v2215 = vpack.c.bf16 %v2214, %v2213
        %v2217 = vlaneseq
        %v2218 = vshrl.u32 %v2217, 7
        %v2219 = vsub.s32 0, %v2218
        %v2220 = vrot.slane %v1004, %v2219
        %v2238 = vunpack.c.l.b16 %v988
        %v2239 = vunpack.c.l.b16 %v989
        %v2240 = vunpack.c.l.b16 %v990
        %v2241 = vunpack.c.l.b16 %v991
        %v2242 = vunpack.c.l.b16 %v992
        %v2243 = vunpack.c.l.b16 %v993
        %v2244 = vunpack.c.l.b16 %v994
        %v2245 = vunpack.c.l.b16 %v995
        %v2246 = vunpack.c.l.b16 %v996
        %v2247 = vunpack.c.l.b16 %v997
        %v2248 = vunpack.c.l.b16 %v998
        %v2249 = vunpack.c.l.b16 %v999
        %v2250 = vunpack.c.l.b16 %v1000
        %v2251 = vunpack.c.l.b16 %v1001
        %v2252 = vunpack.c.l.b16 %v1002
        %v2253 = vunpack.c.l.b16 %v1003
        %v2254 = vpack.c.b16 %v2239, %v2238
        %v2255 = vpack.c.b16 %v2241, %v2240
        %v2256 = vpack.c.b16 %v2243, %v2242
        %v2257 = vpack.c.b16 %v2245, %v2244
        %v2258 = vpack.c.b16 %v2247, %v2246
        %v2259 = vpack.c.b16 %v2249, %v2248
        %v2260 = vpack.c.b16 %v2251, %v2250
        %v2261 = vpack.c.b16 %v2253, %v2252
        %2270 = vmatprep.subr.bf16.mxu0 0
        %2271 = vmatpush1.bf16.msra.mxu0 %v2254
        %2272 = vmatprep.subr.bf16.mxu0 0
        %2273 = vmatpush1.bf16.msra.mxu0 %v2255
        %2274 = vmatprep.subr.bf16.mxu0 0
        %2275 = vmatpush1.bf16.msra.mxu0 %v2256
        %2276 = vmatprep.subr.bf16.mxu0 0
        %2277 = vmatpush1.bf16.msra.mxu0 %v2257
        %2278 = vmatprep.subr.bf16.mxu0 0
        %2279 = vmatpush1.bf16.msra.mxu0 %v2258
        %2280 = vmatprep.subr.bf16.mxu0 0
        %2281 = vmatpush1.bf16.msra.mxu0 %v2259
        %2282 = vmatprep.subr.bf16.mxu0 0
        %2283 = vmatpush1.bf16.msra.mxu0 %v2260
        %2284 = vmatprep.subr.bf16.mxu0 0
        %2285 = vmatpush1.bf16.msra.mxu0 %v2261
        %2286 = vmatprep.subr.bf16.mxu0 0
        %2287 = vmatpush1.bf16.msra.mxu0 0
        %2288 = vmatprep.subr.bf16.mxu0 0
        %2289 = vmatpush1.bf16.msra.mxu0 0
        %2290 = vmatprep.subr.bf16.mxu0 0
        %2291 = vmatpush1.bf16.msra.mxu0 0
        %2292 = vmatprep.subr.bf16.mxu0 0
        %2293 = vmatpush1.bf16.msra.mxu0 0
        %2294 = vmatprep.subr.bf16.mxu0 0
        %2295 = vmatpush1.bf16.msra.mxu0 0
        %2296 = vmatprep.subr.bf16.mxu0 0
        %2297 = vmatpush1.bf16.msra.mxu0 0
        %2298 = vmatprep.subr.bf16.mxu0 0
        %2299 = vmatpush1.bf16.msra.mxu0 0
        %2300 = vmatprep.subr.bf16.mxu0 0
        %2301 = vmatpush1.bf16.msra.mxu0 0
        %2302 = vmatprep.mubr.bf16.mxu0 0
        %2303 = vmatmul.mubr.bf16.gmra.mrb[0].mxu0 %v2215
        %v2304 = vpop.f32.mrb[0].mxu0
        %v2305 = vadd.f32 %v2220, %v2304
        %v2306 = vpop.f32.mrb[0].mxu0
        %v2307 = vpop.f32.mrb[0].mxu0
        %v2308 = vadd.f32 %v2220, %v2307
        %v2309 = vpop.f32.mrb[0].mxu0
        %2310 = vdwg.mxu0
        %v2311 = vadd.f32 %v951, %v2305
        %v2312 = vadd.f32 %v952, %v2308
        %2313 = vadd.xlane.f32.xlu0 %v2311
        %v2314 = vpop.xlane.xlu0 %2313
        %2315 = vadd.xlane.f32.xlu0 %v2312
        %v2316 = vpop.xlane.xlu0 %2315
        %v2317 = vrcp.pop 128.0
        %v2318 = vmul.f32 %v2314, %v2317
        %v2319 = vmul.f32 %v2316, %v2317
        %v2320 = vsub.f32 %v2311, %v2318
        %v2321 = vsub.f32 %v2312, %v2319
        %v2322 = vmul.f32 %v2320, %v2320
        %v2323 = vmul.f32 %v2321, %v2321
        %2324 = vadd.xlane.f32.xlu0 %v2322
        %v2325 = vpop.xlane.xlu0 %2324
        %2326 = vadd.xlane.f32.xlu0 %v2323
        %v2327 = vpop.xlane.xlu0 %2326
        %v2328 = vmul.f32 %v2325, %v2317
        %v2329 = vmul.f32 %v2327, %v2317
        %v2330 = vadd.f32 %v2328, 1e-05
        %v2331 = vadd.f32 %v2329, 1e-05
        %v2332 = vrsqrt.pop %v2330
        %v2333 = vrsqrt.pop %v2331
        %v2334 = vmul.f32 %v2320, %v2332
        %v2335 = vmul.f32 %v2321, %v2333
        %v2337 = vlaneseq
        %v2338 = vshrl.u32 %v2337, 7
        %v2339 = vsub.s32 0, %v2338
        %v2340 = vrot.slane %v1005, %v2339
        %v2342 = vmul.f32 %v2334, %v2340
        %v2343 = vmul.f32 %v2335, %v2340
        %v2345 = vlaneseq
        %v2346 = vshrl.u32 %v2345, 7
        %v2347 = vsub.s32 0, %v2346
        %v2348 = vrot.slane %v1006, %v2347
        %v2350 = vadd.f32 %v2342, %v2348
        %v2351 = vadd.f32 %v2343, %v2348
        %v2352 = vpack.c.bf16 %v2351, %v2350
        %v2354 = vlaneseq
        %v2355 = vshrl.u32 %v2354, 7
        %v2356 = vsub.s32 0, %v2355
        %v2357 = vrot.slane %v1023, %v2356
        %v2358 = vlaneseq
        %v2359 = vshrl.u32 %v2358, 7
        %v2360 = vsub.s32 1, %v2359
        %v2361 = vrot.slane %v1023, %v2360
        %v2380 = vunpack.c.l.b16 %v1007
        %v2381 = vunpack.c.h.b16 %v1007
        %v2382 = vunpack.c.l.b16 %v1008
        %v2383 = vunpack.c.h.b16 %v1008
        %v2384 = vunpack.c.l.b16 %v1009
        %v2385 = vunpack.c.h.b16 %v1009
        %v2386 = vunpack.c.l.b16 %v1010
        %v2387 = vunpack.c.h.b16 %v1010
        %v2388 = vunpack.c.l.b16 %v1011
        %v2389 = vunpack.c.h.b16 %v1011
        %v2390 = vunpack.c.l.b16 %v1012
        %v2391 = vunpack.c.h.b16 %v1012
        %v2392 = vunpack.c.l.b16 %v1013
        %v2393 = vunpack.c.h.b16 %v1013
        %v2394 = vunpack.c.l.b16 %v1014
        %v2395 = vunpack.c.h.b16 %v1014
        %v2396 = vunpack.c.l.b16 %v1015
        %v2397 = vunpack.c.h.b16 %v1015
        %v2398 = vunpack.c.l.b16 %v1016
        %v2399 = vunpack.c.h.b16 %v1016
        %v2400 = vunpack.c.l.b16 %v1017
        %v2401 = vunpack.c.h.b16 %v1017
        %v2402 = vunpack.c.l.b16 %v1018
        %v2403 = vunpack.c.h.b16 %v1018
        %v2404 = vunpack.c.l.b16 %v1019
        %v2405 = vunpack.c.h.b16 %v1019
        %v2406 = vunpack.c.l.b16 %v1020
        %v2407 = vunpack.c.h.b16 %v1020
        %v2408 = vunpack.c.l.b16 %v1021
        %v2409 = vunpack.c.h.b16 %v1021
        %v2410 = vunpack.c.l.b16 %v1022
        %v2411 = vunpack.c.h.b16 %v1022
        %v2412 = vpack.c.b16 %v2382, %v2380
        %v2413 = vpack.c.b16 %v2383, %v2381
        %v2414 = vpack.c.b16 %v2386, %v2384
        %v2415 = vpack.c.b16 %v2387, %v2385
        %v2416 = vpack.c.b16 %v2390, %v2388
        %v2417 = vpack.c.b16 %v2391, %v2389
        %v2418 = vpack.c.b16 %v2394, %v2392
        %v2419 = vpack.c.b16 %v2395, %v2393
        %v2420 = vpack.c.b16 %v2398, %v2396
        %v2421 = vpack.c.b16 %v2399, %v2397
        %v2422 = vpack.c.b16 %v2402, %v2400
        %v2423 = vpack.c.b16 %v2403, %v2401
        %v2424 = vpack.c.b16 %v2406, %v2404
        %v2425 = vpack.c.b16 %v2407, %v2405
        %v2426 = vpack.c.b16 %v2410, %v2408
        %v2427 = vpack.c.b16 %v2411, %v2409
        %2444 = vmatprep.subr.bf16.mxu0 %v2413
        %2445 = vmatpush1.bf16.msra.mxu0 %v2412
        %2446 = vmatprep.subr.bf16.mxu0 %v2415
        %2447 = vmatpush1.bf16.msra.mxu0 %v2414
        %2448 = vmatprep.subr.bf16.mxu0 %v2417
        %2449 = vmatpush1.bf16.msra.mxu0 %v2416
        %2450 = vmatprep.subr.bf16.mxu0 %v2419
        %2451 = vmatpush1.bf16.msra.mxu0 %v2418
        %2452 = vmatprep.subr.bf16.mxu0 %v2421
        %2453 = vmatpush1.bf16.msra.mxu0 %v2420
        %2454 = vmatprep.subr.bf16.mxu0 %v2423
        %2455 = vmatpush1.bf16.msra.mxu0 %v2422
        %2456 = vmatprep.subr.bf16.mxu0 %v2425
        %2457 = vmatpush1.bf16.msra.mxu0 %v2424
        %2458 = vmatprep.subr.bf16.mxu0 %v2427
        %2459 = vmatpush1.bf16.msra.mxu0 %v2426
        %2460 = vmatprep.subr.bf16.mxu0 0
        %2461 = vmatpush1.bf16.msra.mxu0 0
        %2462 = vmatprep.subr.bf16.mxu0 0
        %2463 = vmatpush1.bf16.msra.mxu0 0
        %2464 = vmatprep.subr.bf16.mxu0 0
        %2465 = vmatpush1.bf16.msra.mxu0 0
        %2466 = vmatprep.subr.bf16.mxu0 0
        %2467 = vmatpush1.bf16.msra.mxu0 0
        %2468 = vmatprep.subr.bf16.mxu0 0
        %2469 = vmatpush1.bf16.msra.mxu0 0
        %2470 = vmatprep.subr.bf16.mxu0 0
        %2471 = vmatpush1.bf16.msra.mxu0 0
        %2472 = vmatprep.subr.bf16.mxu0 0
        %2473 = vmatpush1.bf16.msra.mxu0 0
        %2474 = vmatprep.subr.bf16.mxu0 0
        %2475 = vmatpush1.bf16.msra.mxu0 0
        %2476 = vmatprep.mubr.bf16.mxu0 0
        %2477 = vmatmul.mubr.bf16.gmra.mrb[0].mxu0 %v2352
        %v2478 = vpop.f32.mrb[0].mxu0
        %v2479 = vadd.f32 %v2357, %v2478
        %v2480 = vpop.f32.mrb[0].mxu0
        %v2481 = vadd.f32 %v2361, %v2480
        %v2482 = vpop.f32.mrb[0].mxu0
        %v2483 = vadd.f32 %v2357, %v2482
        %v2484 = vpop.f32.mrb[0].mxu0
        %v2485 = vadd.f32 %v2361, %v2484
        %2486 = vdwg.mxu0
        %v2487 = vmax.f32 %v2479, 0.0
        %v2488 = vmax.f32 %v2481, 0.0
        %v2489 = vmax.f32 %v2483, 0.0
        %v2490 = vmax.f32 %v2485, 0.0
        %v2491 = vpack.c.bf16 %v2489, %v2487
        %v2492 = vpack.c.bf16 %v2490, %v2488
        %v2494 = vlaneseq
        %v2495 = vshrl.u32 %v2494, 7
        %v2496 = vsub.s32 0, %v2495
        %v2497 = vrot.slane %v1056, %v2496
        %v2531 = vunpack.c.l.b16 %v1024
        %v2532 = vunpack.c.l.b16 %v1025
        %v2533 = vunpack.c.l.b16 %v1026
        %v2534 = vunpack.c.l.b16 %v1027
        %v2535 = vunpack.c.l.b16 %v1028
        %v2536 = vunpack.c.l.b16 %v1029
        %v2537 = vunpack.c.l.b16 %v1030
        %v2538 = vunpack.c.l.b16 %v1031
        %v2539 = vunpack.c.l.b16 %v1032
        %v2540 = vunpack.c.l.b16 %v1033
        %v2541 = vunpack.c.l.b16 %v1034
        %v2542 = vunpack.c.l.b16 %v1035
        %v2543 = vunpack.c.l.b16 %v1036
        %v2544 = vunpack.c.l.b16 %v1037
        %v2545 = vunpack.c.l.b16 %v1038
        %v2546 = vunpack.c.l.b16 %v1039
        %v2547 = vunpack.c.l.b16 %v1040
        %v2548 = vunpack.c.l.b16 %v1041
        %v2549 = vunpack.c.l.b16 %v1042
        %v2550 = vunpack.c.l.b16 %v1043
        %v2551 = vunpack.c.l.b16 %v1044
        %v2552 = vunpack.c.l.b16 %v1045
        %v2553 = vunpack.c.l.b16 %v1046
        %v2554 = vunpack.c.l.b16 %v1047
        %v2555 = vunpack.c.l.b16 %v1048
        %v2556 = vunpack.c.l.b16 %v1049
        %v2557 = vunpack.c.l.b16 %v1050
        %v2558 = vunpack.c.l.b16 %v1051
        %v2559 = vunpack.c.l.b16 %v1052
        %v2560 = vunpack.c.l.b16 %v1053
        %v2561 = vunpack.c.l.b16 %v1054
        %v2562 = vunpack.c.l.b16 %v1055
        %v2563 = vpack.c.b16 %v2532, %v2531
        %v2564 = vpack.c.b16 %v2534, %v2533
        %v2565 = vpack.c.b16 %v2536, %v2535
        %v2566 = vpack.c.b16 %v2538, %v2537
        %v2567 = vpack.c.b16 %v2540, %v2539
        %v2568 = vpack.c.b16 %v2542, %v2541
        %v2569 = vpack.c.b16 %v2544, %v2543
        %v2570 = vpack.c.b16 %v2546, %v2545
        %v2571 = vpack.c.b16 %v2548, %v2547
        %v2572 = vpack.c.b16 %v2550, %v2549
        %v2573 = vpack.c.b16 %v2552, %v2551
        %v2574 = vpack.c.b16 %v2554, %v2553
        %v2575 = vpack.c.b16 %v2556, %v2555
        %v2576 = vpack.c.b16 %v2558, %v2557
        %v2577 = vpack.c.b16 %v2560, %v2559
        %v2578 = vpack.c.b16 %v2562, %v2561
        %2595 = vmatprep.subr.bf16.mxu0 0
        %2596 = vmatpush1.bf16.msra.mxu0 %v2563
        %2597 = vmatprep.subr.bf16.mxu0 0
        %2598 = vmatpush1.bf16.msra.mxu0 %v2564
        %2599 = vmatprep.subr.bf16.mxu0 0
        %2600 = vmatpush1.bf16.msra.mxu0 %v2565
        %2601 = vmatprep.subr.bf16.mxu0 0
        %2602 = vmatpush1.bf16.msra.mxu0 %v2566
        %2603 = vmatprep.subr.bf16.mxu0 0
        %2604 = vmatpush1.bf16.msra.mxu0 %v2567
        %2605 = vmatprep.subr.bf16.mxu0 0
        %2606 = vmatpush1.bf16.msra.mxu0 %v2568
        %2607 = vmatprep.subr.bf16.mxu0 0
        %2608 = vmatpush1.bf16.msra.mxu0 %v2569
        %2609 = vmatprep.subr.bf16.mxu0 0
        %2610 = vmatpush1.bf16.msra.mxu0 %v2570
        %2611 = vmatprep.subr.bf16.mxu0 0
        %2612 = vmatpush1.bf16.msra.mxu0 %v2571
        %2613 = vmatprep.subr.bf16.mxu0 0
        %2614 = vmatpush1.bf16.msra.mxu0 %v2572
        %2615 = vmatprep.subr.bf16.mxu0 0
        %2616 = vmatpush1.bf16.msra.mxu0 %v2573
        %2617 = vmatprep.subr.bf16.mxu0 0
        %2618 = vmatpush1.bf16.msra.mxu0 %v2574
        %2619 = vmatprep.subr.bf16.mxu0 0
        %2620 = vmatpush1.bf16.msra.mxu0 %v2575
        %2621 = vmatprep.subr.bf16.mxu0 0
        %2622 = vmatpush1.bf16.msra.mxu0 %v2576
        %2623 = vmatprep.subr.bf16.mxu0 0
        %2624 = vmatpush1.bf16.msra.mxu0 %v2577
        %2625 = vmatprep.subr.bf16.mxu0 0
        %2626 = vmatpush1.bf16.msra.mxu0 %v2578
        %2627 = vmatprep.mubr.bf16.mxu0 %v2492
        %2628 = vmatmul.mubr.bf16.gmra.mrb[0].mxu0 %v2491
        %v2629 = vpop.f32.mrb[0].mxu0
        %v2630 = vadd.f32 %v2497, %v2629
        %v2631 = vpop.f32.mrb[0].mxu0
        %v2632 = vpop.f32.mrb[0].mxu0
        %v2633 = vadd.f32 %v2497, %v2632
        %v2634 = vpop.f32.mrb[0].mxu0
        %2635 = vdwg.mxu0
        %v2636 = vadd.f32 %v2350, %v2630
        %v2637 = vadd.f32 %v2351, %v2633
        %2638 = vadd.xlane.f32.xlu0 %v2636
        %v2639 = vpop.xlane.xlu0 %2638
        %2640 = vadd.xlane.f32.xlu0 %v2637
        %v2641 = vpop.xlane.xlu0 %2640
        %v2642 = vmul.f32 %v2639, %v2317
        %v2643 = vmul.f32 %v2641, %v2317
        %v2644 = vsub.f32 %v2636, %v2642
        %v2645 = vsub.f32 %v2637, %v2643
        %v2646 = vmul.f32 %v2644, %v2644
        %v2647 = vmul.f32 %v2645, %v2645
        %2648 = vadd.xlane.f32.xlu0 %v2646
        %v2649 = vpop.xlane.xlu0 %2648
        %2650 = vadd.xlane.f32.xlu0 %v2647
        %v2651 = vpop.xlane.xlu0 %2650
        %v2652 = vmul.f32 %v2649, %v2317
        %v2653 = vmul.f32 %v2651, %v2317
        %v2654 = vadd.f32 %v2652, 1e-05
        %v2655 = vadd.f32 %v2653, 1e-05
        %v2656 = vrsqrt.pop %v2654
        %v2657 = vrsqrt.pop %v2655
        %v2658 = vmul.f32 %v2644, %v2656
        %v2659 = vmul.f32 %v2645, %v2657
        %v2661 = vlaneseq
        %v2662 = vshrl.u32 %v2661, 7
        %v2663 = vsub.s32 0, %v2662
        %v2664 = vrot.slane %v1057, %v2663
        %v2666 = vmul.f32 %v2658, %v2664
        %v2667 = vmul.f32 %v2659, %v2664
        %v2669 = vlaneseq
        %v2670 = vshrl.u32 %v2669, 7
        %v2671 = vsub.s32 0, %v2670
        %v2672 = vrot.slane %v1058, %v2671
        %v2674 = vadd.f32 %v2666, %v2672
        %v2675 = vadd.f32 %v2667, %v2672
        %2676 = vst [vmem:[#allocation2] sm:$0xff] %v2674
        %2677 = vst [vmem:[#allocation2 + $0x8] sm:$0xff] %v2675
        %p2678 = scmp.eq.s32.totalorder %s43, 1
        // Predicated region
        $region129: #{tpu_custom_call.1} parent=87 // pred_check
          %p2679 = pneg %p2678
        $region130: #{tpu_custom_call.1} parent=87 // pred_check_branch
          %2681 = sbr.rel (%p2679) target = $region132
        $region131: #{tpu_custom_call.1} parent=87 // pred_region
          %v2682 = vld [vmem:[#allocation6] sm:$0x1]
          %v2683 = vld [vmem:[#allocation6 + $0x1] sm:$0x1]
          %v2685 = vsel %vm1399, %v2682, 0
          %2687 = vmatprep.subr.mxu0 0.0
          %2688 = vmatpush1.msra.mxu0 %v2674
          %2689 = vmatprep.subr.mxu0 0.0
          %2690 = vmatpush1.msra.mxu0 0.0
          %2691 = vmatprep.subr.mxu0 0.0
          %2692 = vmatpush1.msra.mxu0 0.0
          %2693 = vmatprep.subr.mxu0 0.0
          %2694 = vmatpush1.msra.mxu0 0.0
          %2695 = vmatprep.subr.mxu0 0.0
          %2696 = vmatpush1.msra.mxu0 0.0
          %2697 = vmatprep.subr.mxu0 0.0
          %2698 = vmatpush1.msra.mxu0 0.0
          %2699 = vmatprep.subr.mxu0 0.0
          %2700 = vmatpush1.msra.mxu0 0.0
          %2701 = vmatprep.subr.mxu0 0.0
          %2702 = vmatpush1.msra.mxu0 0.0
          %2703 = vmatprep.subr.mxu0 0.0
          %2704 = vmatpush1.msra.mxu0 0.0
          %2705 = vmatprep.subr.mxu0 0.0
          %2706 = vmatpush1.msra.mxu0 0.0
          %2707 = vmatprep.subr.mxu0 0.0
          %2708 = vmatpush1.msra.mxu0 0.0
          %2709 = vmatprep.subr.mxu0 0.0
          %2710 = vmatpush1.msra.mxu0 0.0
          %2711 = vmatprep.subr.mxu0 0.0
          %2712 = vmatpush1.msra.mxu0 0.0
          %2713 = vmatprep.subr.mxu0 0.0
          %2714 = vmatpush1.msra.mxu0 0.0
          %2715 = vmatprep.subr.mxu0 0.0
          %2716 = vmatpush1.msra.mxu0 0.0
          %2717 = vmatprep.subr.mxu0 0.0
          %2718 = vmatpush1.msra.mxu0 0.0
          %2719 = vmatprep.subr.mxu0 0.0
          %2720 = vmatpush1.msra.mxu0 0.0
          %2721 = vmatprep.subr.mxu0 0.0
          %2722 = vmatpush1.msra.mxu0 0.0
          %2723 = vmatprep.subr.mxu0 0.0
          %2724 = vmatpush1.msra.mxu0 0.0
          %2725 = vmatprep.subr.mxu0 0.0
          %2726 = vmatpush1.msra.mxu0 0.0
          %2727 = vmatprep.subr.mxu0 0.0
          %2728 = vmatpush1.msra.mxu0 0.0
          %2729 = vmatprep.subr.mxu0 0.0
          %2730 = vmatpush1.msra.mxu0 0.0
          %2731 = vmatprep.subr.mxu0 0.0
          %2732 = vmatpush1.msra.mxu0 0.0
          %2733 = vmatprep.subr.mxu0 0.0
          %2734 = vmatpush1.msra.mxu0 0.0
          %2735 = vmatprep.subr.mxu0 0.0
          %2736 = vmatpush1.msra.mxu0 0.0
          %2737 = vmatprep.subr.mxu0 0.0
          %2738 = vmatpush1.msra.mxu0 0.0
          %2739 = vmatprep.subr.mxu0 0.0
          %2740 = vmatpush1.msra.mxu0 0.0
          %2741 = vmatprep.subr.mxu0 0.0
          %2742 = vmatpush1.msra.mxu0 0.0
          %2743 = vmatprep.subr.mxu0 0.0
          %2744 = vmatpush1.msra.mxu0 0.0
          %2745 = vmatprep.subr.mxu0 0.0
          %2746 = vmatpush1.msra.mxu0 0.0
          %2747 = vmatprep.subr.mxu0 0.0
          %2748 = vmatpush1.msra.mxu0 0.0
          %2749 = vmatprep.subr.mxu0 0.0
          %2750 = vmatpush1.msra.mxu0 0.0
          %2751 = vmatprep.mubr.f32.mxu0 0.0
          %2752 = vmatmul.mubr.f32.gmra.mrb[0].mxu0 %v2685
          %v2753 = vpop.f32.mrb[0].mxu0
          %v2754 = vadd.f32 0.0, %v2753
          %v2755 = vpop.f32.mrb[0].mxu0
          %2756 = vdwg.mxu0
          %v2758 = vsel %vm1399, %v2683, 0
          %2760 = vmatprep.subr.mxu0 0.0
          %2761 = vmatpush1.msra.mxu0 %v2675
          %2762 = vmatprep.subr.mxu0 0.0
          %2763 = vmatpush1.msra.mxu0 0.0
          %2764 = vmatprep.subr.mxu0 0.0
          %2765 = vmatpush1.msra.mxu0 0.0
          %2766 = vmatprep.subr.mxu0 0.0
          %2767 = vmatpush1.msra.mxu0 0.0
          %2768 = vmatprep.subr.mxu0 0.0
          %2769 = vmatpush1.msra.mxu0 0.0
          %2770 = vmatprep.subr.mxu0 0.0
          %2771 = vmatpush1.msra.mxu0 0.0
          %2772 = vmatprep.subr.mxu0 0.0
          %2773 = vmatpush1.msra.mxu0 0.0
          %2774 = vmatprep.subr.mxu0 0.0
          %2775 = vmatpush1.msra.mxu0 0.0
          %2776 = vmatprep.subr.mxu0 0.0
          %2777 = vmatpush1.msra.mxu0 0.0
          %2778 = vmatprep.subr.mxu0 0.0
          %2779 = vmatpush1.msra.mxu0 0.0
          %2780 = vmatprep.subr.mxu0 0.0
          %2781 = vmatpush1.msra.mxu0 0.0
          %2782 = vmatprep.subr.mxu0 0.0
          %2783 = vmatpush1.msra.mxu0 0.0
          %2784 = vmatprep.subr.mxu0 0.0
          %2785 = vmatpush1.msra.mxu0 0.0
          %2786 = vmatprep.subr.mxu0 0.0
          %2787 = vmatpush1.msra.mxu0 0.0
          %2788 = vmatprep.subr.mxu0 0.0
          %2789 = vmatpush1.msra.mxu0 0.0
          %2790 = vmatprep.subr.mxu0 0.0
          %2791 = vmatpush1.msra.mxu0 0.0
          %2792 = vmatprep.subr.mxu0 0.0
          %2793 = vmatpush1.msra.mxu0 0.0
          %2794 = vmatprep.subr.mxu0 0.0
          %2795 = vmatpush1.msra.mxu0 0.0
          %2796 = vmatprep.subr.mxu0 0.0
          %2797 = vmatpush1.msra.mxu0 0.0
          %2798 = vmatprep.subr.mxu0 0.0
          %2799 = vmatpush1.msra.mxu0 0.0
          %2800 = vmatprep.subr.mxu0 0.0
          %2801 = vmatpush1.msra.mxu0 0.0
          %2802 = vmatprep.subr.mxu0 0.0
          %2803 = vmatpush1.msra.mxu0 0.0
          %2804 = vmatprep.subr.mxu0 0.0
          %2805 = vmatpush1.msra.mxu0 0.0
          %2806 = vmatprep.subr.mxu0 0.0
          %2807 = vmatpush1.msra.mxu0 0.0
          %2808 = vmatprep.subr.mxu0 0.0
          %2809 = vmatpush1.msra.mxu0 0.0
          %2810 = vmatprep.subr.mxu0 0.0
          %2811 = vmatpush1.msra.mxu0 0.0
          %2812 = vmatprep.subr.mxu0 0.0
          %2813 = vmatpush1.msra.mxu0 0.0
          %2814 = vmatprep.subr.mxu0 0.0
          %2815 = vmatpush1.msra.mxu0 0.0
          %2816 = vmatprep.subr.mxu0 0.0
          %2817 = vmatpush1.msra.mxu0 0.0
          %2818 = vmatprep.subr.mxu0 0.0
          %2819 = vmatpush1.msra.mxu0 0.0
          %2820 = vmatprep.subr.mxu0 0.0
          %2821 = vmatpush1.msra.mxu0 0.0
          %2822 = vmatprep.subr.mxu0 0.0
          %2823 = vmatpush1.msra.mxu0 0.0
          %2824 = vmatprep.mubr.f32.mxu0 0.0
          %2825 = vmatmul.mubr.f32.gmra.mrb[0].mxu0 %v2758
          %v2826 = vpop.f32.mrb[0].mxu0
          %v2827 = vadd.f32 0.0, %v2826
          %v2828 = vpop.f32.mrb[0].mxu0
          %2829 = vdwg.mxu0
          %vm2830 = vcmask 57344
          %v2831 = vsel %vm2830, %v2682, 0.0
          %2832 = vadd.xlane.f32.xlu0 %v2831
          %v2833 = vpop.xlane.xlu0 %2832
          %v2834 = vsel %vm2830, %v2683, 0.0
          %2835 = vadd.xlane.f32.xlu0 %v2834
          %v2836 = vpop.xlane.xlu0 %2835
          %v2837 = vmax.f32 %v2833, 1e-09
          %v2838 = vmax.f32 %v2836, 1e-09
          %v2839 = vrcp.pop %v2837
          %v2840 = vmul.f32 %v2754, %v2839
          %v2841 = vrcp.pop %v2838
          %v2842 = vmul.f32 %v2827, %v2841
          %2843 = vst [vmem:[#allocation18] sm:$0x1] %v2840
          %2844 = vst [vmem:[#allocation18 + $0x1] sm:$0x1] %v2842
        $region132: #{tpu_custom_call.1} parent=87 // pred_fallthru
          _
        // Predicated region
        $region133: #{tpu_custom_call.1} parent=87 // pred_check
          %p2845 = pneg %p500
        $region134: #{tpu_custom_call.1} parent=87 // pred_check_branch
          %2847 = sbr.rel (%p2845) target = $region136
        $region135: #{tpu_custom_call.1} parent=87 // pred_region
          %s2848 = smul.u32 2, %s42
          %s2850 = ssub.s32 32, 32
          %2851 = vsyncadd [#allocation5], %s2850
          %s2852 = smul.addr %s2848, 16
          %s2853 = scalar_lea.hbm %s17, %s2852
          %s2854 = sshll.u32 [#allocation18], 4
          %s2855 = int_to_ptr.vmem [resolvable:$true] %s2854
          %2860 = dma.vmem_to_hbm [thread:$0]  %s2855, 32, %s2853, [#allocation5], 16, 16, 1
        $region136: #{tpu_custom_call.1} parent=87 // pred_fallthru
          _
        // Predicated region
        $region137: #{tpu_custom_call.1} parent=87 // pred_check
          %p2861 = pneg %p500
        $region138: #{tpu_custom_call.1} parent=87 // pred_check_branch
          %2863 = sbr.rel (%p2861) target = $region140
        $region139: #{tpu_custom_call.1} parent=87 // pred_region
          %2864 = dma.done [#allocation5], 32
        $region140: #{tpu_custom_call.1} parent=87 // pred_fallthru
          _
      $region88: #{tpu_custom_call.1} parent=5 // pred_fallthru
        _
      %p2865 = scmp.le.s32.totalorder 2, %s33
      // Predicated region
      $region141: #{tpu_custom_call.1} parent=5 // pred_check
        %p2866 = pneg %p2865
      $region142: #{tpu_custom_call.1} parent=5 // pred_check_branch
        %2868 = sbr.rel (%p2866) target = $region144
      $region143: #{tpu_custom_call.1} parent=5 // pred_region
        %s2869 = ssub.s32 %s33, 2
      $region144: #{tpu_custom_call.1} parent=5 // pred_fallthru
        _
    $region6: #{tpu_custom_call.1} parent=1 // loop_footer
      %s37 = sadd.s32 1, %s33
    $region7: #{tpu_custom_call.1} parent=1 // loop_footer_branch
      %32 = sbr.rel target = $region3
    $region8: #{tpu_custom_call.1} parent=1 // loop_exit
      _
    %2870 = vsyncpa [#allocation4], 1
    %s2871 = scalar_lea.sflag [#allocation4], 1
    %2872 = vsyncpa %s2871, 1
    %2873 = vsyncpa [#allocation7], 1
    %2874 = vsyncpa [#allocation10], 1
    %2875 = vsyncpa [#allocation13], 1
    %s2876 = scalar_lea.sflag [#allocation13], 1
    %2877 = vsyncpa %s2876, 1
    %2878 = vsyncpa [#allocation16], 1
    %s2879 = scalar_lea.sflag [#allocation16], 1
    %2880 = vsyncpa %s2879, 1
    %2881 = vsyncpa [#allocation5], 1
    %s2882 = scalar_lea.sflag [#allocation5], 1
    %2883 = vsyncpa %s2882, 1

</llo_original>
